<compile_context>
chip_gen: v6e
topology: v6e:2x2x1
jax: 0.10.0
libtpu: 0.0.40
codegen_flags: <defaults>
</compile_context>

<pallas_src>
import functools
import math

import jax
import jax.numpy as jnp
from jax import lax
from jax.experimental import pallas as pl
from jax.experimental.pallas import tpu as pltpu

D_MODEL = 300                      # real feature width
D_PAD = 384                        # 3 * 128 lane-dense padded width
N_HEADS = 6
D_HEAD = 50                        # real head width
DH_PAD = 128                       # head width padded to a full 128-lane group
QKV_COLS = 3 * N_HEADS * DH_PAD    # 2304 fused QKV output columns
CTX_COLS = N_HEADS * DH_PAD        # 768 fused context columns
LN_EPS = 1e-5
# NOTE: the PyTorch code divides by sqrt(10) (hard-coded), NOT sqrt(d_head).
SCALE = 1.0 / math.sqrt(10.0)


def mha_block_kernel(x_ref, wqkv_ref, bqkv_ref, wo_ref, bo_ref,
                     gamma_ref, beta_ref, out_ref, ctx_ref, *,
                     use_bf16_exp):
    # x_ref block: (Bt, S, D_PAD) float32, pad lanes [300:384] are zero.
    Bt, S, Dp = x_ref.shape
    R = Bt * S

    x = x_ref[...]                                   # (Bt, S, 384) f32
    x2 = x.reshape(R, Dp)                            # (R, 384) f32
    xb = x2.astype(jnp.bfloat16)                     # bf16 MXU operand

    # --- Fused QKV projection: one full-width matmul -----------------------
    # Columns are head-major 128-lane blocks: [Q h0..h5 | K h0..h5 | V h0..h5].
    # SCALE is already folded into the Q columns / Q bias.
    qkv = jnp.dot(xb, wqkv_ref[...], preferred_element_type=jnp.float32)
    qkv = qkv + bqkv_ref[...]                        # (R, 2304) f32

    # --- Per-head attention (head slices are 128-lane aligned => free) -----
    for h in range(N_HEADS):
        q0 = h * DH_PAD
        k0 = (N_HEADS + h) * DH_PAD
        v0 = (2 * N_HEADS + h) * DH_PAD
        q3 = qkv[:, q0:q0 + DH_PAD].reshape(Bt, S, DH_PAD).astype(jnp.bfloat16)
        k3 = qkv[:, k0:k0 + DH_PAD].reshape(Bt, S, DH_PAD).astype(jnp.bfloat16)
        v3 = qkv[:, v0:v0 + DH_PAD].reshape(Bt, S, DH_PAD).astype(jnp.bfloat16)

        # scores[b] = q3[b] @ k3[b]^T, contraction over the 128-deep head dim.
        scores = lax.dot_general(
            q3, k3,
            dimension_numbers=(((2,), (2,)), ((0,), (0,))),
            preferred_element_type=jnp.float32)              # (Bt, S, S)

        scores = scores - jnp.max(scores, axis=-1, keepdims=True)
        if use_bf16_exp:
            e = jnp.exp(scores.astype(jnp.bfloat16))         # bf16 EUP (v6e/v7x)
        else:
            e = jnp.exp(scores)                              # f32 EUP (v5e)
        denom = jnp.sum(e.astype(jnp.float32), axis=-1, keepdims=True)
        inv = pl.reciprocal(denom, approx=True)              # EUP reciprocal
        attn = (e * inv.astype(e.dtype)).astype(jnp.bfloat16)

        ctx = lax.dot_general(
            attn, v3,
            dimension_numbers=(((2,), (1,)), ((0,), (0,))),
            preferred_element_type=jnp.float32)              # (Bt, S, 128)

        # Lane-aligned store into the fused head-major context slab.
        ctx_ref[:, h * DH_PAD:(h + 1) * DH_PAD] = (
            ctx.reshape(R, DH_PAD).astype(jnp.bfloat16))

    # --- Fused output projection: one (R,768)x(768,384) matmul -------------
    out = jnp.dot(ctx_ref[...], wo_ref[...], preferred_element_type=jnp.float32)

    # Output projection bias + residual (f32).  Pad lanes of y are exactly 0:
    # W_O / bo / x pad lanes are all zero.
    y = out + bo_ref[...] + x2                               # (R, 384)

    # LayerNorm over exactly D_MODEL=300 real features, two-pass variance.
    inv_n = 1.0 / D_MODEL
    mean = jnp.sum(y, axis=-1, keepdims=True) * inv_n        # pad lanes are 0
    d = y - mean
    # Each of the (Dp - D_MODEL) zero pad lanes contributes mean^2 to sum(d^2);
    # subtract that exactly so var is the true variance over the 300 features.
    var = (jnp.sum(d * d, axis=-1, keepdims=True)
           - float(Dp - D_MODEL) * mean * mean) * inv_n
    y_norm = d * lax.rsqrt(var + LN_EPS)
    # gamma/beta pad lanes are zero, so pad lanes of the result are zero.
    res = y_norm * gamma_ref[...] + beta_ref[...]
    out_ref[...] = res.reshape(Bt, S, Dp)


def _choose_bt(B, S, target_rows=1024):
    """Batch elements per grid step: big row blocks for the MXU, but keep at
    least 4 grid steps when possible (>= 2 per TensorCore on v7x)."""
    bt = max(1, target_rows // max(S, 1))
    if B >= 4:
        bt = min(bt, B // 4)
    elif B >= 2:
        bt = min(bt, B // 2)
    bt = max(1, min(bt, B))
    while B % bt != 0:
        bt -= 1
    return bt


def _bf16_exp_supported():
    """bf16 EUP exists on v6e/v7x; keep f32 exp on v5e and older / non-TPU."""
    try:
        kind = jax.devices()[0].device_kind.lower()
    except Exception:
        return False
    return ("v6" in kind) or ("v7" in kind)


def prepare_params(p):
    """Convert the (in,out)-layout f32 params into the fused kernel layout:
    head-major 128-lane column blocks, zero-padded, matmul weights in bf16,
    with the 1/sqrt(10) scale folded into W_Q / b_Q."""
    def head_major_qkv(w, b, scale=1.0):
        # w: (300, 300) (in, out); head h occupies output cols [h*50:(h+1)*50]
        w = w.reshape(D_MODEL, N_HEADS, D_HEAD)                       # (300,6,50)
        w = jnp.pad(w, ((0, D_PAD - D_MODEL), (0, 0), (0, DH_PAD - D_HEAD)))
        w = (w * scale).reshape(D_PAD, N_HEADS * DH_PAD)              # (384,768)
        b = b.reshape(N_HEADS, D_HEAD)
        b = jnp.pad(b, ((0, 0), (0, DH_PAD - D_HEAD))) * scale
        b = b.reshape(1, N_HEADS * DH_PAD)                            # (1,768)
        return w, b

    wq, bq = head_major_qkv(p["wq"], p["bq"], scale=SCALE)   # fold 1/sqrt(10)
    wk, bk = head_major_qkv(p["wk"], p["bk"])
    wv, bv = head_major_qkv(p["wv"], p["bv"])

    wqkv = jnp.concatenate([wq, wk, wv], axis=1).astype(jnp.bfloat16)  # (384,2304)
    bqkv = jnp.concatenate([bq, bk, bv], axis=1).astype(jnp.float32)   # (1,2304)

    # wo: (300, 300) (in, out); rows [h*50:(h+1)*50] belong to head h.
    wo = p["wo"].reshape(N_HEADS, D_HEAD, D_MODEL)                     # (6,50,300)
    wo = jnp.pad(wo, ((0, 0), (0, DH_PAD - D_HEAD), (0, D_PAD - D_MODEL)))
    wo = wo.reshape(N_HEADS * DH_PAD, D_PAD).astype(jnp.bfloat16)      # (768,384)

    def pad_vec(v):
        return jnp.pad(v, ((0, 0), (0, D_PAD - D_MODEL))).astype(jnp.float32)

    return dict(wqkv=wqkv, bqkv=bqkv, wo=wo, bo=pad_vec(p["bo"]),
                gamma=pad_vec(p["gamma"]), beta=pad_vec(p["beta"]))


def multi_head_attention_block_padded(x_p, prep, block_batch=None):
    """Core entry point in the persistent padded layout.

    x_p: (B, S, 384) float32 with pad lanes [300:384] exactly zero.
    Returns (B, S, 384) float32 with pad lanes exactly zero, so a stack of
    these blocks can stay in the padded layout with no per-layer pad/slice.
    """
    B, S, Dp = x_p.shape
    assert Dp == D_PAD
    Bt = _choose_bt(B, S) if block_batch is None else block_batch
    assert B % Bt == 0

    kernel = functools.partial(mha_block_kernel,
                               use_bf16_exp=_bf16_exp_supported())

    x_spec = pl.BlockSpec((Bt, S, D_PAD), lambda b: (b, 0, 0))
    wqkv_spec = pl.BlockSpec((D_PAD, QKV_COLS), lambda b: (0, 0))
    bqkv_spec = pl.BlockSpec((1, QKV_COLS), lambda b: (0, 0))
    wo_spec = pl.BlockSpec((CTX_COLS, D_PAD), lambda b: (0, 0))
    vec_spec = pl.BlockSpec((1, D_PAD), lambda b: (0, 0))

    return pl.pallas_call(
        kernel,
        out_shape=jax.ShapeDtypeStruct((B, S, D_PAD), jnp.float32),
        grid_spec=pltpu.PrefetchScalarGridSpec(
            num_scalar_prefetch=0,
            grid=(B // Bt,),
            in_specs=[x_spec,
                      wqkv_spec, bqkv_spec,     # fused W_QKV, b_QKV
                      wo_spec, vec_spec,        # W_O (self.line), b_O
                      vec_spec, vec_spec],      # LN gamma, beta
            out_specs=x_spec,
            scratch_shapes=[pltpu.VMEM((Bt * S, CTX_COLS), jnp.bfloat16)],
        ),
        compiler_params=pltpu.CompilerParams(
            dimension_semantics=("parallel",),
            vmem_limit_bytes=48 * 1024 * 1024),
    )(x_p, prep["wqkv"], prep["bqkv"], prep["wo"], prep["bo"],
      prep["gamma"], prep["beta"])


def multi_head_attention_block(x, prep, block_batch=None):
    """Convenience wrapper for unpadded (B, S, 300) activations.  In a real
    network, keep activations padded and call the *_padded entry point to
    avoid the extra pad/slice HBM passes."""
    B, S, D = x.shape
    assert D == D_MODEL
    x_p = jnp.pad(x, ((0, 0), (0, 0), (0, D_PAD - D_MODEL)))
    out = multi_head_attention_block_padded(x_p, prep, block_batch)
    return out[..., :D_MODEL]


def init_params(key):
    """PyTorch-equivalent init: nn.Linear(300,300) + nn.LayerNorm(300)."""
    ks = jax.random.split(key, 8)
    scale = 1.0 / math.sqrt(D_MODEL)

    def lin(kw, kb):
        # Stored as (in, out) so forward is x @ W (== PyTorch x @ W.T).
        w = jax.random.uniform(kw, (D_MODEL, D_MODEL), jnp.float32,
                               -scale, scale)
        b = jax.random.uniform(kb, (1, D_MODEL), jnp.float32, -scale, scale)
        return w, b

    wq, bq = lin(ks[0], ks[1])
    wk, bk = lin(ks[2], ks[3])
    wv, bv = lin(ks[4], ks[5])
    wo, bo = lin(ks[6], ks[7])
    gamma = jnp.ones((1, D_MODEL), jnp.float32)
    beta = jnp.zeros((1, D_MODEL), jnp.float32)
    return dict(wq=wq, bq=bq, wk=wk, bk=bk, wv=wv, bv=bv,
                wo=wo, bo=bo, gamma=gamma, beta=beta)


def reference_forward(x, p):
    """Pure-JAX f32 reference mirroring the PyTorch forward exactly."""
    B, S, _ = x.shape
    q = x @ p["wq"] + p["bq"][0]
    k = x @ p["wk"] + p["bk"][0]
    v = x @ p["wv"] + p["bv"][0]

    def split(t):  # (B,S,300) -> (B,6,S,50)
        return t.reshape(B, S, N_HEADS, D_HEAD).transpose(0, 2, 1, 3)

    qs, ks_, vs = split(q), split(k), split(v)
    scores = jnp.einsum("bhqd,bhkd->bhqk", qs, ks_) * SCALE
    attn = jax.nn.softmax(scores, axis=-1)
    ctx = jnp.einsum("bhqk,bhkd->bhqd", attn, vs)
    ctx = ctx.transpose(0, 2, 1, 3).reshape(B, S, D_MODEL)
    out = ctx @ p["wo"] + p["bo"][0]
    y = out + x
    mean = jnp.mean(y, axis=-1, keepdims=True)
    var = jnp.mean((y - mean) ** 2, axis=-1, keepdims=True)
    return (y - mean) * lax.rsqrt(var + LN_EPS) * p["gamma"][0] + p["beta"][0]


if __name__ == "__main__":
    key = jax.random.PRNGKey(0)
    k_x, k_p = jax.random.split(key)

    B, S = 2, 8
    x = jax.random.normal(k_x, (B, S, D_MODEL), jnp.float32)
    params = init_params(k_p)
    prep = prepare_params(params)

    out = multi_head_attention_block(x, prep)
    out = jax.block_until_ready(out)

    ref = reference_forward(x, params)
    assert out.shape == (B, S, D_MODEL)
    # bf16 MXU operands (and bf16 exp on v6e/v7x) with f32 accumulation
    # -> relaxed tolerance vs the pure-f32 reference.
    assert jnp.allclose(out, ref, atol=3e-2, rtol=3e-2), "mismatch vs reference"

    print("KERNEL_OK")
</pallas_src>

<mosaic_0001>
module attributes {stable_mosaic.version = 11 : i64} {
  func.func @mha_block_kernel(%arg0: i32, %arg1: memref<1x8x384xf32, #tpu.memory_space<vmem>>, %arg2: memref<384x2304xbf16, #tpu.memory_space<vmem>>, %arg3: memref<1x2304xf32, #tpu.memory_space<vmem>>, %arg4: memref<768x384xbf16, #tpu.memory_space<vmem>>, %arg5: memref<1x384xf32, #tpu.memory_space<vmem>>, %arg6: memref<1x384xf32, #tpu.memory_space<vmem>>, %arg7: memref<1x384xf32, #tpu.memory_space<vmem>>, %arg8: memref<1x8x384xf32, #tpu.memory_space<vmem>>, %arg9: memref<8x768xbf16, #tpu.memory_space<vmem>>) attributes {dimension_semantics = [#tpu.dimension_semantics<parallel>], iteration_bounds = array<i64: 2>, scalar_prefetch = 0 : i64, scratch_operands = 1 : i64, tpu.core_type = #tpu.core_type<tc>, window_params = [{transform_indices = @transform_0, window_bounds = array<i64: 1, 8, 384>}, {pipeline_mode = #tpu.pipeline_mode<synchronous>, transform_indices = @transform_1, window_bounds = array<i64: 384, 2304>}, {pipeline_mode = #tpu.pipeline_mode<synchronous>, transform_indices = @transform_2, window_bounds = array<i64: 1, 2304>}, {pipeline_mode = #tpu.pipeline_mode<synchronous>, transform_indices = @transform_3, window_bounds = array<i64: 768, 384>}, {pipeline_mode = #tpu.pipeline_mode<synchronous>, transform_indices = @transform_4, window_bounds = array<i64: 1, 384>}, {pipeline_mode = #tpu.pipeline_mode<synchronous>, transform_indices = @transform_5, window_bounds = array<i64: 1, 384>}, {pipeline_mode = #tpu.pipeline_mode<synchronous>, transform_indices = @transform_6, window_bounds = array<i64: 1, 384>}, {transform_indices = @transform_7, window_bounds = array<i64: 1, 8, 384>}]} {
    %c0 = arith.constant 0 : index
    %c0_0 = arith.constant 0 : index
    %c0_1 = arith.constant 0 : index
    %0 = vector.load %arg1[%c0, %c0_0, %c0_1] : memref<1x8x384xf32, #tpu.memory_space<vmem>>, vector<1x8x384xf32>
    %1 = vector.shape_cast %0 : vector<1x8x384xf32> to vector<8x384xf32>
    %2 = arith.truncf %1 : vector<8x384xf32> to vector<8x384xbf16>
    %c0_2 = arith.constant 0 : index
    %c0_3 = arith.constant 0 : index
    %3 = vector.load %arg2[%c0_2, %c0_3] : memref<384x2304xbf16, #tpu.memory_space<vmem>>, vector<384x2304xbf16>
    %cst = arith.constant dense<0.000000e+00> : vector<8x2304xf32>
    %4 = tpu.matmul %2, %3, %cst {dimension_numbers = #tpu.dot_dimension_numbers<[1], [0], [0], [1], [0, 0, 1, 1], [], []>} : vector<8x384xbf16>, vector<384x2304xbf16>, vector<8x2304xf32> -> vector<8x2304xf32>
    %c0_4 = arith.constant 0 : index
    %c0_5 = arith.constant 0 : index
    %5 = vector.load %arg3[%c0_4, %c0_5] : memref<1x2304xf32, #tpu.memory_space<vmem>>, vector<1x2304xf32>
    %6 = vector.broadcast %5 : vector<1x2304xf32> to vector<8x2304xf32>
    %7 = arith.addf %4, %6 : vector<8x2304xf32>
    %8 = vector.extract_strided_slice %7 {offsets = [0, 0], sizes = [8, 128], strides = [1, 1]} : vector<8x2304xf32> to vector<8x128xf32>
    %9 = vector.shape_cast %8 : vector<8x128xf32> to vector<1x8x128xf32>
    %10 = arith.truncf %9 : vector<1x8x128xf32> to vector<1x8x128xbf16>
    %11 = vector.extract_strided_slice %7 {offsets = [0, 768], sizes = [8, 128], strides = [1, 1]} : vector<8x2304xf32> to vector<8x128xf32>
    %12 = vector.shape_cast %11 : vector<8x128xf32> to vector<1x8x128xf32>
    %13 = arith.truncf %12 : vector<1x8x128xf32> to vector<1x8x128xbf16>
    %14 = vector.extract_strided_slice %7 {offsets = [0, 1536], sizes = [8, 128], strides = [1, 1]} : vector<8x2304xf32> to vector<8x128xf32>
    %15 = vector.shape_cast %14 : vector<8x128xf32> to vector<1x8x128xf32>
    %16 = arith.truncf %15 : vector<1x8x128xf32> to vector<1x8x128xbf16>
    %cst_6 = arith.constant dense<0.000000e+00> : vector<1x8x8xf32>
    %17 = tpu.matmul %10, %13, %cst_6 {dimension_numbers = #tpu.dot_dimension_numbers<[2], [2], [1], [1], [0, 0, 0, 1, 1, 1], [0], [0]>} : vector<1x8x128xbf16>, vector<1x8x128xbf16>, vector<1x8x8xf32> -> vector<1x8x8xf32>
    %cst_7 = arith.constant dense<0xFF800000> : vector<1x8xf32>
    %18 = vector.multi_reduction <maximumf>, %17, %cst_7 [2] : vector<1x8x8xf32> to vector<1x8xf32>
    %19 = vector.shape_cast %18 : vector<1x8xf32> to vector<1x8x1xf32>
    %20 = vector.broadcast %19 : vector<1x8x1xf32> to vector<1x8x8xf32>
    %21 = arith.subf %17, %20 : vector<1x8x8xf32>
    %22 = math.exp %21 : vector<1x8x8xf32>
    %cst_8 = arith.constant dense<0.000000e+00> : vector<1x8xf32>
    %23 = vector.multi_reduction <add>, %22, %cst_8 [2] : vector<1x8x8xf32> to vector<1x8xf32>
    %24 = vector.shape_cast %23 : vector<1x8xf32> to vector<1x8x1xf32>
    %25 = tpu.reciprocal %24 {approx = true} : vector<1x8x1xf32> -> vector<1x8x1xf32>
    %26 = vector.broadcast %25 : vector<1x8x1xf32> to vector<1x8x8xf32>
    %27 = arith.mulf %22, %26 : vector<1x8x8xf32>
    %28 = arith.truncf %27 : vector<1x8x8xf32> to vector<1x8x8xbf16>
    %cst_9 = arith.constant dense<0.000000e+00> : vector<1x8x128xf32>
    %29 = tpu.matmul %28, %16, %cst_9 {dimension_numbers = #tpu.dot_dimension_numbers<[2], [1], [1], [2], [0, 0, 0, 1, 1, 2], [0], [0]>} : vector<1x8x8xbf16>, vector<1x8x128xbf16>, vector<1x8x128xf32> -> vector<1x8x128xf32>
    %30 = vector.shape_cast %29 : vector<1x8x128xf32> to vector<8x128xf32>
    %31 = arith.truncf %30 : vector<8x128xf32> to vector<8x128xbf16>
    %c0_10 = arith.constant 0 : index
    %c0_11 = arith.constant 0 : index
    %32 = vector.load %arg9[%c0_10, %c0_11] : memref<8x768xbf16, #tpu.memory_space<vmem>>, vector<8x128xbf16>
    tpu.vector_store %arg9[%c0_10, %c0_11], %31 {strides = array<i32>} : memref<8x768xbf16, #tpu.memory_space<vmem>>, vector<8x128xbf16>,
    %33 = vector.extract_strided_slice %7 {offsets = [0, 128], sizes = [8, 128], strides = [1, 1]} : vector<8x2304xf32> to vector<8x128xf32>
    %34 = vector.shape_cast %33 : vector<8x128xf32> to vector<1x8x128xf32>
    %35 = arith.truncf %34 : vector<1x8x128xf32> to vector<1x8x128xbf16>
    %36 = vector.extract_strided_slice %7 {offsets = [0, 896], sizes = [8, 128], strides = [1, 1]} : vector<8x2304xf32> to vector<8x128xf32>
    %37 = vector.shape_cast %36 : vector<8x128xf32> to vector<1x8x128xf32>
    %38 = arith.truncf %37 : vector<1x8x128xf32> to vector<1x8x128xbf16>
    %39 = vector.extract_strided_slice %7 {offsets = [0, 1664], sizes = [8, 128], strides = [1, 1]} : vector<8x2304xf32> to vector<8x128xf32>
    %40 = vector.shape_cast %39 : vector<8x128xf32> to vector<1x8x128xf32>
    %41 = arith.truncf %40 : vector<1x8x128xf32> to vector<1x8x128xbf16>
    %cst_12 = arith.constant dense<0.000000e+00> : vector<1x8x8xf32>
    %42 = tpu.matmul %35, %38, %cst_12 {dimension_numbers = #tpu.dot_dimension_numbers<[2], [2], [1], [1], [0, 0, 0, 1, 1, 1], [0], [0]>} : vector<1x8x128xbf16>, vector<1x8x128xbf16>, vector<1x8x8xf32> -> vector<1x8x8xf32>
    %cst_13 = arith.constant dense<0xFF800000> : vector<1x8xf32>
    %43 = vector.multi_reduction <maximumf>, %42, %cst_13 [2] : vector<1x8x8xf32> to vector<1x8xf32>
    %44 = vector.shape_cast %43 : vector<1x8xf32> to vector<1x8x1xf32>
    %45 = vector.broadcast %44 : vector<1x8x1xf32> to vector<1x8x8xf32>
    %46 = arith.subf %42, %45 : vector<1x8x8xf32>
    %47 = math.exp %46 : vector<1x8x8xf32>
    %cst_14 = arith.constant dense<0.000000e+00> : vector<1x8xf32>
    %48 = vector.multi_reduction <add>, %47, %cst_14 [2] : vector<1x8x8xf32> to vector<1x8xf32>
    %49 = vector.shape_cast %48 : vector<1x8xf32> to vector<1x8x1xf32>
    %50 = tpu.reciprocal %49 {approx = true} : vector<1x8x1xf32> -> vector<1x8x1xf32>
    %51 = vector.broadcast %50 : vector<1x8x1xf32> to vector<1x8x8xf32>
    %52 = arith.mulf %47, %51 : vector<1x8x8xf32>
    %53 = arith.truncf %52 : vector<1x8x8xf32> to vector<1x8x8xbf16>
    %cst_15 = arith.constant dense<0.000000e+00> : vector<1x8x128xf32>
    %54 = tpu.matmul %53, %41, %cst_15 {dimension_numbers = #tpu.dot_dimension_numbers<[2], [1], [1], [2], [0, 0, 0, 1, 1, 2], [0], [0]>} : vector<1x8x8xbf16>, vector<1x8x128xbf16>, vector<1x8x128xf32> -> vector<1x8x128xf32>
    %55 = vector.shape_cast %54 : vector<1x8x128xf32> to vector<8x128xf32>
    %56 = arith.truncf %55 : vector<8x128xf32> to vector<8x128xbf16>
    %c0_16 = arith.constant 0 : index
    %c128 = arith.constant 128 : index
    %57 = vector.load %arg9[%c0_16, %c128] : memref<8x768xbf16, #tpu.memory_space<vmem>>, vector<8x128xbf16>
    tpu.vector_store %arg9[%c0_16, %c128], %56 {strides = array<i32>} : memref<8x768xbf16, #tpu.memory_space<vmem>>, vector<8x128xbf16>,
    %58 = vector.extract_strided_slice %7 {offsets = [0, 256], sizes = [8, 128], strides = [1, 1]} : vector<8x2304xf32> to vector<8x128xf32>
    %59 = vector.shape_cast %58 : vector<8x128xf32> to vector<1x8x128xf32>
    %60 = arith.truncf %59 : vector<1x8x128xf32> to vector<1x8x128xbf16>
    %61 = vector.extract_strided_slice %7 {offsets = [0, 1024], sizes = [8, 128], strides = [1, 1]} : vector<8x2304xf32> to vector<8x128xf32>
    %62 = vector.shape_cast %61 : vector<8x128xf32> to vector<1x8x128xf32>
    %63 = arith.truncf %62 : vector<1x8x128xf32> to vector<1x8x128xbf16>
    %64 = vector.extract_strided_slice %7 {offsets = [0, 1792], sizes = [8, 128], strides = [1, 1]} : vector<8x2304xf32> to vector<8x128xf32>
    %65 = vector.shape_cast %64 : vector<8x128xf32> to vector<1x8x128xf32>
    %66 = arith.truncf %65 : vector<1x8x128xf32> to vector<1x8x128xbf16>
    %cst_17 = arith.constant dense<0.000000e+00> : vector<1x8x8xf32>
    %67 = tpu.matmul %60, %63, %cst_17 {dimension_numbers = #tpu.dot_dimension_numbers<[2], [2], [1], [1], [0, 0, 0, 1, 1, 1], [0], [0]>} : vector<1x8x128xbf16>, vector<1x8x128xbf16>, vector<1x8x8xf32> -> vector<1x8x8xf32>
    %cst_18 = arith.constant dense<0xFF800000> : vector<1x8xf32>
    %68 = vector.multi_reduction <maximumf>, %67, %cst_18 [2] : vector<1x8x8xf32> to vector<1x8xf32>
    %69 = vector.shape_cast %68 : vector<1x8xf32> to vector<1x8x1xf32>
    %70 = vector.broadcast %69 : vector<1x8x1xf32> to vector<1x8x8xf32>
    %71 = arith.subf %67, %70 : vector<1x8x8xf32>
    %72 = math.exp %71 : vector<1x8x8xf32>
    %cst_19 = arith.constant dense<0.000000e+00> : vector<1x8xf32>
    %73 = vector.multi_reduction <add>, %72, %cst_19 [2] : vector<1x8x8xf32> to vector<1x8xf32>
    %74 = vector.shape_cast %73 : vector<1x8xf32> to vector<1x8x1xf32>
    %75 = tpu.reciprocal %74 {approx = true} : vector<1x8x1xf32> -> vector<1x8x1xf32>
    %76 = vector.broadcast %75 : vector<1x8x1xf32> to vector<1x8x8xf32>
    %77 = arith.mulf %72, %76 : vector<1x8x8xf32>
    %78 = arith.truncf %77 : vector<1x8x8xf32> to vector<1x8x8xbf16>
    %cst_20 = arith.constant dense<0.000000e+00> : vector<1x8x128xf32>
    %79 = tpu.matmul %78, %66, %cst_20 {dimension_numbers = #tpu.dot_dimension_numbers<[2], [1], [1], [2], [0, 0, 0, 1, 1, 2], [0], [0]>} : vector<1x8x8xbf16>, vector<1x8x128xbf16>, vector<1x8x128xf32> -> vector<1x8x128xf32>
    %80 = vector.shape_cast %79 : vector<1x8x128xf32> to vector<8x128xf32>
    %81 = arith.truncf %80 : vector<8x128xf32> to vector<8x128xbf16>
    %c0_21 = arith.constant 0 : index
    %c256 = arith.constant 256 : index
    %82 = vector.load %arg9[%c0_21, %c256] : memref<8x768xbf16, #tpu.memory_space<vmem>>, vector<8x128xbf16>
    tpu.vector_store %arg9[%c0_21, %c256], %81 {strides = array<i32>} : memref<8x768xbf16, #tpu.memory_space<vmem>>, vector<8x128xbf16>,
    %83 = vector.extract_strided_slice %7 {offsets = [0, 384], sizes = [8, 128], strides = [1, 1]} : vector<8x2304xf32> to vector<8x128xf32>
    %84 = vector.shape_cast %83 : vector<8x128xf32> to vector<1x8x128xf32>
    %85 = arith.truncf %84 : vector<1x8x128xf32> to vector<1x8x128xbf16>
    %86 = vector.extract_strided_slice %7 {offsets = [0, 1152], sizes = [8, 128], strides = [1, 1]} : vector<8x2304xf32> to vector<8x128xf32>
    %87 = vector.shape_cast %86 : vector<8x128xf32> to vector<1x8x128xf32>
    %88 = arith.truncf %87 : vector<1x8x128xf32> to vector<1x8x128xbf16>
    %89 = vector.extract_strided_slice %7 {offsets = [0, 1920], sizes = [8, 128], strides = [1, 1]} : vector<8x2304xf32> to vector<8x128xf32>
    %90 = vector.shape_cast %89 : vector<8x128xf32> to vector<1x8x128xf32>
    %91 = arith.truncf %90 : vector<1x8x128xf32> to vector<1x8x128xbf16>
    %cst_22 = arith.constant dense<0.000000e+00> : vector<1x8x8xf32>
    %92 = tpu.matmul %85, %88, %cst_22 {dimension_numbers = #tpu.dot_dimension_numbers<[2], [2], [1], [1], [0, 0, 0, 1, 1, 1], [0], [0]>} : vector<1x8x128xbf16>, vector<1x8x128xbf16>, vector<1x8x8xf32> -> vector<1x8x8xf32>
    %cst_23 = arith.constant dense<0xFF800000> : vector<1x8xf32>
    %93 = vector.multi_reduction <maximumf>, %92, %cst_23 [2] : vector<1x8x8xf32> to vector<1x8xf32>
    %94 = vector.shape_cast %93 : vector<1x8xf32> to vector<1x8x1xf32>
    %95 = vector.broadcast %94 : vector<1x8x1xf32> to vector<1x8x8xf32>
    %96 = arith.subf %92, %95 : vector<1x8x8xf32>
    %97 = math.exp %96 : vector<1x8x8xf32>
    %cst_24 = arith.constant dense<0.000000e+00> : vector<1x8xf32>
    %98 = vector.multi_reduction <add>, %97, %cst_24 [2] : vector<1x8x8xf32> to vector<1x8xf32>
    %99 = vector.shape_cast %98 : vector<1x8xf32> to vector<1x8x1xf32>
    %100 = tpu.reciprocal %99 {approx = true} : vector<1x8x1xf32> -> vector<1x8x1xf32>
    %101 = vector.broadcast %100 : vector<1x8x1xf32> to vector<1x8x8xf32>
    %102 = arith.mulf %97, %101 : vector<1x8x8xf32>
    %103 = arith.truncf %102 : vector<1x8x8xf32> to vector<1x8x8xbf16>
    %cst_25 = arith.constant dense<0.000000e+00> : vector<1x8x128xf32>
    %104 = tpu.matmul %103, %91, %cst_25 {dimension_numbers = #tpu.dot_dimension_numbers<[2], [1], [1], [2], [0, 0, 0, 1, 1, 2], [0], [0]>} : vector<1x8x8xbf16>, vector<1x8x128xbf16>, vector<1x8x128xf32> -> vector<1x8x128xf32>
    %105 = vector.shape_cast %104 : vector<1x8x128xf32> to vector<8x128xf32>
    %106 = arith.truncf %105 : vector<8x128xf32> to vector<8x128xbf16>
    %c0_26 = arith.constant 0 : index
    %c384 = arith.constant 384 : index
    %107 = vector.load %arg9[%c0_26, %c384] : memref<8x768xbf16, #tpu.memory_space<vmem>>, vector<8x128xbf16>
    tpu.vector_store %arg9[%c0_26, %c384], %106 {strides = array<i32>} : memref<8x768xbf16, #tpu.memory_space<vmem>>, vector<8x128xbf16>,
    %108 = vector.extract_strided_slice %7 {offsets = [0, 512], sizes = [8, 128], strides = [1, 1]} : vector<8x2304xf32> to vector<8x128xf32>
    %109 = vector.shape_cast %108 : vector<8x128xf32> to vector<1x8x128xf32>
    %110 = arith.truncf %109 : vector<1x8x128xf32> to vector<1x8x128xbf16>
    %111 = vector.extract_strided_slice %7 {offsets = [0, 1280], sizes = [8, 128], strides = [1, 1]} : vector<8x2304xf32> to vector<8x128xf32>
    %112 = vector.shape_cast %111 : vector<8x128xf32> to vector<1x8x128xf32>
    %113 = arith.truncf %112 : vector<1x8x128xf32> to vector<1x8x128xbf16>
    %114 = vector.extract_strided_slice %7 {offsets = [0, 2048], sizes = [8, 128], strides = [1, 1]} : vector<8x2304xf32> to vector<8x128xf32>
    %115 = vector.shape_cast %114 : vector<8x128xf32> to vector<1x8x128xf32>
    %116 = arith.truncf %115 : vector<1x8x128xf32> to vector<1x8x128xbf16>
    %cst_27 = arith.constant dense<0.000000e+00> : vector<1x8x8xf32>
    %117 = tpu.matmul %110, %113, %cst_27 {dimension_numbers = #tpu.dot_dimension_numbers<[2], [2], [1], [1], [0, 0, 0, 1, 1, 1], [0], [0]>} : vector<1x8x128xbf16>, vector<1x8x128xbf16>, vector<1x8x8xf32> -> vector<1x8x8xf32>
    %cst_28 = arith.constant dense<0xFF800000> : vector<1x8xf32>
    %118 = vector.multi_reduction <maximumf>, %117, %cst_28 [2] : vector<1x8x8xf32> to vector<1x8xf32>
    %119 = vector.shape_cast %118 : vector<1x8xf32> to vector<1x8x1xf32>
    %120 = vector.broadcast %119 : vector<1x8x1xf32> to vector<1x8x8xf32>
    %121 = arith.subf %117, %120 : vector<1x8x8xf32>
    %122 = math.exp %121 : vector<1x8x8xf32>
    %cst_29 = arith.constant dense<0.000000e+00> : vector<1x8xf32>
    %123 = vector.multi_reduction <add>, %122, %cst_29 [2] : vector<1x8x8xf32> to vector<1x8xf32>
    %124 = vector.shape_cast %123 : vector<1x8xf32> to vector<1x8x1xf32>
    %125 = tpu.reciprocal %124 {approx = true} : vector<1x8x1xf32> -> vector<1x8x1xf32>
    %126 = vector.broadcast %125 : vector<1x8x1xf32> to vector<1x8x8xf32>
    %127 = arith.mulf %122, %126 : vector<1x8x8xf32>
    %128 = arith.truncf %127 : vector<1x8x8xf32> to vector<1x8x8xbf16>
    %cst_30 = arith.constant dense<0.000000e+00> : vector<1x8x128xf32>
    %129 = tpu.matmul %128, %116, %cst_30 {dimension_numbers = #tpu.dot_dimension_numbers<[2], [1], [1], [2], [0, 0, 0, 1, 1, 2], [0], [0]>} : vector<1x8x8xbf16>, vector<1x8x128xbf16>, vector<1x8x128xf32> -> vector<1x8x128xf32>
    %130 = vector.shape_cast %129 : vector<1x8x128xf32> to vector<8x128xf32>
    %131 = arith.truncf %130 : vector<8x128xf32> to vector<8x128xbf16>
    %c0_31 = arith.constant 0 : index
    %c512 = arith.constant 512 : index
    %132 = vector.load %arg9[%c0_31, %c512] : memref<8x768xbf16, #tpu.memory_space<vmem>>, vector<8x128xbf16>
    tpu.vector_store %arg9[%c0_31, %c512], %131 {strides = array<i32>} : memref<8x768xbf16, #tpu.memory_space<vmem>>, vector<8x128xbf16>,
    %133 = vector.extract_strided_slice %7 {offsets = [0, 640], sizes = [8, 128], strides = [1, 1]} : vector<8x2304xf32> to vector<8x128xf32>
    %134 = vector.shape_cast %133 : vector<8x128xf32> to vector<1x8x128xf32>
    %135 = arith.truncf %134 : vector<1x8x128xf32> to vector<1x8x128xbf16>
    %136 = vector.extract_strided_slice %7 {offsets = [0, 1408], sizes = [8, 128], strides = [1, 1]} : vector<8x2304xf32> to vector<8x128xf32>
    %137 = vector.shape_cast %136 : vector<8x128xf32> to vector<1x8x128xf32>
    %138 = arith.truncf %137 : vector<1x8x128xf32> to vector<1x8x128xbf16>
    %139 = vector.extract_strided_slice %7 {offsets = [0, 2176], sizes = [8, 128], strides = [1, 1]} : vector<8x2304xf32> to vector<8x128xf32>
    %140 = vector.shape_cast %139 : vector<8x128xf32> to vector<1x8x128xf32>
    %141 = arith.truncf %140 : vector<1x8x128xf32> to vector<1x8x128xbf16>
    %cst_32 = arith.constant dense<0.000000e+00> : vector<1x8x8xf32>
    %142 = tpu.matmul %135, %138, %cst_32 {dimension_numbers = #tpu.dot_dimension_numbers<[2], [2], [1], [1], [0, 0, 0, 1, 1, 1], [0], [0]>} : vector<1x8x128xbf16>, vector<1x8x128xbf16>, vector<1x8x8xf32> -> vector<1x8x8xf32>
    %cst_33 = arith.constant dense<0xFF800000> : vector<1x8xf32>
    %143 = vector.multi_reduction <maximumf>, %142, %cst_33 [2] : vector<1x8x8xf32> to vector<1x8xf32>
    %144 = vector.shape_cast %143 : vector<1x8xf32> to vector<1x8x1xf32>
    %145 = vector.broadcast %144 : vector<1x8x1xf32> to vector<1x8x8xf32>
    %146 = arith.subf %142, %145 : vector<1x8x8xf32>
    %147 = math.exp %146 : vector<1x8x8xf32>
    %cst_34 = arith.constant dense<0.000000e+00> : vector<1x8xf32>
    %148 = vector.multi_reduction <add>, %147, %cst_34 [2] : vector<1x8x8xf32> to vector<1x8xf32>
    %149 = vector.shape_cast %148 : vector<1x8xf32> to vector<1x8x1xf32>
    %150 = tpu.reciprocal %149 {approx = true} : vector<1x8x1xf32> -> vector<1x8x1xf32>
    %151 = vector.broadcast %150 : vector<1x8x1xf32> to vector<1x8x8xf32>
    %152 = arith.mulf %147, %151 : vector<1x8x8xf32>
    %153 = arith.truncf %152 : vector<1x8x8xf32> to vector<1x8x8xbf16>
    %cst_35 = arith.constant dense<0.000000e+00> : vector<1x8x128xf32>
    %154 = tpu.matmul %153, %141, %cst_35 {dimension_numbers = #tpu.dot_dimension_numbers<[2], [1], [1], [2], [0, 0, 0, 1, 1, 2], [0], [0]>} : vector<1x8x8xbf16>, vector<1x8x128xbf16>, vector<1x8x128xf32> -> vector<1x8x128xf32>
    %155 = vector.shape_cast %154 : vector<1x8x128xf32> to vector<8x128xf32>
    %156 = arith.truncf %155 : vector<8x128xf32> to vector<8x128xbf16>
    %c0_36 = arith.constant 0 : index
    %c640 = arith.constant 640 : index
    %157 = vector.load %arg9[%c0_36, %c640] : memref<8x768xbf16, #tpu.memory_space<vmem>>, vector<8x128xbf16>
    tpu.vector_store %arg9[%c0_36, %c640], %156 {strides = array<i32>} : memref<8x768xbf16, #tpu.memory_space<vmem>>, vector<8x128xbf16>,
    %c0_37 = arith.constant 0 : index
    %c0_38 = arith.constant 0 : index
    %158 = vector.load %arg9[%c0_37, %c0_38] : memref<8x768xbf16, #tpu.memory_space<vmem>>, vector<8x768xbf16>
    %c0_39 = arith.constant 0 : index
    %c0_40 = arith.constant 0 : index
    %159 = vector.load %arg4[%c0_39, %c0_40] : memref<768x384xbf16, #tpu.memory_space<vmem>>, vector<768x384xbf16>
    %cst_41 = arith.constant dense<0.000000e+00> : vector<8x384xf32>
    %160 = tpu.matmul %158, %159, %cst_41 {dimension_numbers = #tpu.dot_dimension_numbers<[1], [0], [0], [1], [0, 0, 1, 1], [], []>} : vector<8x768xbf16>, vector<768x384xbf16>, vector<8x384xf32> -> vector<8x384xf32>
    %c0_42 = arith.constant 0 : index
    %c0_43 = arith.constant 0 : index
    %161 = vector.load %arg5[%c0_42, %c0_43] : memref<1x384xf32, #tpu.memory_space<vmem>>, vector<1x384xf32>
    %162 = vector.broadcast %161 : vector<1x384xf32> to vector<8x384xf32>
    %163 = arith.addf %160, %162 : vector<8x384xf32>
    %164 = arith.addf %163, %1 : vector<8x384xf32>
    %cst_44 = arith.constant dense<0.000000e+00> : vector<8xf32>
    %165 = vector.multi_reduction <add>, %164, %cst_44 [1] : vector<8x384xf32> to vector<8xf32>
    %166 = vector.shape_cast %165 : vector<8xf32> to vector<8x1xf32>
    %cst_45 = arith.constant 0.00333333341 : f32
    %167 = vector.broadcast %cst_45 : f32 to vector<8x1xf32>
    %168 = arith.mulf %166, %167 : vector<8x1xf32>
    %169 = vector.broadcast %168 : vector<8x1xf32> to vector<8x384xf32>
    %170 = arith.subf %164, %169 : vector<8x384xf32>
    %171 = arith.mulf %170, %170 : vector<8x384xf32>
    %cst_46 = arith.constant dense<0.000000e+00> : vector<8xf32>
    %172 = vector.multi_reduction <add>, %171, %cst_46 [1] : vector<8x384xf32> to vector<8xf32>
    %173 = vector.shape_cast %172 : vector<8xf32> to vector<8x1xf32>
    %cst_47 = arith.constant 8.400000e+01 : f32
    %174 = vector.broadcast %cst_47 : f32 to vector<8x1xf32>
    %175 = arith.mulf %174, %168 : vector<8x1xf32>
    %176 = arith.mulf %175, %168 : vector<8x1xf32>
    %177 = arith.subf %173, %176 : vector<8x1xf32>
    %cst_48 = arith.constant 0.00333333341 : f32
    %178 = vector.broadcast %cst_48 : f32 to vector<8x1xf32>
    %179 = arith.mulf %177, %178 : vector<8x1xf32>
    %cst_49 = arith.constant 9.99999974E-6 : f32
    %180 = vector.broadcast %cst_49 : f32 to vector<8x1xf32>
    %181 = arith.addf %179, %180 : vector<8x1xf32>
    %182 = math.rsqrt %181 : vector<8x1xf32>
    %183 = vector.broadcast %182 : vector<8x1xf32> to vector<8x384xf32>
    %184 = arith.mulf %170, %183 : vector<8x384xf32>
    %c0_50 = arith.constant 0 : index
    %c0_51 = arith.constant 0 : index
    %185 = vector.load %arg6[%c0_50, %c0_51] : memref<1x384xf32, #tpu.memory_space<vmem>>, vector<1x384xf32>
    %186 = vector.broadcast %185 : vector<1x384xf32> to vector<8x384xf32>
    %187 = arith.mulf %184, %186 : vector<8x384xf32>
    %c0_52 = arith.constant 0 : index
    %c0_53 = arith.constant 0 : index
    %188 = vector.load %arg7[%c0_52, %c0_53] : memref<1x384xf32, #tpu.memory_space<vmem>>, vector<1x384xf32>
    %189 = vector.broadcast %188 : vector<1x384xf32> to vector<8x384xf32>
    %190 = arith.addf %187, %189 : vector<8x384xf32>
    %191 = vector.shape_cast %190 : vector<8x384xf32> to vector<1x8x384xf32>
    %c0_54 = arith.constant 0 : index
    %c0_55 = arith.constant 0 : index
    %c0_56 = arith.constant 0 : index
    %192 = vector.load %arg8[%c0_54, %c0_55, %c0_56] : memref<1x8x384xf32, #tpu.memory_space<vmem>>, vector<1x8x384xf32>
    tpu.vector_store %arg8[%c0_54, %c0_55, %c0_56], %191 {strides = array<i32>} : memref<1x8x384xf32, #tpu.memory_space<vmem>>, vector<1x8x384xf32>,
    return
  }
  func.func @transform_0(%arg0: i32) -> (i32, i32, i32) {
    %c0_i32 = arith.constant 0 : i32
    %c0_i32_0 = arith.constant 0 : i32
    %c0_i32_1 = arith.constant 0 : i32
    return %arg0, %c0_i32, %c0_i32_0 : i32, i32, i32
  }
  func.func @transform_1(%arg0: i32) -> (i32, i32) {
    %c0_i32 = arith.constant 0 : i32
    %c0_i32_0 = arith.constant 0 : i32
    %c0_i32_1 = arith.constant 0 : i32
    return %c0_i32, %c0_i32_0 : i32, i32
  }
  func.func @transform_2(%arg0: i32) -> (i32, i32) {
    %c0_i32 = arith.constant 0 : i32
    %c0_i32_0 = arith.constant 0 : i32
    %c0_i32_1 = arith.constant 0 : i32
    return %c0_i32, %c0_i32_0 : i32, i32
  }
  func.func @transform_3(%arg0: i32) -> (i32, i32) {
    %c0_i32 = arith.constant 0 : i32
    %c0_i32_0 = arith.constant 0 : i32
    %c0_i32_1 = arith.constant 0 : i32
    return %c0_i32, %c0_i32_0 : i32, i32
  }
  func.func @transform_4(%arg0: i32) -> (i32, i32) {
    %c0_i32 = arith.constant 0 : i32
    %c0_i32_0 = arith.constant 0 : i32
    %c0_i32_1 = arith.constant 0 : i32
    return %c0_i32, %c0_i32_0 : i32, i32
  }
  func.func @transform_5(%arg0: i32) -> (i32, i32) {
    %c0_i32 = arith.constant 0 : i32
    %c0_i32_0 = arith.constant 0 : i32
    %c0_i32_1 = arith.constant 0 : i32
    return %c0_i32, %c0_i32_0 : i32, i32
  }
  func.func @transform_6(%arg0: i32) -> (i32, i32) {
    %c0_i32 = arith.constant 0 : i32
    %c0_i32_0 = arith.constant 0 : i32
    %c0_i32_1 = arith.constant 0 : i32
    return %c0_i32, %c0_i32_0 : i32, i32
  }
  func.func @transform_7(%arg0: i32) -> (i32, i32, i32) {
    %c0_i32 = arith.constant 0 : i32
    %c0_i32_0 = arith.constant 0 : i32
    %c0_i32_1 = arith.constant 0 : i32
    return %arg0, %c0_i32, %c0_i32_0 : i32, i32, i32
  }
}

</mosaic_0001>

<llo_original>
// kernel: tpu_custom_call.1
$region0: #{tpu_custom_call.1}
  #allocation0 [shape = 'u32[]', space=smem, size = 0x4, offset = 0x4, fixed_abs, tag = 'smem constant byte address 0x4 - core index']
  #allocation1 [shape = 'u32[144,128]{1,0:T(1,128)}', space=vmem, size = 0x12000, scoped, tag = 'internal scratch']
  #allocation2 [shape = 'bf16[8,768]{1,0:T(8,128)(2,1)}', space=vmem, size = 0x3000, scoped, tag = 'scratch operand']
  %s0 = inlined_call_operand.hbm [shape: f32[2,8,384], index: 0, kind: input, shape index: {}]
  %s1 = inlined_call_operand.hbm [shape: bf16[384,2304], index: 1, kind: input, shape index: {}]
  %s2 = inlined_call_operand.hbm [shape: f32[1,2304], index: 2, kind: input, shape index: {}]
  %s3 = inlined_call_operand.hbm [shape: bf16[768,384], index: 3, kind: input, shape index: {}]
  %s4 = inlined_call_operand.hbm [shape: f32[1,384], index: 4, kind: input, shape index: {}]
  %s5 = inlined_call_operand.hbm [shape: f32[1,384], index: 5, kind: input, shape index: {}]
  %s6 = inlined_call_operand.hbm [shape: f32[1,384], index: 6, kind: input, shape index: {}]
  %s7 = inlined_call_operand.hbm [shape: f32[2,8,384], index: 7, kind: output, shape index: {}]
  %s8 = sld [smem:[#allocation0]]
  $region89: #{tpu_custom_call.1} parent=0
    _
  %s10 = ssub.s32 1, %s8
  %s11 = scalar_select 0, %s10, %s8
  $region1: #{tpu_custom_call.1} parent=0
    #allocation3 [shape = 'u8[24576]{0}', space=vmem, size = 0x6000, scoped, tag = 'input window, operand 0']
    #allocation4 [shape = 's32[2]{0}', space=sflag, size = 0x8, scoped, tag = 'scoped memory for tpu_custom_call.1']
    #allocation5 [shape = 's32[2]{0}', space=sflag, size = 0x8, scoped, tag = 'scoped memory for tpu_custom_call.1']
    #allocation6 [shape = 'u8[1769472]{0}', space=vmem, size = 0x1b0000, scoped, tag = 'input window, operand 1, single buffered']
    #allocation7 [shape = 's32[1]{0}', space=sflag, size = 0x4, scoped, tag = 'scoped memory for tpu_custom_call.1']
    #allocation8 [shape = 'u8[9216]{0}', space=vmem, size = 0x2400, scoped, tag = 'input window, operand 2, single buffered']
    #allocation9 [shape = 'u8[589824]{0}', space=vmem, size = 0x90000, scoped, tag = 'input window, operand 3, single buffered']
    #allocation10 [shape = 's32[1]{0}', space=sflag, size = 0x4, scoped, tag = 'scoped memory for tpu_custom_call.1']
    #allocation11 [shape = 'u8[1536]{0}', space=vmem, size = 0x800, scoped, tag = 'input window, operand 4, single buffered']
    #allocation12 [shape = 'u8[1536]{0}', space=vmem, size = 0x800, scoped, tag = 'input window, operand 5, single buffered']
    #allocation13 [shape = 's32[1]{0}', space=sflag, size = 0x4, scoped, tag = 'scoped memory for tpu_custom_call.1']
    #allocation14 [shape = 'u8[1536]{0}', space=vmem, size = 0x800, scoped, tag = 'input window, operand 6, single buffered']
    #allocation15 [shape = 'u8[24576]{0}', space=vmem, size = 0x6000, scoped, tag = 'output window, operand 0']
    %12 = vsyncpa [#allocation4], 0
    %s13 = scalar_lea.sflag [#allocation4], 1
    %14 = vsyncpa %s13, 0
    %15 = vsyncpa [#allocation7], 0
    %16 = vsyncpa [#allocation10], 0
    %17 = vsyncpa [#allocation13], 0
    %18 = vsyncpa [#allocation5], 0
    %s19 = scalar_lea.sflag [#allocation5], 1
    %20 = vsyncpa %s19, 0
    loop: start=0, step=1, limit=4
    $region2: #{tpu_custom_call.1} parent=1 // loop_pre_header
      _
    $region3: #{tpu_custom_call.1} parent=1 // loop_header
      %s22 = sphi 0, %s26
      %p23 = scmp.ge.s32.totalorder %s22, 4
      %s32 = sphi 0, %s34
      %s35 = sphi 0, %s32
      %s36 = sphi 0, %s35
      %s52 = sphi 0, %s36
      %s56 = sphi 0, %s56
      %s58 = sphi 0, %s56
      %s59 = sphi 0, %s58
      %s73 = sphi 0, %s59
      %s77 = sphi 0, %s77
      %s79 = sphi 0, %s77
      %s80 = sphi 0, %s79
      %s94 = sphi 0, %s80
      %s98 = sphi 0, %s98
      %s100 = sphi 0, %s98
      %s101 = sphi 0, %s100
      %s115 = sphi 0, %s101
      %s119 = sphi 0, %s119
      %s121 = sphi 0, %s119
      %s122 = sphi 0, %s121
      %s136 = sphi 0, %s122
      %s140 = sphi 0, %s140
      %s142 = sphi 0, %s140
      %s143 = sphi 0, %s142
      %s157 = sphi 0, %s143
      %s161 = sphi 0, %s161
      %s163 = sphi 0, %s161
      %s164 = sphi 0, %s163
      %s178 = sphi 0, %s164
      %s184 = sphi 0, %s186
      %s187 = sphi 0, %s184
      %s188 = sphi 0, %s187
      %s204 = sphi 0, %s188
    $region4: #{tpu_custom_call.1} parent=1 // loop_header_branch
      %25 = sbr.rel (%p23) target = $region8
    $region5: #{tpu_custom_call.1} parent=1 // loop_body
      %s27 = ssub.s32 %s22, 1
      %s28 = ssub.s32 %s22, 2
      %s29 = sadd.s32 %s22, 1
      %s30 = ssub.s32 %s22, %s29
      %p31 = scmp.eq.s32.totalorder %s30, 0
      %s33 = sadd.s32 %s32, 1
      %s34 = scalar_select %p31, %s32, %s33
      %p37 = pneg %p31
      %p38 = scmp.eq.s32.totalorder %s22, 1
      %p39 = por %p37, %p38
      %p40 = scmp.ne.s32.totalorder %s32, %s35
      %p41 = scmp.eq.s32.totalorder %s22, 0
      %p42 = por %p40, %p41
      %p43 = scmp.ne.s32.totalorder %s32, %s35
      %p44 = scmp.eq.s32.totalorder %s27, 1
      %p45 = por %p43, %p44
      %p46 = scmp.ne.s32.totalorder %s35, %s36
      %p47 = scmp.eq.s32.totalorder %s27, 0
      %p48 = por %p46, %p47
      %p49 = scmp.ne.s32.totalorder %s35, %s36
      %p50 = scmp.eq.s32.totalorder %s28, 1
      %p51 = por %p49, %p50
      %p53 = scmp.ne.s32.totalorder %s36, %s52
      %p54 = scmp.eq.s32.totalorder %s28, 0
      %p55 = por %p53, %p54
      %s57 = sadd.s32 %s56, 1
      %p60 = scmp.eq.s32.totalorder %s22, 1
      %p61 = scmp.ne.s32.totalorder %s56, %s58
      %p62 = scmp.eq.s32.totalorder %s22, 0
      %p63 = por %p61, %p62
      %p64 = scmp.ne.s32.totalorder %s56, %s58
      %p65 = scmp.eq.s32.totalorder %s27, 1
      %p66 = por %p64, %p65
      %p67 = scmp.ne.s32.totalorder %s58, %s59
      %p68 = scmp.eq.s32.totalorder %s27, 0
      %p69 = por %p67, %p68
      %p70 = scmp.ne.s32.totalorder %s58, %s59
      %p71 = scmp.eq.s32.totalorder %s28, 1
      %p72 = por %p70, %p71
      %p74 = scmp.ne.s32.totalorder %s59, %s73
      %p75 = scmp.eq.s32.totalorder %s28, 0
      %p76 = por %p74, %p75
      %s78 = sadd.s32 %s77, 1
      %p81 = scmp.eq.s32.totalorder %s22, 1
      %p82 = scmp.ne.s32.totalorder %s77, %s79
      %p83 = scmp.eq.s32.totalorder %s22, 0
      %p84 = por %p82, %p83
      %p85 = scmp.ne.s32.totalorder %s77, %s79
      %p86 = scmp.eq.s32.totalorder %s27, 1
      %p87 = por %p85, %p86
      %p88 = scmp.ne.s32.totalorder %s79, %s80
      %p89 = scmp.eq.s32.totalorder %s27, 0
      %p90 = por %p88, %p89
      %p91 = scmp.ne.s32.totalorder %s79, %s80
      %p92 = scmp.eq.s32.totalorder %s28, 1
      %p93 = por %p91, %p92
      %p95 = scmp.ne.s32.totalorder %s80, %s94
      %p96 = scmp.eq.s32.totalorder %s28, 0
      %p97 = por %p95, %p96
      %s99 = sadd.s32 %s98, 1
      %p102 = scmp.eq.s32.totalorder %s22, 1
      %p103 = scmp.ne.s32.totalorder %s98, %s100
      %p104 = scmp.eq.s32.totalorder %s22, 0
      %p105 = por %p103, %p104
      %p106 = scmp.ne.s32.totalorder %s98, %s100
      %p107 = scmp.eq.s32.totalorder %s27, 1
      %p108 = por %p106, %p107
      %p109 = scmp.ne.s32.totalorder %s100, %s101
      %p110 = scmp.eq.s32.totalorder %s27, 0
      %p111 = por %p109, %p110
      %p112 = scmp.ne.s32.totalorder %s100, %s101
      %p113 = scmp.eq.s32.totalorder %s28, 1
      %p114 = por %p112, %p113
      %p116 = scmp.ne.s32.totalorder %s101, %s115
      %p117 = scmp.eq.s32.totalorder %s28, 0
      %p118 = por %p116, %p117
      %s120 = sadd.s32 %s119, 1
      %p123 = scmp.eq.s32.totalorder %s22, 1
      %p124 = scmp.ne.s32.totalorder %s119, %s121
      %p125 = scmp.eq.s32.totalorder %s22, 0
      %p126 = por %p124, %p125
      %p127 = scmp.ne.s32.totalorder %s119, %s121
      %p128 = scmp.eq.s32.totalorder %s27, 1
      %p129 = por %p127, %p128
      %p130 = scmp.ne.s32.totalorder %s121, %s122
      %p131 = scmp.eq.s32.totalorder %s27, 0
      %p132 = por %p130, %p131
      %p133 = scmp.ne.s32.totalorder %s121, %s122
      %p134 = scmp.eq.s32.totalorder %s28, 1
      %p135 = por %p133, %p134
      %p137 = scmp.ne.s32.totalorder %s122, %s136
      %p138 = scmp.eq.s32.totalorder %s28, 0
      %p139 = por %p137, %p138
      %s141 = sadd.s32 %s140, 1
      %p144 = scmp.eq.s32.totalorder %s22, 1
      %p145 = scmp.ne.s32.totalorder %s140, %s142
      %p146 = scmp.eq.s32.totalorder %s22, 0
      %p147 = por %p145, %p146
      %p148 = scmp.ne.s32.totalorder %s140, %s142
      %p149 = scmp.eq.s32.totalorder %s27, 1
      %p150 = por %p148, %p149
      %p151 = scmp.ne.s32.totalorder %s142, %s143
      %p152 = scmp.eq.s32.totalorder %s27, 0
      %p153 = por %p151, %p152
      %p154 = scmp.ne.s32.totalorder %s142, %s143
      %p155 = scmp.eq.s32.totalorder %s28, 1
      %p156 = por %p154, %p155
      %p158 = scmp.ne.s32.totalorder %s143, %s157
      %p159 = scmp.eq.s32.totalorder %s28, 0
      %p160 = por %p158, %p159
      %s162 = sadd.s32 %s161, 1
      %p165 = scmp.eq.s32.totalorder %s22, 1
      %p166 = scmp.ne.s32.totalorder %s161, %s163
      %p167 = scmp.eq.s32.totalorder %s22, 0
      %p168 = por %p166, %p167
      %p169 = scmp.ne.s32.totalorder %s161, %s163
      %p170 = scmp.eq.s32.totalorder %s27, 1
      %p171 = por %p169, %p170
      %p172 = scmp.ne.s32.totalorder %s163, %s164
      %p173 = scmp.eq.s32.totalorder %s27, 0
      %p174 = por %p172, %p173
      %p175 = scmp.ne.s32.totalorder %s163, %s164
      %p176 = scmp.eq.s32.totalorder %s28, 1
      %p177 = por %p175, %p176
      %p179 = scmp.ne.s32.totalorder %s164, %s178
      %p180 = scmp.eq.s32.totalorder %s28, 0
      %p181 = por %p179, %p180
      %s182 = ssub.s32 %s22, %s29
      %p183 = scmp.eq.s32.totalorder %s182, 0
      %s185 = sadd.s32 %s184, 1
      %s186 = scalar_select %p183, %s184, %s185
      %p189 = pneg %p183
      %p190 = scmp.eq.s32.totalorder %s22, 1
      %p191 = por %p189, %p190
      %p192 = scmp.ne.s32.totalorder %s184, %s187
      %p193 = scmp.eq.s32.totalorder %s22, 0
      %p194 = por %p192, %p193
      %p195 = scmp.ne.s32.totalorder %s184, %s187
      %p196 = scmp.eq.s32.totalorder %s27, 1
      %p197 = por %p195, %p196
      %p198 = scmp.ne.s32.totalorder %s187, %s188
      %p199 = scmp.eq.s32.totalorder %s27, 0
      %p200 = por %p198, %p199
      %p201 = scmp.ne.s32.totalorder %s187, %s188
      %p202 = scmp.eq.s32.totalorder %s28, 1
      %p203 = por %p201, %p202
      %p205 = scmp.ne.s32.totalorder %s188, %s204
      %p206 = scmp.eq.s32.totalorder %s28, 0
      %p207 = por %p205, %p206
      %p208 = scmp.le.s32.totalorder 1, %s22
      %p209 = scmp.lt.s32.totalorder %s22, 3
      %p210 = pnand %p208, %p209
      %p211 = pneg %p210
      // Predicated region
      $region9: #{tpu_custom_call.1} parent=5 // pred_check
        _
      $region10: #{tpu_custom_call.1} parent=5 // pred_check_branch
        %213 = sbr.rel (%p210) target = $region12
      $region11: #{tpu_custom_call.1} parent=5 // pred_region
        %s214 = ssub.s32 %s22, 1
        // Predicated region
        $region13: #{tpu_custom_call.1} parent=11 // pred_check
          %p215 = pneg %p69
        $region14: #{tpu_custom_call.1} parent=11 // pred_check_branch
          %217 = sbr.rel (%p215) target = $region16
        $region15: #{tpu_custom_call.1} parent=11 // pred_region
          %s219 = ssub.s32 55296, 55296
          %220 = vsyncadd [#allocation7], %s219
          %s221 = sshll.u32 [#allocation6], 4
          %s222 = int_to_ptr.vmem [resolvable:$true] %s221
          %227 = dma.hbm_to_vmem [thread:$0]  %s1, 55296, %s222, [#allocation7], 1152, 1152, 72
        $region16: #{tpu_custom_call.1} parent=11 // pred_fallthru
          _
        // Predicated region
        $region17: #{tpu_custom_call.1} parent=11 // pred_check
          %p228 = pneg %p90
        $region18: #{tpu_custom_call.1} parent=11 // pred_check_branch
          %230 = sbr.rel (%p228) target = $region20
        $region19: #{tpu_custom_call.1} parent=11 // pred_region
          %s232 = ssub.s32 288, 288
          %233 = vsyncadd [#allocation7], %s232
          %s235 = sshll.u32 [#allocation8], 4
          %s236 = int_to_ptr.vmem [resolvable:$true] %s235
          %238 = dma.hbm_to_vmem [thread:$0]  %s2, 288, %s236, [#allocation7]
        $region20: #{tpu_custom_call.1} parent=11 // pred_fallthru
          _
        // Predicated region
        $region21: #{tpu_custom_call.1} parent=11 // pred_check
          %p239 = pneg %p111
        $region22: #{tpu_custom_call.1} parent=11 // pred_check_branch
          %241 = sbr.rel (%p239) target = $region24
        $region23: #{tpu_custom_call.1} parent=11 // pred_region
          %s243 = ssub.s32 18432, 18432
          %244 = vsyncadd [#allocation10], %s243
          %s245 = sshll.u32 [#allocation9], 4
          %s246 = int_to_ptr.vmem [resolvable:$true] %s245
          %251 = dma.hbm_to_vmem [thread:$0]  %s3, 18432, %s246, [#allocation10], 192, 192, 12
        $region24: #{tpu_custom_call.1} parent=11 // pred_fallthru
          _
        // Predicated region
        $region25: #{tpu_custom_call.1} parent=11 // pred_check
          %p252 = pneg %p132
        $region26: #{tpu_custom_call.1} parent=11 // pred_check_branch
          %254 = sbr.rel (%p252) target = $region28
        $region27: #{tpu_custom_call.1} parent=11 // pred_region
          %s256 = ssub.s32 48, 48
          %257 = vsyncadd [#allocation10], %s256
          %s259 = sshll.u32 [#allocation11], 4
          %s260 = int_to_ptr.vmem [resolvable:$true] %s259
          %262 = dma.hbm_to_vmem [thread:$0]  %s4, 48, %s260, [#allocation10]
        $region28: #{tpu_custom_call.1} parent=11 // pred_fallthru
          _
        // Predicated region
        $region29: #{tpu_custom_call.1} parent=11 // pred_check
          %p263 = pneg %p153
        $region30: #{tpu_custom_call.1} parent=11 // pred_check_branch
          %265 = sbr.rel (%p263) target = $region32
        $region31: #{tpu_custom_call.1} parent=11 // pred_region
          %s267 = ssub.s32 48, 48
          %268 = vsyncadd [#allocation13], %s267
          %s270 = sshll.u32 [#allocation12], 4
          %s271 = int_to_ptr.vmem [resolvable:$true] %s270
          %273 = dma.hbm_to_vmem [thread:$0]  %s5, 48, %s271, [#allocation13]
        $region32: #{tpu_custom_call.1} parent=11 // pred_fallthru
          _
        // Predicated region
        $region33: #{tpu_custom_call.1} parent=11 // pred_check
          %p274 = pneg %p174
        $region34: #{tpu_custom_call.1} parent=11 // pred_check_branch
          %276 = sbr.rel (%p274) target = $region36
        $region35: #{tpu_custom_call.1} parent=11 // pred_region
          %s278 = ssub.s32 48, 48
          %279 = vsyncadd [#allocation13], %s278
          %s281 = sshll.u32 [#allocation14], 4
          %s282 = int_to_ptr.vmem [resolvable:$true] %s281
          %284 = dma.hbm_to_vmem [thread:$0]  %s6, 48, %s282, [#allocation13]
        $region36: #{tpu_custom_call.1} parent=11 // pred_fallthru
          _
      $region12: #{tpu_custom_call.1} parent=5 // pred_fallthru
        _
      %p285 = scmp.lt.s32.totalorder %s22, 2
      // Predicated region
      $region37: #{tpu_custom_call.1} parent=5 // pred_check
        %p286 = pneg %p285
      $region38: #{tpu_custom_call.1} parent=5 // pred_check_branch
        %288 = sbr.rel (%p286) target = $region40
      $region39: #{tpu_custom_call.1} parent=5 // pred_region
        // Predicated region
        $region41: #{tpu_custom_call.1} parent=39 // pred_check
          %p289 = pneg %p42
        $region42: #{tpu_custom_call.1} parent=39 // pred_check_branch
          %291 = sbr.rel (%p289) target = $region44
        $region43: #{tpu_custom_call.1} parent=39 // pred_region
          %s292 = sand.u32 %s32, 1
          %s293 = scalar_lea.sflag [#allocation4], %s292
          %s294 = sand.u32 %s32, 1
          %s295 = smul.addr %s294, 24
          %s296 = scalar_lea.vmem [#allocation3], %s295
          %s298 = ssub.s32 384, 384
          %299 = vsyncadd %s293, %s298
          %s300 = smul.addr %s22, 3
          %s301 = smul.addr %s300, 128
          %s302 = scalar_lea.hbm %s0, %s301
          %s304 = sshll.u32 %s296, 4
          %s305 = int_to_ptr.vmem [resolvable:$true] %s304
          %307 = dma.hbm_to_vmem [thread:$0]  %s302, 384, %s305, %s293
        $region44: #{tpu_custom_call.1} parent=39 // pred_fallthru
          _
      $region40: #{tpu_custom_call.1} parent=5 // pred_fallthru
        _
      %p308 = scmp.le.s32.totalorder 1, %s22
      %p309 = scmp.lt.s32.totalorder %s22, 3
      %p310 = pnand %p308, %p309
      %p311 = pneg %p310
      // Predicated region
      $region45: #{tpu_custom_call.1} parent=5 // pred_check
        _
      $region46: #{tpu_custom_call.1} parent=5 // pred_check_branch
        %313 = sbr.rel (%p310) target = $region48
      $region47: #{tpu_custom_call.1} parent=5 // pred_region
        %s314 = ssub.s32 %s22, 1
        %s315 = sand.u32 %s35, 1
        %s316 = scalar_lea.sflag [#allocation4], %s315
        %s317 = sand.u32 %s35, 1
        %s318 = smul.addr %s317, 24
        %s319 = scalar_lea.vmem [#allocation3], %s318
        // Predicated region
        $region49: #{tpu_custom_call.1} parent=47 // pred_check
          %p320 = pneg %p48
        $region50: #{tpu_custom_call.1} parent=47 // pred_check_branch
          %322 = sbr.rel (%p320) target = $region52
        $region51: #{tpu_custom_call.1} parent=47 // pred_region
          %323 = dma.done %s316, 384
        $region52: #{tpu_custom_call.1} parent=47 // pred_fallthru
          _
        // Predicated region
        $region53: #{tpu_custom_call.1} parent=47 // pred_check
          %p324 = pneg %p69
        $region54: #{tpu_custom_call.1} parent=47 // pred_check_branch
          %326 = sbr.rel (%p324) target = $region56
        $region55: #{tpu_custom_call.1} parent=47 // pred_region
          %327 = dma.done [#allocation7], 55296
        $region56: #{tpu_custom_call.1} parent=47 // pred_fallthru
          _
        // Predicated region
        $region57: #{tpu_custom_call.1} parent=47 // pred_check
          %p328 = pneg %p90
        $region58: #{tpu_custom_call.1} parent=47 // pred_check_branch
          %330 = sbr.rel (%p328) target = $region60
        $region59: #{tpu_custom_call.1} parent=47 // pred_region
          %331 = dma.done [#allocation7], 288
        $region60: #{tpu_custom_call.1} parent=47 // pred_fallthru
          _
        // Predicated region
        $region61: #{tpu_custom_call.1} parent=47 // pred_check
          %p332 = pneg %p111
        $region62: #{tpu_custom_call.1} parent=47 // pred_check_branch
          %334 = sbr.rel (%p332) target = $region64
        $region63: #{tpu_custom_call.1} parent=47 // pred_region
          %335 = dma.done [#allocation10], 18432
        $region64: #{tpu_custom_call.1} parent=47 // pred_fallthru
          _
        // Predicated region
        $region65: #{tpu_custom_call.1} parent=47 // pred_check
          %p336 = pneg %p132
        $region66: #{tpu_custom_call.1} parent=47 // pred_check_branch
          %338 = sbr.rel (%p336) target = $region68
        $region67: #{tpu_custom_call.1} parent=47 // pred_region
          %339 = dma.done [#allocation10], 48
        $region68: #{tpu_custom_call.1} parent=47 // pred_fallthru
          _
        // Predicated region
        $region69: #{tpu_custom_call.1} parent=47 // pred_check
          %p340 = pneg %p153
        $region70: #{tpu_custom_call.1} parent=47 // pred_check_branch
          %342 = sbr.rel (%p340) target = $region72
        $region71: #{tpu_custom_call.1} parent=47 // pred_region
          %343 = dma.done [#allocation13], 48
        $region72: #{tpu_custom_call.1} parent=47 // pred_fallthru
          _
        // Predicated region
        $region73: #{tpu_custom_call.1} parent=47 // pred_check
          %p344 = pneg %p174
        $region74: #{tpu_custom_call.1} parent=47 // pred_check_branch
          %346 = sbr.rel (%p344) target = $region76
        $region75: #{tpu_custom_call.1} parent=47 // pred_region
          %347 = dma.done [#allocation13], 48
        $region76: #{tpu_custom_call.1} parent=47 // pred_fallthru
          _
        %s348 = sand.u32 %s35, 1
        %s349 = scalar_lea.sflag [#allocation4], %s348
        %s350 = sand.u32 %s35, 1
        %s351 = smul.addr %s350, 24
        %s352 = scalar_lea.vmem [#allocation3], %s351
        %p353 = pneg %p48
        %p354 = pneg %p45
        %p355 = pneg %p69
        %p356 = pneg %p66
        %p357 = pneg %p90
        %p358 = pneg %p87
        %p359 = pneg %p111
        %p360 = pneg %p108
        %p361 = pneg %p132
        %p362 = pneg %p129
        %p363 = pneg %p153
        %p364 = pneg %p150
        %p365 = pneg %p174
        %p366 = pneg %p171
        %p367 = pneg %p200
        %p368 = pneg %p197
        %s369 = sand.u32 %s187, 1
        %s370 = scalar_lea.sflag [#allocation5], %s369
        %s371 = sand.u32 %s187, 1
        %s372 = smul.addr %s371, 24
        %s373 = scalar_lea.vmem [#allocation15], %s372
        %v375 = vld [vmem:[%s319] sm:$0xff]
        %v376 = vld [vmem:[%s319 + $0x8] sm:$0xff]
        %v377 = vld [vmem:[%s319 + $0x10] sm:$0xff]
        %v378 = vpack.c.bf16 %v375, %v375
        %v379 = vpack.c.bf16 %v376, %v376
        %v380 = vpack.c.bf16 %v377, %v377
        %v381 = vld [vmem:[#allocation6] sm:$0xff]
        %v382 = vld [vmem:[#allocation6 + $0x8] sm:$0xff]
        %v383 = vld [vmem:[#allocation6 + $0x10] sm:$0xff]
        %v384 = vld [vmem:[#allocation6 + $0x18] sm:$0xff]
        %v385 = vld [vmem:[#allocation6 + $0x20] sm:$0xff]
        %v386 = vld [vmem:[#allocation6 + $0x28] sm:$0xff]
        %v387 = vld [vmem:[#allocation6 + $0x30] sm:$0xff]
        %v388 = vld [vmem:[#allocation6 + $0x38] sm:$0xff]
        %v389 = vld [vmem:[#allocation6 + $0x40] sm:$0xff]
        %v390 = vld [vmem:[#allocation6 + $0x48] sm:$0xff]
        %v391 = vld [vmem:[#allocation6 + $0x50] sm:$0xff]
        %v392 = vld [vmem:[#allocation6 + $0x58] sm:$0xff]
        %v393 = vld [vmem:[#allocation6 + $0x60] sm:$0xff]
        %v394 = vld [vmem:[#allocation6 + $0x68] sm:$0xff]
        %v395 = vld [vmem:[#allocation6 + $0x70] sm:$0xff]
        %v396 = vld [vmem:[#allocation6 + $0x78] sm:$0xff]
        %v397 = vld [vmem:[#allocation6 + $0x80] sm:$0xff]
        %v398 = vld [vmem:[#allocation6 + $0x88] sm:$0xff]
        %v399 = vld [vmem:[#allocation6 + $0x90] sm:$0xff]
        %v400 = vld [vmem:[#allocation6 + $0x98] sm:$0xff]
        %v401 = vld [vmem:[#allocation6 + $0xa0] sm:$0xff]
        %v402 = vld [vmem:[#allocation6 + $0xa8] sm:$0xff]
        %v403 = vld [vmem:[#allocation6 + $0xb0] sm:$0xff]
        %v404 = vld [vmem:[#allocation6 + $0xb8] sm:$0xff]
        %v405 = vld [vmem:[#allocation6 + $0xc0] sm:$0xff]
        %v406 = vld [vmem:[#allocation6 + $0xc8] sm:$0xff]
        %v407 = vld [vmem:[#allocation6 + $0xd0] sm:$0xff]
        %v408 = vld [vmem:[#allocation6 + $0xd8] sm:$0xff]
        %v409 = vld [vmem:[#allocation6 + $0xe0] sm:$0xff]
        %v410 = vld [vmem:[#allocation6 + $0xe8] sm:$0xff]
        %v411 = vld [vmem:[#allocation6 + $0xf0] sm:$0xff]
        %v412 = vld [vmem:[#allocation6 + $0xf8] sm:$0xff]
        %v413 = vld [vmem:[#allocation6 + $0x100] sm:$0xff]
        %v414 = vld [vmem:[#allocation6 + $0x108] sm:$0xff]
        %v415 = vld [vmem:[#allocation6 + $0x110] sm:$0xff]
        %v416 = vld [vmem:[#allocation6 + $0x118] sm:$0xff]
        %v417 = vld [vmem:[#allocation6 + $0x120] sm:$0xff]
        %v418 = vld [vmem:[#allocation6 + $0x128] sm:$0xff]
        %v419 = vld [vmem:[#allocation6 + $0x130] sm:$0xff]
        %v420 = vld [vmem:[#allocation6 + $0x138] sm:$0xff]
        %v421 = vld [vmem:[#allocation6 + $0x140] sm:$0xff]
        %v422 = vld [vmem:[#allocation6 + $0x148] sm:$0xff]
        %v423 = vld [vmem:[#allocation6 + $0x150] sm:$0xff]
        %v424 = vld [vmem:[#allocation6 + $0x158] sm:$0xff]
        %v425 = vld [vmem:[#allocation6 + $0x160] sm:$0xff]
        %v426 = vld [vmem:[#allocation6 + $0x168] sm:$0xff]
        %v427 = vld [vmem:[#allocation6 + $0x170] sm:$0xff]
        %v428 = vld [vmem:[#allocation6 + $0x178] sm:$0xff]
        %v429 = vld [vmem:[#allocation6 + $0x180] sm:$0xff]
        %v430 = vld [vmem:[#allocation6 + $0x188] sm:$0xff]
        %v431 = vld [vmem:[#allocation6 + $0x190] sm:$0xff]
        %v432 = vld [vmem:[#allocation6 + $0x198] sm:$0xff]
        %v433 = vld [vmem:[#allocation6 + $0x1a0] sm:$0xff]
        %v434 = vld [vmem:[#allocation6 + $0x1a8] sm:$0xff]
        %v435 = vld [vmem:[#allocation6 + $0x1b0] sm:$0xff]
        %v436 = vld [vmem:[#allocation6 + $0x1b8] sm:$0xff]
        %v437 = vld [vmem:[#allocation6 + $0x1c0] sm:$0xff]
        %v438 = vld [vmem:[#allocation6 + $0x1c8] sm:$0xff]
        %v439 = vld [vmem:[#allocation6 + $0x1d0] sm:$0xff]
        %v440 = vld [vmem:[#allocation6 + $0x1d8] sm:$0xff]
        %v441 = vld [vmem:[#allocation6 + $0x1e0] sm:$0xff]
        %v442 = vld [vmem:[#allocation6 + $0x1e8] sm:$0xff]
        %v443 = vld [vmem:[#allocation6 + $0x1f0] sm:$0xff]
        %v444 = vld [vmem:[#allocation6 + $0x1f8] sm:$0xff]
        %v445 = vld [vmem:[#allocation6 + $0x200] sm:$0xff]
        %v446 = vld [vmem:[#allocation6 + $0x208] sm:$0xff]
        %v447 = vld [vmem:[#allocation6 + $0x210] sm:$0xff]
        %v448 = vld [vmem:[#allocation6 + $0x218] sm:$0xff]
        %v449 = vld [vmem:[#allocation6 + $0x220] sm:$0xff]
        %v450 = vld [vmem:[#allocation6 + $0x228] sm:$0xff]
        %v451 = vld [vmem:[#allocation6 + $0x230] sm:$0xff]
        %v452 = vld [vmem:[#allocation6 + $0x238] sm:$0xff]
        %v453 = vld [vmem:[#allocation6 + $0x240] sm:$0xff]
        %v454 = vld [vmem:[#allocation6 + $0x248] sm:$0xff]
        %v455 = vld [vmem:[#allocation6 + $0x250] sm:$0xff]
        %v456 = vld [vmem:[#allocation6 + $0x258] sm:$0xff]
        %v457 = vld [vmem:[#allocation6 + $0x260] sm:$0xff]
        %v458 = vld [vmem:[#allocation6 + $0x268] sm:$0xff]
        %v459 = vld [vmem:[#allocation6 + $0x270] sm:$0xff]
        %v460 = vld [vmem:[#allocation6 + $0x278] sm:$0xff]
        %v461 = vld [vmem:[#allocation6 + $0x280] sm:$0xff]
        %v462 = vld [vmem:[#allocation6 + $0x288] sm:$0xff]
        %v463 = vld [vmem:[#allocation6 + $0x290] sm:$0xff]
        %v464 = vld [vmem:[#allocation6 + $0x298] sm:$0xff]
        %v465 = vld [vmem:[#allocation6 + $0x2a0] sm:$0xff]
        %v466 = vld [vmem:[#allocation6 + $0x2a8] sm:$0xff]
        %v467 = vld [vmem:[#allocation6 + $0x2b0] sm:$0xff]
        %v468 = vld [vmem:[#allocation6 + $0x2b8] sm:$0xff]
        %v469 = vld [vmem:[#allocation6 + $0x2c0] sm:$0xff]
        %v470 = vld [vmem:[#allocation6 + $0x2c8] sm:$0xff]
        %v471 = vld [vmem:[#allocation6 + $0x2d0] sm:$0xff]
        %v472 = vld [vmem:[#allocation6 + $0x2d8] sm:$0xff]
        %v473 = vld [vmem:[#allocation6 + $0x2e0] sm:$0xff]
        %v474 = vld [vmem:[#allocation6 + $0x2e8] sm:$0xff]
        %v475 = vld [vmem:[#allocation6 + $0x2f0] sm:$0xff]
        %v476 = vld [vmem:[#allocation6 + $0x2f8] sm:$0xff]
        %v477 = vld [vmem:[#allocation6 + $0x300] sm:$0xff]
        %v478 = vld [vmem:[#allocation6 + $0x308] sm:$0xff]
        %v479 = vld [vmem:[#allocation6 + $0x310] sm:$0xff]
        %v480 = vld [vmem:[#allocation6 + $0x318] sm:$0xff]
        %v481 = vld [vmem:[#allocation6 + $0x320] sm:$0xff]
        %v482 = vld [vmem:[#allocation6 + $0x328] sm:$0xff]
        %v483 = vld [vmem:[#allocation6 + $0x330] sm:$0xff]
        %v484 = vld [vmem:[#allocation6 + $0x338] sm:$0xff]
        %v485 = vld [vmem:[#allocation6 + $0x340] sm:$0xff]
        %v486 = vld [vmem:[#allocation6 + $0x348] sm:$0xff]
        %v487 = vld [vmem:[#allocation6 + $0x350] sm:$0xff]
        %v488 = vld [vmem:[#allocation6 + $0x358] sm:$0xff]
        %v489 = vld [vmem:[#allocation6 + $0x360] sm:$0xff]
        %v490 = vld [vmem:[#allocation6 + $0x368] sm:$0xff]
        %v491 = vld [vmem:[#allocation6 + $0x370] sm:$0xff]
        %v492 = vld [vmem:[#allocation6 + $0x378] sm:$0xff]
        %v493 = vld [vmem:[#allocation6 + $0x380] sm:$0xff]
        %v494 = vld [vmem:[#allocation6 + $0x388] sm:$0xff]
        %v495 = vld [vmem:[#allocation6 + $0x390] sm:$0xff]
        %v496 = vld [vmem:[#allocation6 + $0x398] sm:$0xff]
        %v497 = vld [vmem:[#allocation6 + $0x3a0] sm:$0xff]
        %v498 = vld [vmem:[#allocation6 + $0x3a8] sm:$0xff]
        %v499 = vld [vmem:[#allocation6 + $0x3b0] sm:$0xff]
        %v500 = vld [vmem:[#allocation6 + $0x3b8] sm:$0xff]
        %v501 = vld [vmem:[#allocation6 + $0x3c0] sm:$0xff]
        %v502 = vld [vmem:[#allocation6 + $0x3c8] sm:$0xff]
        %v503 = vld [vmem:[#allocation6 + $0x3d0] sm:$0xff]
        %v504 = vld [vmem:[#allocation6 + $0x3d8] sm:$0xff]
        %v505 = vld [vmem:[#allocation6 + $0x3e0] sm:$0xff]
        %v506 = vld [vmem:[#allocation6 + $0x3e8] sm:$0xff]
        %v507 = vld [vmem:[#allocation6 + $0x3f0] sm:$0xff]
        %v508 = vld [vmem:[#allocation6 + $0x3f8] sm:$0xff]
        %v509 = vld [vmem:[#allocation6 + $0x400] sm:$0xff]
        %v510 = vld [vmem:[#allocation6 + $0x408] sm:$0xff]
        %v511 = vld [vmem:[#allocation6 + $0x410] sm:$0xff]
        %v512 = vld [vmem:[#allocation6 + $0x418] sm:$0xff]
        %v513 = vld [vmem:[#allocation6 + $0x420] sm:$0xff]
        %v514 = vld [vmem:[#allocation6 + $0x428] sm:$0xff]
        %v515 = vld [vmem:[#allocation6 + $0x430] sm:$0xff]
        %v516 = vld [vmem:[#allocation6 + $0x438] sm:$0xff]
        %v517 = vld [vmem:[#allocation6 + $0x440] sm:$0xff]
        %v518 = vld [vmem:[#allocation6 + $0x448] sm:$0xff]
        %v519 = vld [vmem:[#allocation6 + $0x450] sm:$0xff]
        %v520 = vld [vmem:[#allocation6 + $0x458] sm:$0xff]
        %v521 = vld [vmem:[#allocation6 + $0x460] sm:$0xff]
        %v522 = vld [vmem:[#allocation6 + $0x468] sm:$0xff]
        %v523 = vld [vmem:[#allocation6 + $0x470] sm:$0xff]
        %v524 = vld [vmem:[#allocation6 + $0x478] sm:$0xff]
        %v525 = vld [vmem:[#allocation6 + $0x480] sm:$0xff]
        %v526 = vld [vmem:[#allocation6 + $0x488] sm:$0xff]
        %v527 = vld [vmem:[#allocation6 + $0x490] sm:$0xff]
        %v528 = vld [vmem:[#allocation6 + $0x498] sm:$0xff]
        %v529 = vld [vmem:[#allocation6 + $0x4a0] sm:$0xff]
        %v530 = vld [vmem:[#allocation6 + $0x4a8] sm:$0xff]
        %v531 = vld [vmem:[#allocation6 + $0x4b0] sm:$0xff]
        %v532 = vld [vmem:[#allocation6 + $0x4b8] sm:$0xff]
        %v533 = vld [vmem:[#allocation6 + $0x4c0] sm:$0xff]
        %v534 = vld [vmem:[#allocation6 + $0x4c8] sm:$0xff]
        %v535 = vld [vmem:[#allocation6 + $0x4d0] sm:$0xff]
        %v536 = vld [vmem:[#allocation6 + $0x4d8] sm:$0xff]
        %v537 = vld [vmem:[#allocation6 + $0x4e0] sm:$0xff]
        %v538 = vld [vmem:[#allocation6 + $0x4e8] sm:$0xff]
        %v539 = vld [vmem:[#allocation6 + $0x4f0] sm:$0xff]
        %v540 = vld [vmem:[#allocation6 + $0x4f8] sm:$0xff]
        %v541 = vld [vmem:[#allocation6 + $0x500] sm:$0xff]
        %v542 = vld [vmem:[#allocation6 + $0x508] sm:$0xff]
        %v543 = vld [vmem:[#allocation6 + $0x510] sm:$0xff]
        %v544 = vld [vmem:[#allocation6 + $0x518] sm:$0xff]
        %v545 = vld [vmem:[#allocation6 + $0x520] sm:$0xff]
        %v546 = vld [vmem:[#allocation6 + $0x528] sm:$0xff]
        %v547 = vld [vmem:[#allocation6 + $0x530] sm:$0xff]
        %v548 = vld [vmem:[#allocation6 + $0x538] sm:$0xff]
        %v549 = vld [vmem:[#allocation6 + $0x540] sm:$0xff]
        %v550 = vld [vmem:[#allocation6 + $0x548] sm:$0xff]
        %v551 = vld [vmem:[#allocation6 + $0x550] sm:$0xff]
        %v552 = vld [vmem:[#allocation6 + $0x558] sm:$0xff]
        %v553 = vld [vmem:[#allocation6 + $0x560] sm:$0xff]
        %v554 = vld [vmem:[#allocation6 + $0x568] sm:$0xff]
        %v555 = vld [vmem:[#allocation6 + $0x570] sm:$0xff]
        %v556 = vld [vmem:[#allocation6 + $0x578] sm:$0xff]
        %v557 = vld [vmem:[#allocation6 + $0x580] sm:$0xff]
        %v558 = vld [vmem:[#allocation6 + $0x588] sm:$0xff]
        %v559 = vld [vmem:[#allocation6 + $0x590] sm:$0xff]
        %v560 = vld [vmem:[#allocation6 + $0x598] sm:$0xff]
        %v561 = vld [vmem:[#allocation6 + $0x5a0] sm:$0xff]
        %v562 = vld [vmem:[#allocation6 + $0x5a8] sm:$0xff]
        %v563 = vld [vmem:[#allocation6 + $0x5b0] sm:$0xff]
        %v564 = vld [vmem:[#allocation6 + $0x5b8] sm:$0xff]
        %v565 = vld [vmem:[#allocation6 + $0x5c0] sm:$0xff]
        %v566 = vld [vmem:[#allocation6 + $0x5c8] sm:$0xff]
        %v567 = vld [vmem:[#allocation6 + $0x5d0] sm:$0xff]
        %v568 = vld [vmem:[#allocation6 + $0x5d8] sm:$0xff]
        %v569 = vld [vmem:[#allocation6 + $0x5e0] sm:$0xff]
        %v570 = vld [vmem:[#allocation6 + $0x5e8] sm:$0xff]
        %v571 = vld [vmem:[#allocation6 + $0x5f0] sm:$0xff]
        %v572 = vld [vmem:[#allocation6 + $0x5f8] sm:$0xff]
        %v573 = vld [vmem:[#allocation6 + $0x600] sm:$0xff]
        %v574 = vld [vmem:[#allocation6 + $0x608] sm:$0xff]
        %v575 = vld [vmem:[#allocation6 + $0x610] sm:$0xff]
        %v576 = vld [vmem:[#allocation6 + $0x618] sm:$0xff]
        %v577 = vld [vmem:[#allocation6 + $0x620] sm:$0xff]
        %v578 = vld [vmem:[#allocation6 + $0x628] sm:$0xff]
        %v579 = vld [vmem:[#allocation6 + $0x630] sm:$0xff]
        %v580 = vld [vmem:[#allocation6 + $0x638] sm:$0xff]
        %v581 = vld [vmem:[#allocation6 + $0x640] sm:$0xff]
        %v582 = vld [vmem:[#allocation6 + $0x648] sm:$0xff]
        %v583 = vld [vmem:[#allocation6 + $0x650] sm:$0xff]
        %v584 = vld [vmem:[#allocation6 + $0x658] sm:$0xff]
        %v585 = vld [vmem:[#allocation6 + $0x660] sm:$0xff]
        %v586 = vld [vmem:[#allocation6 + $0x668] sm:$0xff]
        %v587 = vld [vmem:[#allocation6 + $0x670] sm:$0xff]
        %v588 = vld [vmem:[#allocation6 + $0x678] sm:$0xff]
        %v589 = vld [vmem:[#allocation6 + $0x680] sm:$0xff]
        %v590 = vld [vmem:[#allocation6 + $0x688] sm:$0xff]
        %v591 = vld [vmem:[#allocation6 + $0x690] sm:$0xff]
        %v592 = vld [vmem:[#allocation6 + $0x698] sm:$0xff]
        %v593 = vld [vmem:[#allocation6 + $0x6a0] sm:$0xff]
        %v594 = vld [vmem:[#allocation6 + $0x6a8] sm:$0xff]
        %v595 = vld [vmem:[#allocation6 + $0x6b0] sm:$0xff]
        %v596 = vld [vmem:[#allocation6 + $0x6b8] sm:$0xff]
        %v597 = vld [vmem:[#allocation6 + $0x6c0] sm:$0xff]
        %v598 = vld [vmem:[#allocation6 + $0x6c8] sm:$0xff]
        %v599 = vld [vmem:[#allocation6 + $0x6d0] sm:$0xff]
        %v600 = vld [vmem:[#allocation6 + $0x6d8] sm:$0xff]
        %v601 = vld [vmem:[#allocation6 + $0x6e0] sm:$0xff]
        %v602 = vld [vmem:[#allocation6 + $0x6e8] sm:$0xff]
        %v603 = vld [vmem:[#allocation6 + $0x6f0] sm:$0xff]
        %v604 = vld [vmem:[#allocation6 + $0x6f8] sm:$0xff]
        %v605 = vld [vmem:[#allocation6 + $0x700] sm:$0xff]
        %v606 = vld [vmem:[#allocation6 + $0x708] sm:$0xff]
        %v607 = vld [vmem:[#allocation6 + $0x710] sm:$0xff]
        %v608 = vld [vmem:[#allocation6 + $0x718] sm:$0xff]
        %v609 = vld [vmem:[#allocation6 + $0x720] sm:$0xff]
        %v610 = vld [vmem:[#allocation6 + $0x728] sm:$0xff]
        %v611 = vld [vmem:[#allocation6 + $0x730] sm:$0xff]
        %v612 = vld [vmem:[#allocation6 + $0x738] sm:$0xff]
        %v613 = vld [vmem:[#allocation6 + $0x740] sm:$0xff]
        %v614 = vld [vmem:[#allocation6 + $0x748] sm:$0xff]
        %v615 = vld [vmem:[#allocation6 + $0x750] sm:$0xff]
        %v616 = vld [vmem:[#allocation6 + $0x758] sm:$0xff]
        %v617 = vld [vmem:[#allocation6 + $0x760] sm:$0xff]
        %v618 = vld [vmem:[#allocation6 + $0x768] sm:$0xff]
        %v619 = vld [vmem:[#allocation6 + $0x770] sm:$0xff]
        %v620 = vld [vmem:[#allocation6 + $0x778] sm:$0xff]
        %v621 = vld [vmem:[#allocation6 + $0x780] sm:$0xff]
        %v622 = vld [vmem:[#allocation6 + $0x788] sm:$0xff]
        %v623 = vld [vmem:[#allocation6 + $0x790] sm:$0xff]
        %v624 = vld [vmem:[#allocation6 + $0x798] sm:$0xff]
        %v625 = vld [vmem:[#allocation6 + $0x7a0] sm:$0xff]
        %v626 = vld [vmem:[#allocation6 + $0x7a8] sm:$0xff]
        %v627 = vld [vmem:[#allocation6 + $0x7b0] sm:$0xff]
        %v628 = vld [vmem:[#allocation6 + $0x7b8] sm:$0xff]
        %v629 = vld [vmem:[#allocation6 + $0x7c0] sm:$0xff]
        %v630 = vld [vmem:[#allocation6 + $0x7c8] sm:$0xff]
        %v631 = vld [vmem:[#allocation6 + $0x7d0] sm:$0xff]
        %v632 = vld [vmem:[#allocation6 + $0x7d8] sm:$0xff]
        %v633 = vld [vmem:[#allocation6 + $0x7e0] sm:$0xff]
        %v634 = vld [vmem:[#allocation6 + $0x7e8] sm:$0xff]
        %v635 = vld [vmem:[#allocation6 + $0x7f0] sm:$0xff]
        %v636 = vld [vmem:[#allocation6 + $0x7f8] sm:$0xff]
        %v637 = vld [vmem:[#allocation6 + $0x800] sm:$0xff]
        %v638 = vld [vmem:[#allocation6 + $0x808] sm:$0xff]
        %v639 = vld [vmem:[#allocation6 + $0x810] sm:$0xff]
        %v640 = vld [vmem:[#allocation6 + $0x818] sm:$0xff]
        %v641 = vld [vmem:[#allocation6 + $0x820] sm:$0xff]
        %v642 = vld [vmem:[#allocation6 + $0x828] sm:$0xff]
        %v643 = vld [vmem:[#allocation6 + $0x830] sm:$0xff]
        %v644 = vld [vmem:[#allocation6 + $0x838] sm:$0xff]
        %v645 = vld [vmem:[#allocation6 + $0x840] sm:$0xff]
        %v646 = vld [vmem:[#allocation6 + $0x848] sm:$0xff]
        %v647 = vld [vmem:[#allocation6 + $0x850] sm:$0xff]
        %v648 = vld [vmem:[#allocation6 + $0x858] sm:$0xff]
        %v649 = vld [vmem:[#allocation6 + $0x860] sm:$0xff]
        %v650 = vld [vmem:[#allocation6 + $0x868] sm:$0xff]
        %v651 = vld [vmem:[#allocation6 + $0x870] sm:$0xff]
        %v652 = vld [vmem:[#allocation6 + $0x878] sm:$0xff]
        %v653 = vld [vmem:[#allocation6 + $0x880] sm:$0xff]
        %v654 = vld [vmem:[#allocation6 + $0x888] sm:$0xff]
        %v655 = vld [vmem:[#allocation6 + $0x890] sm:$0xff]
        %v656 = vld [vmem:[#allocation6 + $0x898] sm:$0xff]
        %v657 = vld [vmem:[#allocation6 + $0x8a0] sm:$0xff]
        %v658 = vld [vmem:[#allocation6 + $0x8a8] sm:$0xff]
        %v659 = vld [vmem:[#allocation6 + $0x8b0] sm:$0xff]
        %v660 = vld [vmem:[#allocation6 + $0x8b8] sm:$0xff]
        %v661 = vld [vmem:[#allocation6 + $0x8c0] sm:$0xff]
        %v662 = vld [vmem:[#allocation6 + $0x8c8] sm:$0xff]
        %v663 = vld [vmem:[#allocation6 + $0x8d0] sm:$0xff]
        %v664 = vld [vmem:[#allocation6 + $0x8d8] sm:$0xff]
        %v665 = vld [vmem:[#allocation6 + $0x8e0] sm:$0xff]
        %v666 = vld [vmem:[#allocation6 + $0x8e8] sm:$0xff]
        %v667 = vld [vmem:[#allocation6 + $0x8f0] sm:$0xff]
        %v668 = vld [vmem:[#allocation6 + $0x8f8] sm:$0xff]
        %v669 = vld [vmem:[#allocation6 + $0x900] sm:$0xff]
        %v670 = vld [vmem:[#allocation6 + $0x908] sm:$0xff]
        %v671 = vld [vmem:[#allocation6 + $0x910] sm:$0xff]
        %v672 = vld [vmem:[#allocation6 + $0x918] sm:$0xff]
        %v673 = vld [vmem:[#allocation6 + $0x920] sm:$0xff]
        %v674 = vld [vmem:[#allocation6 + $0x928] sm:$0xff]
        %v675 = vld [vmem:[#allocation6 + $0x930] sm:$0xff]
        %v676 = vld [vmem:[#allocation6 + $0x938] sm:$0xff]
        %v677 = vld [vmem:[#allocation6 + $0x940] sm:$0xff]
        %v678 = vld [vmem:[#allocation6 + $0x948] sm:$0xff]
        %v679 = vld [vmem:[#allocation6 + $0x950] sm:$0xff]
        %v680 = vld [vmem:[#allocation6 + $0x958] sm:$0xff]
        %v681 = vld [vmem:[#allocation6 + $0x960] sm:$0xff]
        %v682 = vld [vmem:[#allocation6 + $0x968] sm:$0xff]
        %v683 = vld [vmem:[#allocation6 + $0x970] sm:$0xff]
        %v684 = vld [vmem:[#allocation6 + $0x978] sm:$0xff]
        %v685 = vld [vmem:[#allocation6 + $0x980] sm:$0xff]
        %v686 = vld [vmem:[#allocation6 + $0x988] sm:$0xff]
        %v687 = vld [vmem:[#allocation6 + $0x990] sm:$0xff]
        %v688 = vld [vmem:[#allocation6 + $0x998] sm:$0xff]
        %v689 = vld [vmem:[#allocation6 + $0x9a0] sm:$0xff]
        %v690 = vld [vmem:[#allocation6 + $0x9a8] sm:$0xff]
        %v691 = vld [vmem:[#allocation6 + $0x9b0] sm:$0xff]
        %v692 = vld [vmem:[#allocation6 + $0x9b8] sm:$0xff]
        %v693 = vld [vmem:[#allocation6 + $0x9c0] sm:$0xff]
        %v694 = vld [vmem:[#allocation6 + $0x9c8] sm:$0xff]
        %v695 = vld [vmem:[#allocation6 + $0x9d0] sm:$0xff]
        %v696 = vld [vmem:[#allocation6 + $0x9d8] sm:$0xff]
        %v697 = vld [vmem:[#allocation6 + $0x9e0] sm:$0xff]
        %v698 = vld [vmem:[#allocation6 + $0x9e8] sm:$0xff]
        %v699 = vld [vmem:[#allocation6 + $0x9f0] sm:$0xff]
        %v700 = vld [vmem:[#allocation6 + $0x9f8] sm:$0xff]
        %v701 = vld [vmem:[#allocation6 + $0xa00] sm:$0xff]
        %v702 = vld [vmem:[#allocation6 + $0xa08] sm:$0xff]
        %v703 = vld [vmem:[#allocation6 + $0xa10] sm:$0xff]
        %v704 = vld [vmem:[#allocation6 + $0xa18] sm:$0xff]
        %v705 = vld [vmem:[#allocation6 + $0xa20] sm:$0xff]
        %v706 = vld [vmem:[#allocation6 + $0xa28] sm:$0xff]
        %v707 = vld [vmem:[#allocation6 + $0xa30] sm:$0xff]
        %v708 = vld [vmem:[#allocation6 + $0xa38] sm:$0xff]
        %v709 = vld [vmem:[#allocation6 + $0xa40] sm:$0xff]
        %v710 = vld [vmem:[#allocation6 + $0xa48] sm:$0xff]
        %v711 = vld [vmem:[#allocation6 + $0xa50] sm:$0xff]
        %v712 = vld [vmem:[#allocation6 + $0xa58] sm:$0xff]
        %v713 = vld [vmem:[#allocation6 + $0xa60] sm:$0xff]
        %v714 = vld [vmem:[#allocation6 + $0xa68] sm:$0xff]
        %v715 = vld [vmem:[#allocation6 + $0xa70] sm:$0xff]
        %v716 = vld [vmem:[#allocation6 + $0xa78] sm:$0xff]
        %v717 = vld [vmem:[#allocation6 + $0xa80] sm:$0xff]
        %v718 = vld [vmem:[#allocation6 + $0xa88] sm:$0xff]
        %v719 = vld [vmem:[#allocation6 + $0xa90] sm:$0xff]
        %v720 = vld [vmem:[#allocation6 + $0xa98] sm:$0xff]
        %v721 = vld [vmem:[#allocation6 + $0xaa0] sm:$0xff]
        %v722 = vld [vmem:[#allocation6 + $0xaa8] sm:$0xff]
        %v723 = vld [vmem:[#allocation6 + $0xab0] sm:$0xff]
        %v724 = vld [vmem:[#allocation6 + $0xab8] sm:$0xff]
        %v725 = vld [vmem:[#allocation6 + $0xac0] sm:$0xff]
        %v726 = vld [vmem:[#allocation6 + $0xac8] sm:$0xff]
        %v727 = vld [vmem:[#allocation6 + $0xad0] sm:$0xff]
        %v728 = vld [vmem:[#allocation6 + $0xad8] sm:$0xff]
        %v729 = vld [vmem:[#allocation6 + $0xae0] sm:$0xff]
        %v730 = vld [vmem:[#allocation6 + $0xae8] sm:$0xff]
        %v731 = vld [vmem:[#allocation6 + $0xaf0] sm:$0xff]
        %v732 = vld [vmem:[#allocation6 + $0xaf8] sm:$0xff]
        %v733 = vld [vmem:[#allocation6 + $0xb00] sm:$0xff]
        %v734 = vld [vmem:[#allocation6 + $0xb08] sm:$0xff]
        %v735 = vld [vmem:[#allocation6 + $0xb10] sm:$0xff]
        %v736 = vld [vmem:[#allocation6 + $0xb18] sm:$0xff]
        %v737 = vld [vmem:[#allocation6 + $0xb20] sm:$0xff]
        %v738 = vld [vmem:[#allocation6 + $0xb28] sm:$0xff]
        %v739 = vld [vmem:[#allocation6 + $0xb30] sm:$0xff]
        %v740 = vld [vmem:[#allocation6 + $0xb38] sm:$0xff]
        %v741 = vld [vmem:[#allocation6 + $0xb40] sm:$0xff]
        %v742 = vld [vmem:[#allocation6 + $0xb48] sm:$0xff]
        %v743 = vld [vmem:[#allocation6 + $0xb50] sm:$0xff]
        %v744 = vld [vmem:[#allocation6 + $0xb58] sm:$0xff]
        %v745 = vld [vmem:[#allocation6 + $0xb60] sm:$0xff]
        %v746 = vld [vmem:[#allocation6 + $0xb68] sm:$0xff]
        %v747 = vld [vmem:[#allocation6 + $0xb70] sm:$0xff]
        %v748 = vld [vmem:[#allocation6 + $0xb78] sm:$0xff]
        %v749 = vld [vmem:[#allocation6 + $0xb80] sm:$0xff]
        %v750 = vld [vmem:[#allocation6 + $0xb88] sm:$0xff]
        %v751 = vld [vmem:[#allocation6 + $0xb90] sm:$0xff]
        %v752 = vld [vmem:[#allocation6 + $0xb98] sm:$0xff]
        %v753 = vld [vmem:[#allocation6 + $0xba0] sm:$0xff]
        %v754 = vld [vmem:[#allocation6 + $0xba8] sm:$0xff]
        %v755 = vld [vmem:[#allocation6 + $0xbb0] sm:$0xff]
        %v756 = vld [vmem:[#allocation6 + $0xbb8] sm:$0xff]
        %v757 = vld [vmem:[#allocation6 + $0xbc0] sm:$0xff]
        %v758 = vld [vmem:[#allocation6 + $0xbc8] sm:$0xff]
        %v759 = vld [vmem:[#allocation6 + $0xbd0] sm:$0xff]
        %v760 = vld [vmem:[#allocation6 + $0xbd8] sm:$0xff]
        %v761 = vld [vmem:[#allocation6 + $0xbe0] sm:$0xff]
        %v762 = vld [vmem:[#allocation6 + $0xbe8] sm:$0xff]
        %v763 = vld [vmem:[#allocation6 + $0xbf0] sm:$0xff]
        %v764 = vld [vmem:[#allocation6 + $0xbf8] sm:$0xff]
        %v765 = vld [vmem:[#allocation6 + $0xc00] sm:$0xff]
        %v766 = vld [vmem:[#allocation6 + $0xc08] sm:$0xff]
        %v767 = vld [vmem:[#allocation6 + $0xc10] sm:$0xff]
        %v768 = vld [vmem:[#allocation6 + $0xc18] sm:$0xff]
        %v769 = vld [vmem:[#allocation6 + $0xc20] sm:$0xff]
        %v770 = vld [vmem:[#allocation6 + $0xc28] sm:$0xff]
        %v771 = vld [vmem:[#allocation6 + $0xc30] sm:$0xff]
        %v772 = vld [vmem:[#allocation6 + $0xc38] sm:$0xff]
        %v773 = vld [vmem:[#allocation6 + $0xc40] sm:$0xff]
        %v774 = vld [vmem:[#allocation6 + $0xc48] sm:$0xff]
        %v775 = vld [vmem:[#allocation6 + $0xc50] sm:$0xff]
        %v776 = vld [vmem:[#allocation6 + $0xc58] sm:$0xff]
        %v777 = vld [vmem:[#allocation6 + $0xc60] sm:$0xff]
        %v778 = vld [vmem:[#allocation6 + $0xc68] sm:$0xff]
        %v779 = vld [vmem:[#allocation6 + $0xc70] sm:$0xff]
        %v780 = vld [vmem:[#allocation6 + $0xc78] sm:$0xff]
        %v781 = vld [vmem:[#allocation6 + $0xc80] sm:$0xff]
        %v782 = vld [vmem:[#allocation6 + $0xc88] sm:$0xff]
        %v783 = vld [vmem:[#allocation6 + $0xc90] sm:$0xff]
        %v784 = vld [vmem:[#allocation6 + $0xc98] sm:$0xff]
        %v785 = vld [vmem:[#allocation6 + $0xca0] sm:$0xff]
        %v786 = vld [vmem:[#allocation6 + $0xca8] sm:$0xff]
        %v787 = vld [vmem:[#allocation6 + $0xcb0] sm:$0xff]
        %v788 = vld [vmem:[#allocation6 + $0xcb8] sm:$0xff]
        %v789 = vld [vmem:[#allocation6 + $0xcc0] sm:$0xff]
        %v790 = vld [vmem:[#allocation6 + $0xcc8] sm:$0xff]
        %v791 = vld [vmem:[#allocation6 + $0xcd0] sm:$0xff]
        %v792 = vld [vmem:[#allocation6 + $0xcd8] sm:$0xff]
        %v793 = vld [vmem:[#allocation6 + $0xce0] sm:$0xff]
        %v794 = vld [vmem:[#allocation6 + $0xce8] sm:$0xff]
        %v795 = vld [vmem:[#allocation6 + $0xcf0] sm:$0xff]
        %v796 = vld [vmem:[#allocation6 + $0xcf8] sm:$0xff]
        %v797 = vld [vmem:[#allocation6 + $0xd00] sm:$0xff]
        %v798 = vld [vmem:[#allocation6 + $0xd08] sm:$0xff]
        %v799 = vld [vmem:[#allocation6 + $0xd10] sm:$0xff]
        %v800 = vld [vmem:[#allocation6 + $0xd18] sm:$0xff]
        %v801 = vld [vmem:[#allocation6 + $0xd20] sm:$0xff]
        %v802 = vld [vmem:[#allocation6 + $0xd28] sm:$0xff]
        %v803 = vld [vmem:[#allocation6 + $0xd30] sm:$0xff]
        %v804 = vld [vmem:[#allocation6 + $0xd38] sm:$0xff]
        %v805 = vld [vmem:[#allocation6 + $0xd40] sm:$0xff]
        %v806 = vld [vmem:[#allocation6 + $0xd48] sm:$0xff]
        %v807 = vld [vmem:[#allocation6 + $0xd50] sm:$0xff]
        %v808 = vld [vmem:[#allocation6 + $0xd58] sm:$0xff]
        %v809 = vld [vmem:[#allocation6 + $0xd60] sm:$0xff]
        %v810 = vld [vmem:[#allocation6 + $0xd68] sm:$0xff]
        %v811 = vld [vmem:[#allocation6 + $0xd70] sm:$0xff]
        %v812 = vld [vmem:[#allocation6 + $0xd78] sm:$0xff]
        %v813 = vld [vmem:[#allocation8] sm:$0xff]
        %v814 = vld [vmem:[#allocation8 + $0x8] sm:$0xff]
        %v815 = vld [vmem:[#allocation8 + $0x10] sm:$0x3]
        %v819 = vlaneseq
        %v820 = vshrl.u32 %v819, 7
        %v821 = vsub.s32 0, %v820
        %v822 = vrot.slane %v813, %v821
        %v823 = vlaneseq
        %v824 = vshrl.u32 %v823, 7
        %v825 = vsub.s32 1, %v824
        %v826 = vrot.slane %v813, %v825
        %v827 = vlaneseq
        %v828 = vshrl.u32 %v827, 7
        %v829 = vsub.s32 2, %v828
        %v830 = vrot.slane %v813, %v829
        %v831 = vlaneseq
        %v832 = vshrl.u32 %v831, 7
        %v833 = vsub.s32 3, %v832
        %v834 = vrot.slane %v813, %v833
        %v835 = vlaneseq
        %v836 = vshrl.u32 %v835, 7
        %v837 = vsub.s32 4, %v836
        %v838 = vrot.slane %v813, %v837
        %v839 = vlaneseq
        %v840 = vshrl.u32 %v839, 7
        %v841 = vsub.s32 5, %v840
        %v842 = vrot.slane %v813, %v841
        %v843 = vlaneseq
        %v844 = vshrl.u32 %v843, 7
        %v845 = vsub.s32 6, %v844
        %v846 = vrot.slane %v813, %v845
        %v847 = vlaneseq
        %v848 = vshrl.u32 %v847, 7
        %v849 = vsub.s32 7, %v848
        %v850 = vrot.slane %v813, %v849
        %v851 = vlaneseq
        %v852 = vshrl.u32 %v851, 7
        %v853 = vsub.s32 0, %v852
        %v854 = vrot.slane %v814, %v853
        %v855 = vlaneseq
        %v856 = vshrl.u32 %v855, 7
        %v857 = vsub.s32 1, %v856
        %v858 = vrot.slane %v814, %v857
        %v859 = vlaneseq
        %v860 = vshrl.u32 %v859, 7
        %v861 = vsub.s32 2, %v860
        %v862 = vrot.slane %v814, %v861
        %v863 = vlaneseq
        %v864 = vshrl.u32 %v863, 7
        %v865 = vsub.s32 3, %v864
        %v866 = vrot.slane %v814, %v865
        %v867 = vlaneseq
        %v868 = vshrl.u32 %v867, 7
        %v869 = vsub.s32 4, %v868
        %v870 = vrot.slane %v814, %v869
        %v871 = vlaneseq
        %v872 = vshrl.u32 %v871, 7
        %v873 = vsub.s32 5, %v872
        %v874 = vrot.slane %v814, %v873
        %v875 = vlaneseq
        %v876 = vshrl.u32 %v875, 7
        %v877 = vsub.s32 6, %v876
        %v878 = vrot.slane %v814, %v877
        %v879 = vlaneseq
        %v880 = vshrl.u32 %v879, 7
        %v881 = vsub.s32 7, %v880
        %v882 = vrot.slane %v814, %v881
        %v883 = vlaneseq
        %v884 = vshrl.u32 %v883, 7
        %v885 = vsub.s32 0, %v884
        %v886 = vrot.slane %v815, %v885
        %v887 = vlaneseq
        %v888 = vshrl.u32 %v887, 7
        %v889 = vsub.s32 1, %v888
        %v890 = vrot.slane %v815, %v889
        %v1341 = vunpack.c.l.b16 %v381
        %v1342 = vunpack.c.h.b16 %v381
        %v1343 = vunpack.c.l.b16 %v382
        %v1344 = vunpack.c.h.b16 %v382
        %v1345 = vunpack.c.l.b16 %v383
        %v1346 = vunpack.c.h.b16 %v383
        %v1347 = vunpack.c.l.b16 %v384
        %v1348 = vunpack.c.h.b16 %v384
        %v1349 = vunpack.c.l.b16 %v385
        %v1350 = vunpack.c.h.b16 %v385
        %v1351 = vunpack.c.l.b16 %v386
        %v1352 = vunpack.c.h.b16 %v386
        %v1353 = vunpack.c.l.b16 %v387
        %v1354 = vunpack.c.h.b16 %v387
        %v1355 = vunpack.c.l.b16 %v388
        %v1356 = vunpack.c.h.b16 %v388
        %v1357 = vunpack.c.l.b16 %v389
        %v1358 = vunpack.c.h.b16 %v389
        %v1359 = vunpack.c.l.b16 %v390
        %v1360 = vunpack.c.h.b16 %v390
        %v1361 = vunpack.c.l.b16 %v391
        %v1362 = vunpack.c.h.b16 %v391
        %v1363 = vunpack.c.l.b16 %v392
        %v1364 = vunpack.c.h.b16 %v392
        %v1365 = vunpack.c.l.b16 %v393
        %v1366 = vunpack.c.h.b16 %v393
        %v1367 = vunpack.c.l.b16 %v394
        %v1368 = vunpack.c.h.b16 %v394
        %v1369 = vunpack.c.l.b16 %v395
        %v1370 = vunpack.c.h.b16 %v395
        %v1371 = vunpack.c.l.b16 %v396
        %v1372 = vunpack.c.h.b16 %v396
        %v1373 = vunpack.c.l.b16 %v397
        %v1374 = vunpack.c.h.b16 %v397
        %v1375 = vunpack.c.l.b16 %v398
        %v1376 = vunpack.c.h.b16 %v398
        %v1377 = vunpack.c.l.b16 %v399
        %v1378 = vunpack.c.h.b16 %v399
        %v1379 = vunpack.c.l.b16 %v400
        %v1380 = vunpack.c.h.b16 %v400
        %v1381 = vunpack.c.l.b16 %v401
        %v1382 = vunpack.c.h.b16 %v401
        %v1383 = vunpack.c.l.b16 %v402
        %v1384 = vunpack.c.h.b16 %v402
        %v1385 = vunpack.c.l.b16 %v403
        %v1386 = vunpack.c.h.b16 %v403
        %v1387 = vunpack.c.l.b16 %v404
        %v1388 = vunpack.c.h.b16 %v404
        %v1389 = vunpack.c.l.b16 %v405
        %v1390 = vunpack.c.h.b16 %v405
        %v1391 = vunpack.c.l.b16 %v406
        %v1392 = vunpack.c.h.b16 %v406
        %v1393 = vunpack.c.l.b16 %v407
        %v1394 = vunpack.c.h.b16 %v407
        %v1395 = vunpack.c.l.b16 %v408
        %v1396 = vunpack.c.h.b16 %v408
        %v1397 = vunpack.c.l.b16 %v409
        %v1398 = vunpack.c.h.b16 %v409
        %v1399 = vunpack.c.l.b16 %v410
        %v1400 = vunpack.c.h.b16 %v410
        %v1401 = vunpack.c.l.b16 %v411
        %v1402 = vunpack.c.h.b16 %v411
        %v1403 = vunpack.c.l.b16 %v412
        %v1404 = vunpack.c.h.b16 %v412
        %v1405 = vunpack.c.l.b16 %v413
        %v1406 = vunpack.c.h.b16 %v413
        %v1407 = vunpack.c.l.b16 %v414
        %v1408 = vunpack.c.h.b16 %v414
        %v1409 = vunpack.c.l.b16 %v415
        %v1410 = vunpack.c.h.b16 %v415
        %v1411 = vunpack.c.l.b16 %v416
        %v1412 = vunpack.c.h.b16 %v416
        %v1413 = vunpack.c.l.b16 %v417
        %v1414 = vunpack.c.h.b16 %v417
        %v1415 = vunpack.c.l.b16 %v418
        %v1416 = vunpack.c.h.b16 %v418
        %v1417 = vunpack.c.l.b16 %v419
        %v1418 = vunpack.c.h.b16 %v419
        %v1419 = vunpack.c.l.b16 %v420
        %v1420 = vunpack.c.h.b16 %v420
        %v1421 = vunpack.c.l.b16 %v421
        %v1422 = vunpack.c.h.b16 %v421
        %v1423 = vunpack.c.l.b16 %v422
        %v1424 = vunpack.c.h.b16 %v422
        %v1425 = vunpack.c.l.b16 %v423
        %v1426 = vunpack.c.h.b16 %v423
        %v1427 = vunpack.c.l.b16 %v424
        %v1428 = vunpack.c.h.b16 %v424
        %v1429 = vunpack.c.l.b16 %v425
        %v1430 = vunpack.c.h.b16 %v425
        %v1431 = vunpack.c.l.b16 %v426
        %v1432 = vunpack.c.h.b16 %v426
        %v1433 = vunpack.c.l.b16 %v427
        %v1434 = vunpack.c.h.b16 %v427
        %v1435 = vunpack.c.l.b16 %v428
        %v1436 = vunpack.c.h.b16 %v428
        %v1437 = vunpack.c.l.b16 %v429
        %v1438 = vunpack.c.h.b16 %v429
        %v1439 = vunpack.c.l.b16 %v430
        %v1440 = vunpack.c.h.b16 %v430
        %v1441 = vunpack.c.l.b16 %v431
        %v1442 = vunpack.c.h.b16 %v431
        %v1443 = vunpack.c.l.b16 %v432
        %v1444 = vunpack.c.h.b16 %v432
        %v1445 = vunpack.c.l.b16 %v433
        %v1446 = vunpack.c.h.b16 %v433
        %v1447 = vunpack.c.l.b16 %v434
        %v1448 = vunpack.c.h.b16 %v434
        %v1449 = vunpack.c.l.b16 %v435
        %v1450 = vunpack.c.h.b16 %v435
        %v1451 = vunpack.c.l.b16 %v436
        %v1452 = vunpack.c.h.b16 %v436
        %v1453 = vunpack.c.l.b16 %v437
        %v1454 = vunpack.c.h.b16 %v437
        %v1455 = vunpack.c.l.b16 %v438
        %v1456 = vunpack.c.h.b16 %v438
        %v1457 = vunpack.c.l.b16 %v439
        %v1458 = vunpack.c.h.b16 %v439
        %v1459 = vunpack.c.l.b16 %v440
        %v1460 = vunpack.c.h.b16 %v440
        %v1461 = vunpack.c.l.b16 %v441
        %v1462 = vunpack.c.h.b16 %v441
        %v1463 = vunpack.c.l.b16 %v442
        %v1464 = vunpack.c.h.b16 %v442
        %v1465 = vunpack.c.l.b16 %v443
        %v1466 = vunpack.c.h.b16 %v443
        %v1467 = vunpack.c.l.b16 %v444
        %v1468 = vunpack.c.h.b16 %v444
        %v1469 = vunpack.c.l.b16 %v445
        %v1470 = vunpack.c.h.b16 %v445
        %v1471 = vunpack.c.l.b16 %v446
        %v1472 = vunpack.c.h.b16 %v446
        %v1473 = vunpack.c.l.b16 %v447
        %v1474 = vunpack.c.h.b16 %v447
        %v1475 = vunpack.c.l.b16 %v448
        %v1476 = vunpack.c.h.b16 %v448
        %v1477 = vunpack.c.l.b16 %v449
        %v1478 = vunpack.c.h.b16 %v449
        %v1479 = vunpack.c.l.b16 %v450
        %v1480 = vunpack.c.h.b16 %v450
        %v1481 = vunpack.c.l.b16 %v451
        %v1482 = vunpack.c.h.b16 %v451
        %v1483 = vunpack.c.l.b16 %v452
        %v1484 = vunpack.c.h.b16 %v452
        %v1485 = vunpack.c.l.b16 %v453
        %v1486 = vunpack.c.h.b16 %v453
        %v1487 = vunpack.c.l.b16 %v454
        %v1488 = vunpack.c.h.b16 %v454
        %v1489 = vunpack.c.l.b16 %v455
        %v1490 = vunpack.c.h.b16 %v455
        %v1491 = vunpack.c.l.b16 %v456
        %v1492 = vunpack.c.h.b16 %v456
        %v1493 = vunpack.c.l.b16 %v457
        %v1494 = vunpack.c.h.b16 %v457
        %v1495 = vunpack.c.l.b16 %v458
        %v1496 = vunpack.c.h.b16 %v458
        %v1497 = vunpack.c.l.b16 %v459
        %v1498 = vunpack.c.h.b16 %v459
        %v1499 = vunpack.c.l.b16 %v460
        %v1500 = vunpack.c.h.b16 %v460
        %v1501 = vunpack.c.l.b16 %v461
        %v1502 = vunpack.c.h.b16 %v461
        %v1503 = vunpack.c.l.b16 %v462
        %v1504 = vunpack.c.h.b16 %v462
        %v1505 = vunpack.c.l.b16 %v463
        %v1506 = vunpack.c.h.b16 %v463
        %v1507 = vunpack.c.l.b16 %v464
        %v1508 = vunpack.c.h.b16 %v464
        %v1509 = vunpack.c.l.b16 %v465
        %v1510 = vunpack.c.h.b16 %v465
        %v1511 = vunpack.c.l.b16 %v466
        %v1512 = vunpack.c.h.b16 %v466
        %v1513 = vunpack.c.l.b16 %v467
        %v1514 = vunpack.c.h.b16 %v467
        %v1515 = vunpack.c.l.b16 %v468
        %v1516 = vunpack.c.h.b16 %v468
        %v1517 = vunpack.c.l.b16 %v469
        %v1518 = vunpack.c.h.b16 %v469
        %v1519 = vunpack.c.l.b16 %v470
        %v1520 = vunpack.c.h.b16 %v470
        %v1521 = vunpack.c.l.b16 %v471
        %v1522 = vunpack.c.h.b16 %v471
        %v1523 = vunpack.c.l.b16 %v472
        %v1524 = vunpack.c.h.b16 %v472
        %v1525 = vunpack.c.l.b16 %v473
        %v1526 = vunpack.c.h.b16 %v473
        %v1527 = vunpack.c.l.b16 %v474
        %v1528 = vunpack.c.h.b16 %v474
        %v1529 = vunpack.c.l.b16 %v475
        %v1530 = vunpack.c.h.b16 %v475
        %v1531 = vunpack.c.l.b16 %v476
        %v1532 = vunpack.c.h.b16 %v476
        %v1533 = vunpack.c.l.b16 %v477
        %v1534 = vunpack.c.h.b16 %v477
        %v1535 = vunpack.c.l.b16 %v478
        %v1536 = vunpack.c.h.b16 %v478
        %v1537 = vunpack.c.l.b16 %v479
        %v1538 = vunpack.c.h.b16 %v479
        %v1539 = vunpack.c.l.b16 %v480
        %v1540 = vunpack.c.h.b16 %v480
        %v1541 = vunpack.c.l.b16 %v481
        %v1542 = vunpack.c.h.b16 %v481
        %v1543 = vunpack.c.l.b16 %v482
        %v1544 = vunpack.c.h.b16 %v482
        %v1545 = vunpack.c.l.b16 %v483
        %v1546 = vunpack.c.h.b16 %v483
        %v1547 = vunpack.c.l.b16 %v484
        %v1548 = vunpack.c.h.b16 %v484
        %v1549 = vunpack.c.l.b16 %v485
        %v1550 = vunpack.c.h.b16 %v485
        %v1551 = vunpack.c.l.b16 %v486
        %v1552 = vunpack.c.h.b16 %v486
        %v1553 = vunpack.c.l.b16 %v487
        %v1554 = vunpack.c.h.b16 %v487
        %v1555 = vunpack.c.l.b16 %v488
        %v1556 = vunpack.c.h.b16 %v488
        %v1557 = vunpack.c.l.b16 %v489
        %v1558 = vunpack.c.h.b16 %v489
        %v1559 = vunpack.c.l.b16 %v490
        %v1560 = vunpack.c.h.b16 %v490
        %v1561 = vunpack.c.l.b16 %v491
        %v1562 = vunpack.c.h.b16 %v491
        %v1563 = vunpack.c.l.b16 %v492
        %v1564 = vunpack.c.h.b16 %v492
        %v1565 = vunpack.c.l.b16 %v493
        %v1566 = vunpack.c.h.b16 %v493
        %v1567 = vunpack.c.l.b16 %v494
        %v1568 = vunpack.c.h.b16 %v494
        %v1569 = vunpack.c.l.b16 %v495
        %v1570 = vunpack.c.h.b16 %v495
        %v1571 = vunpack.c.l.b16 %v496
        %v1572 = vunpack.c.h.b16 %v496
        %v1573 = vunpack.c.l.b16 %v497
        %v1574 = vunpack.c.h.b16 %v497
        %v1575 = vunpack.c.l.b16 %v498
        %v1576 = vunpack.c.h.b16 %v498
        %v1577 = vunpack.c.l.b16 %v499
        %v1578 = vunpack.c.h.b16 %v499
        %v1579 = vunpack.c.l.b16 %v500
        %v1580 = vunpack.c.h.b16 %v500
        %v1581 = vunpack.c.l.b16 %v501
        %v1582 = vunpack.c.h.b16 %v501
        %v1583 = vunpack.c.l.b16 %v502
        %v1584 = vunpack.c.h.b16 %v502
        %v1585 = vunpack.c.l.b16 %v503
        %v1586 = vunpack.c.h.b16 %v503
        %v1587 = vunpack.c.l.b16 %v504
        %v1588 = vunpack.c.h.b16 %v504
        %v1589 = vunpack.c.l.b16 %v505
        %v1590 = vunpack.c.h.b16 %v505
        %v1591 = vunpack.c.l.b16 %v506
        %v1592 = vunpack.c.h.b16 %v506
        %v1593 = vunpack.c.l.b16 %v507
        %v1594 = vunpack.c.h.b16 %v507
        %v1595 = vunpack.c.l.b16 %v508
        %v1596 = vunpack.c.h.b16 %v508
        %v1597 = vunpack.c.l.b16 %v509
        %v1598 = vunpack.c.h.b16 %v509
        %v1599 = vunpack.c.l.b16 %v510
        %v1600 = vunpack.c.h.b16 %v510
        %v1601 = vunpack.c.l.b16 %v511
        %v1602 = vunpack.c.h.b16 %v511
        %v1603 = vunpack.c.l.b16 %v512
        %v1604 = vunpack.c.h.b16 %v512
        %v1605 = vunpack.c.l.b16 %v513
        %v1606 = vunpack.c.h.b16 %v513
        %v1607 = vunpack.c.l.b16 %v514
        %v1608 = vunpack.c.h.b16 %v514
        %v1609 = vunpack.c.l.b16 %v515
        %v1610 = vunpack.c.h.b16 %v515
        %v1611 = vunpack.c.l.b16 %v516
        %v1612 = vunpack.c.h.b16 %v516
        %v1613 = vunpack.c.l.b16 %v517
        %v1614 = vunpack.c.h.b16 %v517
        %v1615 = vunpack.c.l.b16 %v518
        %v1616 = vunpack.c.h.b16 %v518
        %v1617 = vunpack.c.l.b16 %v519
        %v1618 = vunpack.c.h.b16 %v519
        %v1619 = vunpack.c.l.b16 %v520
        %v1620 = vunpack.c.h.b16 %v520
        %v1621 = vunpack.c.l.b16 %v521
        %v1622 = vunpack.c.h.b16 %v521
        %v1623 = vunpack.c.l.b16 %v522
        %v1624 = vunpack.c.h.b16 %v522
        %v1625 = vunpack.c.l.b16 %v523
        %v1626 = vunpack.c.h.b16 %v523
        %v1627 = vunpack.c.l.b16 %v524
        %v1628 = vunpack.c.h.b16 %v524
        %v1629 = vunpack.c.l.b16 %v525
        %v1630 = vunpack.c.h.b16 %v525
        %v1631 = vunpack.c.l.b16 %v526
        %v1632 = vunpack.c.h.b16 %v526
        %v1633 = vunpack.c.l.b16 %v527
        %v1634 = vunpack.c.h.b16 %v527
        %v1635 = vunpack.c.l.b16 %v528
        %v1636 = vunpack.c.h.b16 %v528
        %v1637 = vunpack.c.l.b16 %v529
        %v1638 = vunpack.c.h.b16 %v529
        %v1639 = vunpack.c.l.b16 %v530
        %v1640 = vunpack.c.h.b16 %v530
        %v1641 = vunpack.c.l.b16 %v531
        %v1642 = vunpack.c.h.b16 %v531
        %v1643 = vunpack.c.l.b16 %v532
        %v1644 = vunpack.c.h.b16 %v532
        %v1645 = vunpack.c.l.b16 %v533
        %v1646 = vunpack.c.h.b16 %v533
        %v1647 = vunpack.c.l.b16 %v534
        %v1648 = vunpack.c.h.b16 %v534
        %v1649 = vunpack.c.l.b16 %v535
        %v1650 = vunpack.c.h.b16 %v535
        %v1651 = vunpack.c.l.b16 %v536
        %v1652 = vunpack.c.h.b16 %v536
        %v1653 = vunpack.c.l.b16 %v537
        %v1654 = vunpack.c.h.b16 %v537
        %v1655 = vunpack.c.l.b16 %v538
        %v1656 = vunpack.c.h.b16 %v538
        %v1657 = vunpack.c.l.b16 %v539
        %v1658 = vunpack.c.h.b16 %v539
        %v1659 = vunpack.c.l.b16 %v540
        %v1660 = vunpack.c.h.b16 %v540
        %v1661 = vunpack.c.l.b16 %v541
        %v1662 = vunpack.c.h.b16 %v541
        %v1663 = vunpack.c.l.b16 %v542
        %v1664 = vunpack.c.h.b16 %v542
        %v1665 = vunpack.c.l.b16 %v543
        %v1666 = vunpack.c.h.b16 %v543
        %v1667 = vunpack.c.l.b16 %v544
        %v1668 = vunpack.c.h.b16 %v544
        %v1669 = vunpack.c.l.b16 %v545
        %v1670 = vunpack.c.h.b16 %v545
        %v1671 = vunpack.c.l.b16 %v546
        %v1672 = vunpack.c.h.b16 %v546
        %v1673 = vunpack.c.l.b16 %v547
        %v1674 = vunpack.c.h.b16 %v547
        %v1675 = vunpack.c.l.b16 %v548
        %v1676 = vunpack.c.h.b16 %v548
        %v1677 = vunpack.c.l.b16 %v549
        %v1678 = vunpack.c.h.b16 %v549
        %v1679 = vunpack.c.l.b16 %v550
        %v1680 = vunpack.c.h.b16 %v550
        %v1681 = vunpack.c.l.b16 %v551
        %v1682 = vunpack.c.h.b16 %v551
        %v1683 = vunpack.c.l.b16 %v552
        %v1684 = vunpack.c.h.b16 %v552
        %v1685 = vunpack.c.l.b16 %v553
        %v1686 = vunpack.c.h.b16 %v553
        %v1687 = vunpack.c.l.b16 %v554
        %v1688 = vunpack.c.h.b16 %v554
        %v1689 = vunpack.c.l.b16 %v555
        %v1690 = vunpack.c.h.b16 %v555
        %v1691 = vunpack.c.l.b16 %v556
        %v1692 = vunpack.c.h.b16 %v556
        %v1693 = vunpack.c.l.b16 %v557
        %v1694 = vunpack.c.h.b16 %v557
        %v1695 = vunpack.c.l.b16 %v558
        %v1696 = vunpack.c.h.b16 %v558
        %v1697 = vunpack.c.l.b16 %v559
        %v1698 = vunpack.c.h.b16 %v559
        %v1699 = vunpack.c.l.b16 %v560
        %v1700 = vunpack.c.h.b16 %v560
        %v1701 = vunpack.c.l.b16 %v561
        %v1702 = vunpack.c.h.b16 %v561
        %v1703 = vunpack.c.l.b16 %v562
        %v1704 = vunpack.c.h.b16 %v562
        %v1705 = vunpack.c.l.b16 %v563
        %v1706 = vunpack.c.h.b16 %v563
        %v1707 = vunpack.c.l.b16 %v564
        %v1708 = vunpack.c.h.b16 %v564
        %v1709 = vunpack.c.l.b16 %v565
        %v1710 = vunpack.c.h.b16 %v565
        %v1711 = vunpack.c.l.b16 %v566
        %v1712 = vunpack.c.h.b16 %v566
        %v1713 = vunpack.c.l.b16 %v567
        %v1714 = vunpack.c.h.b16 %v567
        %v1715 = vunpack.c.l.b16 %v568
        %v1716 = vunpack.c.h.b16 %v568
        %v1717 = vunpack.c.l.b16 %v569
        %v1718 = vunpack.c.h.b16 %v569
        %v1719 = vunpack.c.l.b16 %v570
        %v1720 = vunpack.c.h.b16 %v570
        %v1721 = vunpack.c.l.b16 %v571
        %v1722 = vunpack.c.h.b16 %v571
        %v1723 = vunpack.c.l.b16 %v572
        %v1724 = vunpack.c.h.b16 %v572
        %v1725 = vunpack.c.l.b16 %v573
        %v1726 = vunpack.c.h.b16 %v573
        %v1727 = vunpack.c.l.b16 %v574
        %v1728 = vunpack.c.h.b16 %v574
        %v1729 = vunpack.c.l.b16 %v575
        %v1730 = vunpack.c.h.b16 %v575
        %v1731 = vunpack.c.l.b16 %v576
        %v1732 = vunpack.c.h.b16 %v576
        %v1733 = vunpack.c.l.b16 %v577
        %v1734 = vunpack.c.h.b16 %v577
        %v1735 = vunpack.c.l.b16 %v578
        %v1736 = vunpack.c.h.b16 %v578
        %v1737 = vunpack.c.l.b16 %v579
        %v1738 = vunpack.c.h.b16 %v579
        %v1739 = vunpack.c.l.b16 %v580
        %v1740 = vunpack.c.h.b16 %v580
        %v1741 = vunpack.c.l.b16 %v581
        %v1742 = vunpack.c.h.b16 %v581
        %v1743 = vunpack.c.l.b16 %v582
        %v1744 = vunpack.c.h.b16 %v582
        %v1745 = vunpack.c.l.b16 %v583
        %v1746 = vunpack.c.h.b16 %v583
        %v1747 = vunpack.c.l.b16 %v584
        %v1748 = vunpack.c.h.b16 %v584
        %v1749 = vunpack.c.l.b16 %v585
        %v1750 = vunpack.c.h.b16 %v585
        %v1751 = vunpack.c.l.b16 %v586
        %v1752 = vunpack.c.h.b16 %v586
        %v1753 = vunpack.c.l.b16 %v587
        %v1754 = vunpack.c.h.b16 %v587
        %v1755 = vunpack.c.l.b16 %v588
        %v1756 = vunpack.c.h.b16 %v588
        %v1757 = vunpack.c.l.b16 %v589
        %v1758 = vunpack.c.h.b16 %v589
        %v1759 = vunpack.c.l.b16 %v590
        %v1760 = vunpack.c.h.b16 %v590
        %v1761 = vunpack.c.l.b16 %v591
        %v1762 = vunpack.c.h.b16 %v591
        %v1763 = vunpack.c.l.b16 %v592
        %v1764 = vunpack.c.h.b16 %v592
        %v1765 = vunpack.c.l.b16 %v593
        %v1766 = vunpack.c.h.b16 %v593
        %v1767 = vunpack.c.l.b16 %v594
        %v1768 = vunpack.c.h.b16 %v594
        %v1769 = vunpack.c.l.b16 %v595
        %v1770 = vunpack.c.h.b16 %v595
        %v1771 = vunpack.c.l.b16 %v596
        %v1772 = vunpack.c.h.b16 %v596
        %v1773 = vunpack.c.l.b16 %v597
        %v1774 = vunpack.c.h.b16 %v597
        %v1775 = vunpack.c.l.b16 %v598
        %v1776 = vunpack.c.h.b16 %v598
        %v1777 = vunpack.c.l.b16 %v599
        %v1778 = vunpack.c.h.b16 %v599
        %v1779 = vunpack.c.l.b16 %v600
        %v1780 = vunpack.c.h.b16 %v600
        %v1781 = vunpack.c.l.b16 %v601
        %v1782 = vunpack.c.h.b16 %v601
        %v1783 = vunpack.c.l.b16 %v602
        %v1784 = vunpack.c.h.b16 %v602
        %v1785 = vunpack.c.l.b16 %v603
        %v1786 = vunpack.c.h.b16 %v603
        %v1787 = vunpack.c.l.b16 %v604
        %v1788 = vunpack.c.h.b16 %v604
        %v1789 = vunpack.c.l.b16 %v605
        %v1790 = vunpack.c.h.b16 %v605
        %v1791 = vunpack.c.l.b16 %v606
        %v1792 = vunpack.c.h.b16 %v606
        %v1793 = vunpack.c.l.b16 %v607
        %v1794 = vunpack.c.h.b16 %v607
        %v1795 = vunpack.c.l.b16 %v608
        %v1796 = vunpack.c.h.b16 %v608
        %v1797 = vunpack.c.l.b16 %v609
        %v1798 = vunpack.c.h.b16 %v609
        %v1799 = vunpack.c.l.b16 %v610
        %v1800 = vunpack.c.h.b16 %v610
        %v1801 = vunpack.c.l.b16 %v611
        %v1802 = vunpack.c.h.b16 %v611
        %v1803 = vunpack.c.l.b16 %v612
        %v1804 = vunpack.c.h.b16 %v612
        %v1805 = vunpack.c.l.b16 %v613
        %v1806 = vunpack.c.h.b16 %v613
        %v1807 = vunpack.c.l.b16 %v614
        %v1808 = vunpack.c.h.b16 %v614
        %v1809 = vunpack.c.l.b16 %v615
        %v1810 = vunpack.c.h.b16 %v615
        %v1811 = vunpack.c.l.b16 %v616
        %v1812 = vunpack.c.h.b16 %v616
        %v1813 = vunpack.c.l.b16 %v617
        %v1814 = vunpack.c.h.b16 %v617
        %v1815 = vunpack.c.l.b16 %v618
        %v1816 = vunpack.c.h.b16 %v618
        %v1817 = vunpack.c.l.b16 %v619
        %v1818 = vunpack.c.h.b16 %v619
        %v1819 = vunpack.c.l.b16 %v620
        %v1820 = vunpack.c.h.b16 %v620
        %v1821 = vunpack.c.l.b16 %v621
        %v1822 = vunpack.c.h.b16 %v621
        %v1823 = vunpack.c.l.b16 %v622
        %v1824 = vunpack.c.h.b16 %v622
        %v1825 = vunpack.c.l.b16 %v623
        %v1826 = vunpack.c.h.b16 %v623
        %v1827 = vunpack.c.l.b16 %v624
        %v1828 = vunpack.c.h.b16 %v624
        %v1829 = vunpack.c.l.b16 %v625
        %v1830 = vunpack.c.h.b16 %v625
        %v1831 = vunpack.c.l.b16 %v626
        %v1832 = vunpack.c.h.b16 %v626
        %v1833 = vunpack.c.l.b16 %v627
        %v1834 = vunpack.c.h.b16 %v627
        %v1835 = vunpack.c.l.b16 %v628
        %v1836 = vunpack.c.h.b16 %v628
        %v1837 = vunpack.c.l.b16 %v629
        %v1838 = vunpack.c.h.b16 %v629
        %v1839 = vunpack.c.l.b16 %v630
        %v1840 = vunpack.c.h.b16 %v630
        %v1841 = vunpack.c.l.b16 %v631
        %v1842 = vunpack.c.h.b16 %v631
        %v1843 = vunpack.c.l.b16 %v632
        %v1844 = vunpack.c.h.b16 %v632
        %v1845 = vunpack.c.l.b16 %v633
        %v1846 = vunpack.c.h.b16 %v633
        %v1847 = vunpack.c.l.b16 %v634
        %v1848 = vunpack.c.h.b16 %v634
        %v1849 = vunpack.c.l.b16 %v635
        %v1850 = vunpack.c.h.b16 %v635
        %v1851 = vunpack.c.l.b16 %v636
        %v1852 = vunpack.c.h.b16 %v636
        %v1853 = vunpack.c.l.b16 %v637
        %v1854 = vunpack.c.h.b16 %v637
        %v1855 = vunpack.c.l.b16 %v638
        %v1856 = vunpack.c.h.b16 %v638
        %v1857 = vunpack.c.l.b16 %v639
        %v1858 = vunpack.c.h.b16 %v639
        %v1859 = vunpack.c.l.b16 %v640
        %v1860 = vunpack.c.h.b16 %v640
        %v1861 = vunpack.c.l.b16 %v641
        %v1862 = vunpack.c.h.b16 %v641
        %v1863 = vunpack.c.l.b16 %v642
        %v1864 = vunpack.c.h.b16 %v642
        %v1865 = vunpack.c.l.b16 %v643
        %v1866 = vunpack.c.h.b16 %v643
        %v1867 = vunpack.c.l.b16 %v644
        %v1868 = vunpack.c.h.b16 %v644
        %v1869 = vunpack.c.l.b16 %v645
        %v1870 = vunpack.c.h.b16 %v645
        %v1871 = vunpack.c.l.b16 %v646
        %v1872 = vunpack.c.h.b16 %v646
        %v1873 = vunpack.c.l.b16 %v647
        %v1874 = vunpack.c.h.b16 %v647
        %v1875 = vunpack.c.l.b16 %v648
        %v1876 = vunpack.c.h.b16 %v648
        %v1877 = vunpack.c.l.b16 %v649
        %v1878 = vunpack.c.h.b16 %v649
        %v1879 = vunpack.c.l.b16 %v650
        %v1880 = vunpack.c.h.b16 %v650
        %v1881 = vunpack.c.l.b16 %v651
        %v1882 = vunpack.c.h.b16 %v651
        %v1883 = vunpack.c.l.b16 %v652
        %v1884 = vunpack.c.h.b16 %v652
        %v1885 = vunpack.c.l.b16 %v653
        %v1886 = vunpack.c.h.b16 %v653
        %v1887 = vunpack.c.l.b16 %v654
        %v1888 = vunpack.c.h.b16 %v654
        %v1889 = vunpack.c.l.b16 %v655
        %v1890 = vunpack.c.h.b16 %v655
        %v1891 = vunpack.c.l.b16 %v656
        %v1892 = vunpack.c.h.b16 %v656
        %v1893 = vunpack.c.l.b16 %v657
        %v1894 = vunpack.c.h.b16 %v657
        %v1895 = vunpack.c.l.b16 %v658
        %v1896 = vunpack.c.h.b16 %v658
        %v1897 = vunpack.c.l.b16 %v659
        %v1898 = vunpack.c.h.b16 %v659
        %v1899 = vunpack.c.l.b16 %v660
        %v1900 = vunpack.c.h.b16 %v660
        %v1901 = vunpack.c.l.b16 %v661
        %v1902 = vunpack.c.h.b16 %v661
        %v1903 = vunpack.c.l.b16 %v662
        %v1904 = vunpack.c.h.b16 %v662
        %v1905 = vunpack.c.l.b16 %v663
        %v1906 = vunpack.c.h.b16 %v663
        %v1907 = vunpack.c.l.b16 %v664
        %v1908 = vunpack.c.h.b16 %v664
        %v1909 = vunpack.c.l.b16 %v665
        %v1910 = vunpack.c.h.b16 %v665
        %v1911 = vunpack.c.l.b16 %v666
        %v1912 = vunpack.c.h.b16 %v666
        %v1913 = vunpack.c.l.b16 %v667
        %v1914 = vunpack.c.h.b16 %v667
        %v1915 = vunpack.c.l.b16 %v668
        %v1916 = vunpack.c.h.b16 %v668
        %v1917 = vunpack.c.l.b16 %v669
        %v1918 = vunpack.c.h.b16 %v669
        %v1919 = vunpack.c.l.b16 %v670
        %v1920 = vunpack.c.h.b16 %v670
        %v1921 = vunpack.c.l.b16 %v671
        %v1922 = vunpack.c.h.b16 %v671
        %v1923 = vunpack.c.l.b16 %v672
        %v1924 = vunpack.c.h.b16 %v672
        %v1925 = vunpack.c.l.b16 %v673
        %v1926 = vunpack.c.h.b16 %v673
        %v1927 = vunpack.c.l.b16 %v674
        %v1928 = vunpack.c.h.b16 %v674
        %v1929 = vunpack.c.l.b16 %v675
        %v1930 = vunpack.c.h.b16 %v675
        %v1931 = vunpack.c.l.b16 %v676
        %v1932 = vunpack.c.h.b16 %v676
        %v1933 = vunpack.c.l.b16 %v677
        %v1934 = vunpack.c.h.b16 %v677
        %v1935 = vunpack.c.l.b16 %v678
        %v1936 = vunpack.c.h.b16 %v678
        %v1937 = vunpack.c.l.b16 %v679
        %v1938 = vunpack.c.h.b16 %v679
        %v1939 = vunpack.c.l.b16 %v680
        %v1940 = vunpack.c.h.b16 %v680
        %v1941 = vunpack.c.l.b16 %v681
        %v1942 = vunpack.c.h.b16 %v681
        %v1943 = vunpack.c.l.b16 %v682
        %v1944 = vunpack.c.h.b16 %v682
        %v1945 = vunpack.c.l.b16 %v683
        %v1946 = vunpack.c.h.b16 %v683
        %v1947 = vunpack.c.l.b16 %v684
        %v1948 = vunpack.c.h.b16 %v684
        %v1949 = vunpack.c.l.b16 %v685
        %v1950 = vunpack.c.h.b16 %v685
        %v1951 = vunpack.c.l.b16 %v686
        %v1952 = vunpack.c.h.b16 %v686
        %v1953 = vunpack.c.l.b16 %v687
        %v1954 = vunpack.c.h.b16 %v687
        %v1955 = vunpack.c.l.b16 %v688
        %v1956 = vunpack.c.h.b16 %v688
        %v1957 = vunpack.c.l.b16 %v689
        %v1958 = vunpack.c.h.b16 %v689
        %v1959 = vunpack.c.l.b16 %v690
        %v1960 = vunpack.c.h.b16 %v690
        %v1961 = vunpack.c.l.b16 %v691
        %v1962 = vunpack.c.h.b16 %v691
        %v1963 = vunpack.c.l.b16 %v692
        %v1964 = vunpack.c.h.b16 %v692
        %v1965 = vunpack.c.l.b16 %v693
        %v1966 = vunpack.c.h.b16 %v693
        %v1967 = vunpack.c.l.b16 %v694
        %v1968 = vunpack.c.h.b16 %v694
        %v1969 = vunpack.c.l.b16 %v695
        %v1970 = vunpack.c.h.b16 %v695
        %v1971 = vunpack.c.l.b16 %v696
        %v1972 = vunpack.c.h.b16 %v696
        %v1973 = vunpack.c.l.b16 %v697
        %v1974 = vunpack.c.h.b16 %v697
        %v1975 = vunpack.c.l.b16 %v698
        %v1976 = vunpack.c.h.b16 %v698
        %v1977 = vunpack.c.l.b16 %v699
        %v1978 = vunpack.c.h.b16 %v699
        %v1979 = vunpack.c.l.b16 %v700
        %v1980 = vunpack.c.h.b16 %v700
        %v1981 = vunpack.c.l.b16 %v701
        %v1982 = vunpack.c.h.b16 %v701
        %v1983 = vunpack.c.l.b16 %v702
        %v1984 = vunpack.c.h.b16 %v702
        %v1985 = vunpack.c.l.b16 %v703
        %v1986 = vunpack.c.h.b16 %v703
        %v1987 = vunpack.c.l.b16 %v704
        %v1988 = vunpack.c.h.b16 %v704
        %v1989 = vunpack.c.l.b16 %v705
        %v1990 = vunpack.c.h.b16 %v705
        %v1991 = vunpack.c.l.b16 %v706
        %v1992 = vunpack.c.h.b16 %v706
        %v1993 = vunpack.c.l.b16 %v707
        %v1994 = vunpack.c.h.b16 %v707
        %v1995 = vunpack.c.l.b16 %v708
        %v1996 = vunpack.c.h.b16 %v708
        %v1997 = vunpack.c.l.b16 %v709
        %v1998 = vunpack.c.h.b16 %v709
        %v1999 = vunpack.c.l.b16 %v710
        %v2000 = vunpack.c.h.b16 %v710
        %v2001 = vunpack.c.l.b16 %v711
        %v2002 = vunpack.c.h.b16 %v711
        %v2003 = vunpack.c.l.b16 %v712
        %v2004 = vunpack.c.h.b16 %v712
        %v2005 = vunpack.c.l.b16 %v713
        %v2006 = vunpack.c.h.b16 %v713
        %v2007 = vunpack.c.l.b16 %v714
        %v2008 = vunpack.c.h.b16 %v714
        %v2009 = vunpack.c.l.b16 %v715
        %v2010 = vunpack.c.h.b16 %v715
        %v2011 = vunpack.c.l.b16 %v716
        %v2012 = vunpack.c.h.b16 %v716
        %v2013 = vunpack.c.l.b16 %v717
        %v2014 = vunpack.c.h.b16 %v717
        %v2015 = vunpack.c.l.b16 %v718
        %v2016 = vunpack.c.h.b16 %v718
        %v2017 = vunpack.c.l.b16 %v719
        %v2018 = vunpack.c.h.b16 %v719
        %v2019 = vunpack.c.l.b16 %v720
        %v2020 = vunpack.c.h.b16 %v720
        %v2021 = vunpack.c.l.b16 %v721
        %v2022 = vunpack.c.h.b16 %v721
        %v2023 = vunpack.c.l.b16 %v722
        %v2024 = vunpack.c.h.b16 %v722
        %v2025 = vunpack.c.l.b16 %v723
        %v2026 = vunpack.c.h.b16 %v723
        %v2027 = vunpack.c.l.b16 %v724
        %v2028 = vunpack.c.h.b16 %v724
        %v2029 = vunpack.c.l.b16 %v725
        %v2030 = vunpack.c.h.b16 %v725
        %v2031 = vunpack.c.l.b16 %v726
        %v2032 = vunpack.c.h.b16 %v726
        %v2033 = vunpack.c.l.b16 %v727
        %v2034 = vunpack.c.h.b16 %v727
        %v2035 = vunpack.c.l.b16 %v728
        %v2036 = vunpack.c.h.b16 %v728
        %v2037 = vunpack.c.l.b16 %v729
        %v2038 = vunpack.c.h.b16 %v729
        %v2039 = vunpack.c.l.b16 %v730
        %v2040 = vunpack.c.h.b16 %v730
        %v2041 = vunpack.c.l.b16 %v731
        %v2042 = vunpack.c.h.b16 %v731
        %v2043 = vunpack.c.l.b16 %v732
        %v2044 = vunpack.c.h.b16 %v732
        %v2045 = vunpack.c.l.b16 %v733
        %v2046 = vunpack.c.h.b16 %v733
        %v2047 = vunpack.c.l.b16 %v734
        %v2048 = vunpack.c.h.b16 %v734
        %v2049 = vunpack.c.l.b16 %v735
        %v2050 = vunpack.c.h.b16 %v735
        %v2051 = vunpack.c.l.b16 %v736
        %v2052 = vunpack.c.h.b16 %v736
        %v2053 = vunpack.c.l.b16 %v737
        %v2054 = vunpack.c.h.b16 %v737
        %v2055 = vunpack.c.l.b16 %v738
        %v2056 = vunpack.c.h.b16 %v738
        %v2057 = vunpack.c.l.b16 %v739
        %v2058 = vunpack.c.h.b16 %v739
        %v2059 = vunpack.c.l.b16 %v740
        %v2060 = vunpack.c.h.b16 %v740
        %v2061 = vunpack.c.l.b16 %v741
        %v2062 = vunpack.c.h.b16 %v741
        %v2063 = vunpack.c.l.b16 %v742
        %v2064 = vunpack.c.h.b16 %v742
        %v2065 = vunpack.c.l.b16 %v743
        %v2066 = vunpack.c.h.b16 %v743
        %v2067 = vunpack.c.l.b16 %v744
        %v2068 = vunpack.c.h.b16 %v744
        %v2069 = vunpack.c.l.b16 %v745
        %v2070 = vunpack.c.h.b16 %v745
        %v2071 = vunpack.c.l.b16 %v746
        %v2072 = vunpack.c.h.b16 %v746
        %v2073 = vunpack.c.l.b16 %v747
        %v2074 = vunpack.c.h.b16 %v747
        %v2075 = vunpack.c.l.b16 %v748
        %v2076 = vunpack.c.h.b16 %v748
        %v2077 = vunpack.c.l.b16 %v749
        %v2078 = vunpack.c.h.b16 %v749
        %v2079 = vunpack.c.l.b16 %v750
        %v2080 = vunpack.c.h.b16 %v750
        %v2081 = vunpack.c.l.b16 %v751
        %v2082 = vunpack.c.h.b16 %v751
        %v2083 = vunpack.c.l.b16 %v752
        %v2084 = vunpack.c.h.b16 %v752
        %v2085 = vunpack.c.l.b16 %v753
        %v2086 = vunpack.c.h.b16 %v753
        %v2087 = vunpack.c.l.b16 %v754
        %v2088 = vunpack.c.h.b16 %v754
        %v2089 = vunpack.c.l.b16 %v755
        %v2090 = vunpack.c.h.b16 %v755
        %v2091 = vunpack.c.l.b16 %v756
        %v2092 = vunpack.c.h.b16 %v756
        %v2093 = vunpack.c.l.b16 %v757
        %v2094 = vunpack.c.h.b16 %v757
        %v2095 = vunpack.c.l.b16 %v758
        %v2096 = vunpack.c.h.b16 %v758
        %v2097 = vunpack.c.l.b16 %v759
        %v2098 = vunpack.c.h.b16 %v759
        %v2099 = vunpack.c.l.b16 %v760
        %v2100 = vunpack.c.h.b16 %v760
        %v2101 = vunpack.c.l.b16 %v761
        %v2102 = vunpack.c.h.b16 %v761
        %v2103 = vunpack.c.l.b16 %v762
        %v2104 = vunpack.c.h.b16 %v762
        %v2105 = vunpack.c.l.b16 %v763
        %v2106 = vunpack.c.h.b16 %v763
        %v2107 = vunpack.c.l.b16 %v764
        %v2108 = vunpack.c.h.b16 %v764
        %v2109 = vunpack.c.l.b16 %v765
        %v2110 = vunpack.c.h.b16 %v765
        %v2111 = vunpack.c.l.b16 %v766
        %v2112 = vunpack.c.h.b16 %v766
        %v2113 = vunpack.c.l.b16 %v767
        %v2114 = vunpack.c.h.b16 %v767
        %v2115 = vunpack.c.l.b16 %v768
        %v2116 = vunpack.c.h.b16 %v768
        %v2117 = vunpack.c.l.b16 %v769
        %v2118 = vunpack.c.h.b16 %v769
        %v2119 = vunpack.c.l.b16 %v770
        %v2120 = vunpack.c.h.b16 %v770
        %v2121 = vunpack.c.l.b16 %v771
        %v2122 = vunpack.c.h.b16 %v771
        %v2123 = vunpack.c.l.b16 %v772
        %v2124 = vunpack.c.h.b16 %v772
        %v2125 = vunpack.c.l.b16 %v773
        %v2126 = vunpack.c.h.b16 %v773
        %v2127 = vunpack.c.l.b16 %v774
        %v2128 = vunpack.c.h.b16 %v774
        %v2129 = vunpack.c.l.b16 %v775
        %v2130 = vunpack.c.h.b16 %v775
        %v2131 = vunpack.c.l.b16 %v776
        %v2132 = vunpack.c.h.b16 %v776
        %v2133 = vunpack.c.l.b16 %v777
        %v2134 = vunpack.c.h.b16 %v777
        %v2135 = vunpack.c.l.b16 %v778
        %v2136 = vunpack.c.h.b16 %v778
        %v2137 = vunpack.c.l.b16 %v779
        %v2138 = vunpack.c.h.b16 %v779
        %v2139 = vunpack.c.l.b16 %v780
        %v2140 = vunpack.c.h.b16 %v780
        %v2141 = vunpack.c.l.b16 %v781
        %v2142 = vunpack.c.h.b16 %v781
        %v2143 = vunpack.c.l.b16 %v782
        %v2144 = vunpack.c.h.b16 %v782
        %v2145 = vunpack.c.l.b16 %v783
        %v2146 = vunpack.c.h.b16 %v783
        %v2147 = vunpack.c.l.b16 %v784
        %v2148 = vunpack.c.h.b16 %v784
        %v2149 = vunpack.c.l.b16 %v785
        %v2150 = vunpack.c.h.b16 %v785
        %v2151 = vunpack.c.l.b16 %v786
        %v2152 = vunpack.c.h.b16 %v786
        %v2153 = vunpack.c.l.b16 %v787
        %v2154 = vunpack.c.h.b16 %v787
        %v2155 = vunpack.c.l.b16 %v788
        %v2156 = vunpack.c.h.b16 %v788
        %v2157 = vunpack.c.l.b16 %v789
        %v2158 = vunpack.c.h.b16 %v789
        %v2159 = vunpack.c.l.b16 %v790
        %v2160 = vunpack.c.h.b16 %v790
        %v2161 = vunpack.c.l.b16 %v791
        %v2162 = vunpack.c.h.b16 %v791
        %v2163 = vunpack.c.l.b16 %v792
        %v2164 = vunpack.c.h.b16 %v792
        %v2165 = vunpack.c.l.b16 %v793
        %v2166 = vunpack.c.h.b16 %v793
        %v2167 = vunpack.c.l.b16 %v794
        %v2168 = vunpack.c.h.b16 %v794
        %v2169 = vunpack.c.l.b16 %v795
        %v2170 = vunpack.c.h.b16 %v795
        %v2171 = vunpack.c.l.b16 %v796
        %v2172 = vunpack.c.h.b16 %v796
        %v2173 = vunpack.c.l.b16 %v797
        %v2174 = vunpack.c.h.b16 %v797
        %v2175 = vunpack.c.l.b16 %v798
        %v2176 = vunpack.c.h.b16 %v798
        %v2177 = vunpack.c.l.b16 %v799
        %v2178 = vunpack.c.h.b16 %v799
        %v2179 = vunpack.c.l.b16 %v800
        %v2180 = vunpack.c.h.b16 %v800
        %v2181 = vunpack.c.l.b16 %v801
        %v2182 = vunpack.c.h.b16 %v801
        %v2183 = vunpack.c.l.b16 %v802
        %v2184 = vunpack.c.h.b16 %v802
        %v2185 = vunpack.c.l.b16 %v803
        %v2186 = vunpack.c.h.b16 %v803
        %v2187 = vunpack.c.l.b16 %v804
        %v2188 = vunpack.c.h.b16 %v804
        %v2189 = vunpack.c.l.b16 %v805
        %v2190 = vunpack.c.h.b16 %v805
        %v2191 = vunpack.c.l.b16 %v806
        %v2192 = vunpack.c.h.b16 %v806
        %v2193 = vunpack.c.l.b16 %v807
        %v2194 = vunpack.c.h.b16 %v807
        %v2195 = vunpack.c.l.b16 %v808
        %v2196 = vunpack.c.h.b16 %v808
        %v2197 = vunpack.c.l.b16 %v809
        %v2198 = vunpack.c.h.b16 %v809
        %v2199 = vunpack.c.l.b16 %v810
        %v2200 = vunpack.c.h.b16 %v810
        %v2201 = vunpack.c.l.b16 %v811
        %v2202 = vunpack.c.h.b16 %v811
        %v2203 = vunpack.c.l.b16 %v812
        %v2204 = vunpack.c.h.b16 %v812
        %v2205 = vpack.c.b16 %v1359, %v1341
        %v2206 = vpack.c.b16 %v1360, %v1342
        %v2207 = vpack.c.b16 %v1361, %v1343
        %v2208 = vpack.c.b16 %v1362, %v1344
        %v2209 = vpack.c.b16 %v1363, %v1345
        %v2210 = vpack.c.b16 %v1364, %v1346
        %v2211 = vpack.c.b16 %v1365, %v1347
        %v2212 = vpack.c.b16 %v1366, %v1348
        %v2213 = vpack.c.b16 %v1367, %v1349
        %v2214 = vpack.c.b16 %v1368, %v1350
        %v2215 = vpack.c.b16 %v1369, %v1351
        %v2216 = vpack.c.b16 %v1370, %v1352
        %v2217 = vpack.c.b16 %v1371, %v1353
        %v2218 = vpack.c.b16 %v1372, %v1354
        %v2219 = vpack.c.b16 %v1373, %v1355
        %v2220 = vpack.c.b16 %v1374, %v1356
        %v2221 = vpack.c.b16 %v1375, %v1357
        %v2222 = vpack.c.b16 %v1376, %v1358
        %v2223 = vpack.c.b16 %v1395, %v1377
        %v2224 = vpack.c.b16 %v1396, %v1378
        %v2225 = vpack.c.b16 %v1397, %v1379
        %v2226 = vpack.c.b16 %v1398, %v1380
        %v2227 = vpack.c.b16 %v1399, %v1381
        %v2228 = vpack.c.b16 %v1400, %v1382
        %v2229 = vpack.c.b16 %v1401, %v1383
        %v2230 = vpack.c.b16 %v1402, %v1384
        %v2231 = vpack.c.b16 %v1403, %v1385
        %v2232 = vpack.c.b16 %v1404, %v1386
        %v2233 = vpack.c.b16 %v1405, %v1387
        %v2234 = vpack.c.b16 %v1406, %v1388
        %v2235 = vpack.c.b16 %v1407, %v1389
        %v2236 = vpack.c.b16 %v1408, %v1390
        %v2237 = vpack.c.b16 %v1409, %v1391
        %v2238 = vpack.c.b16 %v1410, %v1392
        %v2239 = vpack.c.b16 %v1411, %v1393
        %v2240 = vpack.c.b16 %v1412, %v1394
        %v2241 = vpack.c.b16 %v1431, %v1413
        %v2242 = vpack.c.b16 %v1432, %v1414
        %v2243 = vpack.c.b16 %v1433, %v1415
        %v2244 = vpack.c.b16 %v1434, %v1416
        %v2245 = vpack.c.b16 %v1435, %v1417
        %v2246 = vpack.c.b16 %v1436, %v1418
        %v2247 = vpack.c.b16 %v1437, %v1419
        %v2248 = vpack.c.b16 %v1438, %v1420
        %v2249 = vpack.c.b16 %v1439, %v1421
        %v2250 = vpack.c.b16 %v1440, %v1422
        %v2251 = vpack.c.b16 %v1441, %v1423
        %v2252 = vpack.c.b16 %v1442, %v1424
        %v2253 = vpack.c.b16 %v1443, %v1425
        %v2254 = vpack.c.b16 %v1444, %v1426
        %v2255 = vpack.c.b16 %v1445, %v1427
        %v2256 = vpack.c.b16 %v1446, %v1428
        %v2257 = vpack.c.b16 %v1447, %v1429
        %v2258 = vpack.c.b16 %v1448, %v1430
        %v2259 = vpack.c.b16 %v1467, %v1449
        %v2260 = vpack.c.b16 %v1468, %v1450
        %v2261 = vpack.c.b16 %v1469, %v1451
        %v2262 = vpack.c.b16 %v1470, %v1452
        %v2263 = vpack.c.b16 %v1471, %v1453
        %v2264 = vpack.c.b16 %v1472, %v1454
        %v2265 = vpack.c.b16 %v1473, %v1455
        %v2266 = vpack.c.b16 %v1474, %v1456
        %v2267 = vpack.c.b16 %v1475, %v1457
        %v2268 = vpack.c.b16 %v1476, %v1458
        %v2269 = vpack.c.b16 %v1477, %v1459
        %v2270 = vpack.c.b16 %v1478, %v1460
        %v2271 = vpack.c.b16 %v1479, %v1461
        %v2272 = vpack.c.b16 %v1480, %v1462
        %v2273 = vpack.c.b16 %v1481, %v1463
        %v2274 = vpack.c.b16 %v1482, %v1464
        %v2275 = vpack.c.b16 %v1483, %v1465
        %v2276 = vpack.c.b16 %v1484, %v1466
        %v2277 = vpack.c.b16 %v1503, %v1485
        %v2278 = vpack.c.b16 %v1504, %v1486
        %v2279 = vpack.c.b16 %v1505, %v1487
        %v2280 = vpack.c.b16 %v1506, %v1488
        %v2281 = vpack.c.b16 %v1507, %v1489
        %v2282 = vpack.c.b16 %v1508, %v1490
        %v2283 = vpack.c.b16 %v1509, %v1491
        %v2284 = vpack.c.b16 %v1510, %v1492
        %v2285 = vpack.c.b16 %v1511, %v1493
        %v2286 = vpack.c.b16 %v1512, %v1494
        %v2287 = vpack.c.b16 %v1513, %v1495
        %v2288 = vpack.c.b16 %v1514, %v1496
        %v2289 = vpack.c.b16 %v1515, %v1497
        %v2290 = vpack.c.b16 %v1516, %v1498
        %v2291 = vpack.c.b16 %v1517, %v1499
        %v2292 = vpack.c.b16 %v1518, %v1500
        %v2293 = vpack.c.b16 %v1519, %v1501
        %v2294 = vpack.c.b16 %v1520, %v1502
        %v2295 = vpack.c.b16 %v1539, %v1521
        %v2296 = vpack.c.b16 %v1540, %v1522
        %v2297 = vpack.c.b16 %v1541, %v1523
        %v2298 = vpack.c.b16 %v1542, %v1524
        %v2299 = vpack.c.b16 %v1543, %v1525
        %v2300 = vpack.c.b16 %v1544, %v1526
        %v2301 = vpack.c.b16 %v1545, %v1527
        %v2302 = vpack.c.b16 %v1546, %v1528
        %v2303 = vpack.c.b16 %v1547, %v1529
        %v2304 = vpack.c.b16 %v1548, %v1530
        %v2305 = vpack.c.b16 %v1549, %v1531
        %v2306 = vpack.c.b16 %v1550, %v1532
        %v2307 = vpack.c.b16 %v1551, %v1533
        %v2308 = vpack.c.b16 %v1552, %v1534
        %v2309 = vpack.c.b16 %v1553, %v1535
        %v2310 = vpack.c.b16 %v1554, %v1536
        %v2311 = vpack.c.b16 %v1555, %v1537
        %v2312 = vpack.c.b16 %v1556, %v1538
        %v2313 = vpack.c.b16 %v1575, %v1557
        %v2314 = vpack.c.b16 %v1576, %v1558
        %v2315 = vpack.c.b16 %v1577, %v1559
        %v2316 = vpack.c.b16 %v1578, %v1560
        %v2317 = vpack.c.b16 %v1579, %v1561
        %v2318 = vpack.c.b16 %v1580, %v1562
        %v2319 = vpack.c.b16 %v1581, %v1563
        %v2320 = vpack.c.b16 %v1582, %v1564
        %v2321 = vpack.c.b16 %v1583, %v1565
        %v2322 = vpack.c.b16 %v1584, %v1566
        %v2323 = vpack.c.b16 %v1585, %v1567
        %v2324 = vpack.c.b16 %v1586, %v1568
        %v2325 = vpack.c.b16 %v1587, %v1569
        %v2326 = vpack.c.b16 %v1588, %v1570
        %v2327 = vpack.c.b16 %v1589, %v1571
        %v2328 = vpack.c.b16 %v1590, %v1572
        %v2329 = vpack.c.b16 %v1591, %v1573
        %v2330 = vpack.c.b16 %v1592, %v1574
        %v2331 = vpack.c.b16 %v1611, %v1593
        %v2332 = vpack.c.b16 %v1612, %v1594
        %v2333 = vpack.c.b16 %v1613, %v1595
        %v2334 = vpack.c.b16 %v1614, %v1596
        %v2335 = vpack.c.b16 %v1615, %v1597
        %v2336 = vpack.c.b16 %v1616, %v1598
        %v2337 = vpack.c.b16 %v1617, %v1599
        %v2338 = vpack.c.b16 %v1618, %v1600
        %v2339 = vpack.c.b16 %v1619, %v1601
        %v2340 = vpack.c.b16 %v1620, %v1602
        %v2341 = vpack.c.b16 %v1621, %v1603
        %v2342 = vpack.c.b16 %v1622, %v1604
        %v2343 = vpack.c.b16 %v1623, %v1605
        %v2344 = vpack.c.b16 %v1624, %v1606
        %v2345 = vpack.c.b16 %v1625, %v1607
        %v2346 = vpack.c.b16 %v1626, %v1608
        %v2347 = vpack.c.b16 %v1627, %v1609
        %v2348 = vpack.c.b16 %v1628, %v1610
        %v2349 = vpack.c.b16 %v1647, %v1629
        %v2350 = vpack.c.b16 %v1648, %v1630
        %v2351 = vpack.c.b16 %v1649, %v1631
        %v2352 = vpack.c.b16 %v1650, %v1632
        %v2353 = vpack.c.b16 %v1651, %v1633
        %v2354 = vpack.c.b16 %v1652, %v1634
        %v2355 = vpack.c.b16 %v1653, %v1635
        %v2356 = vpack.c.b16 %v1654, %v1636
        %v2357 = vpack.c.b16 %v1655, %v1637
        %v2358 = vpack.c.b16 %v1656, %v1638
        %v2359 = vpack.c.b16 %v1657, %v1639
        %v2360 = vpack.c.b16 %v1658, %v1640
        %v2361 = vpack.c.b16 %v1659, %v1641
        %v2362 = vpack.c.b16 %v1660, %v1642
        %v2363 = vpack.c.b16 %v1661, %v1643
        %v2364 = vpack.c.b16 %v1662, %v1644
        %v2365 = vpack.c.b16 %v1663, %v1645
        %v2366 = vpack.c.b16 %v1664, %v1646
        %v2367 = vpack.c.b16 %v1683, %v1665
        %v2368 = vpack.c.b16 %v1684, %v1666
        %v2369 = vpack.c.b16 %v1685, %v1667
        %v2370 = vpack.c.b16 %v1686, %v1668
        %v2371 = vpack.c.b16 %v1687, %v1669
        %v2372 = vpack.c.b16 %v1688, %v1670
        %v2373 = vpack.c.b16 %v1689, %v1671
        %v2374 = vpack.c.b16 %v1690, %v1672
        %v2375 = vpack.c.b16 %v1691, %v1673
        %v2376 = vpack.c.b16 %v1692, %v1674
        %v2377 = vpack.c.b16 %v1693, %v1675
        %v2378 = vpack.c.b16 %v1694, %v1676
        %v2379 = vpack.c.b16 %v1695, %v1677
        %v2380 = vpack.c.b16 %v1696, %v1678
        %v2381 = vpack.c.b16 %v1697, %v1679
        %v2382 = vpack.c.b16 %v1698, %v1680
        %v2383 = vpack.c.b16 %v1699, %v1681
        %v2384 = vpack.c.b16 %v1700, %v1682
        %v2385 = vpack.c.b16 %v1719, %v1701
        %v2386 = vpack.c.b16 %v1720, %v1702
        %v2387 = vpack.c.b16 %v1721, %v1703
        %v2388 = vpack.c.b16 %v1722, %v1704
        %v2389 = vpack.c.b16 %v1723, %v1705
        %v2390 = vpack.c.b16 %v1724, %v1706
        %v2391 = vpack.c.b16 %v1725, %v1707
        %v2392 = vpack.c.b16 %v1726, %v1708
        %v2393 = vpack.c.b16 %v1727, %v1709
        %v2394 = vpack.c.b16 %v1728, %v1710
        %v2395 = vpack.c.b16 %v1729, %v1711
        %v2396 = vpack.c.b16 %v1730, %v1712
        %v2397 = vpack.c.b16 %v1731, %v1713
        %v2398 = vpack.c.b16 %v1732, %v1714
        %v2399 = vpack.c.b16 %v1733, %v1715
        %v2400 = vpack.c.b16 %v1734, %v1716
        %v2401 = vpack.c.b16 %v1735, %v1717
        %v2402 = vpack.c.b16 %v1736, %v1718
        %v2403 = vpack.c.b16 %v1755, %v1737
        %v2404 = vpack.c.b16 %v1756, %v1738
        %v2405 = vpack.c.b16 %v1757, %v1739
        %v2406 = vpack.c.b16 %v1758, %v1740
        %v2407 = vpack.c.b16 %v1759, %v1741
        %v2408 = vpack.c.b16 %v1760, %v1742
        %v2409 = vpack.c.b16 %v1761, %v1743
        %v2410 = vpack.c.b16 %v1762, %v1744
        %v2411 = vpack.c.b16 %v1763, %v1745
        %v2412 = vpack.c.b16 %v1764, %v1746
        %v2413 = vpack.c.b16 %v1765, %v1747
        %v2414 = vpack.c.b16 %v1766, %v1748
        %v2415 = vpack.c.b16 %v1767, %v1749
        %v2416 = vpack.c.b16 %v1768, %v1750
        %v2417 = vpack.c.b16 %v1769, %v1751
        %v2418 = vpack.c.b16 %v1770, %v1752
        %v2419 = vpack.c.b16 %v1771, %v1753
        %v2420 = vpack.c.b16 %v1772, %v1754
        %v2421 = vpack.c.b16 %v1791, %v1773
        %v2422 = vpack.c.b16 %v1792, %v1774
        %v2423 = vpack.c.b16 %v1793, %v1775
        %v2424 = vpack.c.b16 %v1794, %v1776
        %v2425 = vpack.c.b16 %v1795, %v1777
        %v2426 = vpack.c.b16 %v1796, %v1778
        %v2427 = vpack.c.b16 %v1797, %v1779
        %v2428 = vpack.c.b16 %v1798, %v1780
        %v2429 = vpack.c.b16 %v1799, %v1781
        %v2430 = vpack.c.b16 %v1800, %v1782
        %v2431 = vpack.c.b16 %v1801, %v1783
        %v2432 = vpack.c.b16 %v1802, %v1784
        %v2433 = vpack.c.b16 %v1803, %v1785
        %v2434 = vpack.c.b16 %v1804, %v1786
        %v2435 = vpack.c.b16 %v1805, %v1787
        %v2436 = vpack.c.b16 %v1806, %v1788
        %v2437 = vpack.c.b16 %v1807, %v1789
        %v2438 = vpack.c.b16 %v1808, %v1790
        %v2439 = vpack.c.b16 %v1827, %v1809
        %v2440 = vpack.c.b16 %v1828, %v1810
        %v2441 = vpack.c.b16 %v1829, %v1811
        %v2442 = vpack.c.b16 %v1830, %v1812
        %v2443 = vpack.c.b16 %v1831, %v1813
        %v2444 = vpack.c.b16 %v1832, %v1814
        %v2445 = vpack.c.b16 %v1833, %v1815
        %v2446 = vpack.c.b16 %v1834, %v1816
        %v2447 = vpack.c.b16 %v1835, %v1817
        %v2448 = vpack.c.b16 %v1836, %v1818
        %v2449 = vpack.c.b16 %v1837, %v1819
        %v2450 = vpack.c.b16 %v1838, %v1820
        %v2451 = vpack.c.b16 %v1839, %v1821
        %v2452 = vpack.c.b16 %v1840, %v1822
        %v2453 = vpack.c.b16 %v1841, %v1823
        %v2454 = vpack.c.b16 %v1842, %v1824
        %v2455 = vpack.c.b16 %v1843, %v1825
        %v2456 = vpack.c.b16 %v1844, %v1826
        %v2457 = vpack.c.b16 %v1863, %v1845
        %v2458 = vpack.c.b16 %v1864, %v1846
        %v2459 = vpack.c.b16 %v1865, %v1847
        %v2460 = vpack.c.b16 %v1866, %v1848
        %v2461 = vpack.c.b16 %v1867, %v1849
        %v2462 = vpack.c.b16 %v1868, %v1850
        %v2463 = vpack.c.b16 %v1869, %v1851
        %v2464 = vpack.c.b16 %v1870, %v1852
        %v2465 = vpack.c.b16 %v1871, %v1853
        %v2466 = vpack.c.b16 %v1872, %v1854
        %v2467 = vpack.c.b16 %v1873, %v1855
        %v2468 = vpack.c.b16 %v1874, %v1856
        %v2469 = vpack.c.b16 %v1875, %v1857
        %v2470 = vpack.c.b16 %v1876, %v1858
        %v2471 = vpack.c.b16 %v1877, %v1859
        %v2472 = vpack.c.b16 %v1878, %v1860
        %v2473 = vpack.c.b16 %v1879, %v1861
        %v2474 = vpack.c.b16 %v1880, %v1862
        %v2475 = vpack.c.b16 %v1899, %v1881
        %v2476 = vpack.c.b16 %v1900, %v1882
        %v2477 = vpack.c.b16 %v1901, %v1883
        %v2478 = vpack.c.b16 %v1902, %v1884
        %v2479 = vpack.c.b16 %v1903, %v1885
        %v2480 = vpack.c.b16 %v1904, %v1886
        %v2481 = vpack.c.b16 %v1905, %v1887
        %v2482 = vpack.c.b16 %v1906, %v1888
        %v2483 = vpack.c.b16 %v1907, %v1889
        %v2484 = vpack.c.b16 %v1908, %v1890
        %v2485 = vpack.c.b16 %v1909, %v1891
        %v2486 = vpack.c.b16 %v1910, %v1892
        %v2487 = vpack.c.b16 %v1911, %v1893
        %v2488 = vpack.c.b16 %v1912, %v1894
        %v2489 = vpack.c.b16 %v1913, %v1895
        %v2490 = vpack.c.b16 %v1914, %v1896
        %v2491 = vpack.c.b16 %v1915, %v1897
        %v2492 = vpack.c.b16 %v1916, %v1898
        %v2493 = vpack.c.b16 %v1935, %v1917
        %v2494 = vpack.c.b16 %v1936, %v1918
        %v2495 = vpack.c.b16 %v1937, %v1919
        %v2496 = vpack.c.b16 %v1938, %v1920
        %v2497 = vpack.c.b16 %v1939, %v1921
        %v2498 = vpack.c.b16 %v1940, %v1922
        %v2499 = vpack.c.b16 %v1941, %v1923
        %v2500 = vpack.c.b16 %v1942, %v1924
        %v2501 = vpack.c.b16 %v1943, %v1925
        %v2502 = vpack.c.b16 %v1944, %v1926
        %v2503 = vpack.c.b16 %v1945, %v1927
        %v2504 = vpack.c.b16 %v1946, %v1928
        %v2505 = vpack.c.b16 %v1947, %v1929
        %v2506 = vpack.c.b16 %v1948, %v1930
        %v2507 = vpack.c.b16 %v1949, %v1931
        %v2508 = vpack.c.b16 %v1950, %v1932
        %v2509 = vpack.c.b16 %v1951, %v1933
        %v2510 = vpack.c.b16 %v1952, %v1934
        %v2511 = vpack.c.b16 %v1971, %v1953
        %v2512 = vpack.c.b16 %v1972, %v1954
        %v2513 = vpack.c.b16 %v1973, %v1955
        %v2514 = vpack.c.b16 %v1974, %v1956
        %v2515 = vpack.c.b16 %v1975, %v1957
        %v2516 = vpack.c.b16 %v1976, %v1958
        %v2517 = vpack.c.b16 %v1977, %v1959
        %v2518 = vpack.c.b16 %v1978, %v1960
        %v2519 = vpack.c.b16 %v1979, %v1961
        %v2520 = vpack.c.b16 %v1980, %v1962
        %v2521 = vpack.c.b16 %v1981, %v1963
        %v2522 = vpack.c.b16 %v1982, %v1964
        %v2523 = vpack.c.b16 %v1983, %v1965
        %v2524 = vpack.c.b16 %v1984, %v1966
        %v2525 = vpack.c.b16 %v1985, %v1967
        %v2526 = vpack.c.b16 %v1986, %v1968
        %v2527 = vpack.c.b16 %v1987, %v1969
        %v2528 = vpack.c.b16 %v1988, %v1970
        %v2529 = vpack.c.b16 %v2007, %v1989
        %v2530 = vpack.c.b16 %v2008, %v1990
        %v2531 = vpack.c.b16 %v2009, %v1991
        %v2532 = vpack.c.b16 %v2010, %v1992
        %v2533 = vpack.c.b16 %v2011, %v1993
        %v2534 = vpack.c.b16 %v2012, %v1994
        %v2535 = vpack.c.b16 %v2013, %v1995
        %v2536 = vpack.c.b16 %v2014, %v1996
        %v2537 = vpack.c.b16 %v2015, %v1997
        %v2538 = vpack.c.b16 %v2016, %v1998
        %v2539 = vpack.c.b16 %v2017, %v1999
        %v2540 = vpack.c.b16 %v2018, %v2000
        %v2541 = vpack.c.b16 %v2019, %v2001
        %v2542 = vpack.c.b16 %v2020, %v2002
        %v2543 = vpack.c.b16 %v2021, %v2003
        %v2544 = vpack.c.b16 %v2022, %v2004
        %v2545 = vpack.c.b16 %v2023, %v2005
        %v2546 = vpack.c.b16 %v2024, %v2006
        %v2547 = vpack.c.b16 %v2043, %v2025
        %v2548 = vpack.c.b16 %v2044, %v2026
        %v2549 = vpack.c.b16 %v2045, %v2027
        %v2550 = vpack.c.b16 %v2046, %v2028
        %v2551 = vpack.c.b16 %v2047, %v2029
        %v2552 = vpack.c.b16 %v2048, %v2030
        %v2553 = vpack.c.b16 %v2049, %v2031
        %v2554 = vpack.c.b16 %v2050, %v2032
        %v2555 = vpack.c.b16 %v2051, %v2033
        %v2556 = vpack.c.b16 %v2052, %v2034
        %v2557 = vpack.c.b16 %v2053, %v2035
        %v2558 = vpack.c.b16 %v2054, %v2036
        %v2559 = vpack.c.b16 %v2055, %v2037
        %v2560 = vpack.c.b16 %v2056, %v2038
        %v2561 = vpack.c.b16 %v2057, %v2039
        %v2562 = vpack.c.b16 %v2058, %v2040
        %v2563 = vpack.c.b16 %v2059, %v2041
        %v2564 = vpack.c.b16 %v2060, %v2042
        %v2565 = vpack.c.b16 %v2079, %v2061
        %v2566 = vpack.c.b16 %v2080, %v2062
        %v2567 = vpack.c.b16 %v2081, %v2063
        %v2568 = vpack.c.b16 %v2082, %v2064
        %v2569 = vpack.c.b16 %v2083, %v2065
        %v2570 = vpack.c.b16 %v2084, %v2066
        %v2571 = vpack.c.b16 %v2085, %v2067
        %v2572 = vpack.c.b16 %v2086, %v2068
        %v2573 = vpack.c.b16 %v2087, %v2069
        %v2574 = vpack.c.b16 %v2088, %v2070
        %v2575 = vpack.c.b16 %v2089, %v2071
        %v2576 = vpack.c.b16 %v2090, %v2072
        %v2577 = vpack.c.b16 %v2091, %v2073
        %v2578 = vpack.c.b16 %v2092, %v2074
        %v2579 = vpack.c.b16 %v2093, %v2075
        %v2580 = vpack.c.b16 %v2094, %v2076
        %v2581 = vpack.c.b16 %v2095, %v2077
        %v2582 = vpack.c.b16 %v2096, %v2078
        %v2583 = vpack.c.b16 %v2115, %v2097
        %v2584 = vpack.c.b16 %v2116, %v2098
        %v2585 = vpack.c.b16 %v2117, %v2099
        %v2586 = vpack.c.b16 %v2118, %v2100
        %v2587 = vpack.c.b16 %v2119, %v2101
        %v2588 = vpack.c.b16 %v2120, %v2102
        %v2589 = vpack.c.b16 %v2121, %v2103
        %v2590 = vpack.c.b16 %v2122, %v2104
        %v2591 = vpack.c.b16 %v2123, %v2105
        %v2592 = vpack.c.b16 %v2124, %v2106
        %v2593 = vpack.c.b16 %v2125, %v2107
        %v2594 = vpack.c.b16 %v2126, %v2108
        %v2595 = vpack.c.b16 %v2127, %v2109
        %v2596 = vpack.c.b16 %v2128, %v2110
        %v2597 = vpack.c.b16 %v2129, %v2111
        %v2598 = vpack.c.b16 %v2130, %v2112
        %v2599 = vpack.c.b16 %v2131, %v2113
        %v2600 = vpack.c.b16 %v2132, %v2114
        %v2601 = vpack.c.b16 %v2151, %v2133
        %v2602 = vpack.c.b16 %v2152, %v2134
        %v2603 = vpack.c.b16 %v2153, %v2135
        %v2604 = vpack.c.b16 %v2154, %v2136
        %v2605 = vpack.c.b16 %v2155, %v2137
        %v2606 = vpack.c.b16 %v2156, %v2138
        %v2607 = vpack.c.b16 %v2157, %v2139
        %v2608 = vpack.c.b16 %v2158, %v2140
        %v2609 = vpack.c.b16 %v2159, %v2141
        %v2610 = vpack.c.b16 %v2160, %v2142
        %v2611 = vpack.c.b16 %v2161, %v2143
        %v2612 = vpack.c.b16 %v2162, %v2144
        %v2613 = vpack.c.b16 %v2163, %v2145
        %v2614 = vpack.c.b16 %v2164, %v2146
        %v2615 = vpack.c.b16 %v2165, %v2147
        %v2616 = vpack.c.b16 %v2166, %v2148
        %v2617 = vpack.c.b16 %v2167, %v2149
        %v2618 = vpack.c.b16 %v2168, %v2150
        %v2619 = vpack.c.b16 %v2187, %v2169
        %v2620 = vpack.c.b16 %v2188, %v2170
        %v2621 = vpack.c.b16 %v2189, %v2171
        %v2622 = vpack.c.b16 %v2190, %v2172
        %v2623 = vpack.c.b16 %v2191, %v2173
        %v2624 = vpack.c.b16 %v2192, %v2174
        %v2625 = vpack.c.b16 %v2193, %v2175
        %v2626 = vpack.c.b16 %v2194, %v2176
        %v2627 = vpack.c.b16 %v2195, %v2177
        %v2628 = vpack.c.b16 %v2196, %v2178
        %v2629 = vpack.c.b16 %v2197, %v2179
        %v2630 = vpack.c.b16 %v2198, %v2180
        %v2631 = vpack.c.b16 %v2199, %v2181
        %v2632 = vpack.c.b16 %v2200, %v2182
        %v2633 = vpack.c.b16 %v2201, %v2183
        %v2634 = vpack.c.b16 %v2202, %v2184
        %v2635 = vpack.c.b16 %v2203, %v2185
        %v2636 = vpack.c.b16 %v2204, %v2186
        %3069 = vmatprep.subr.bf16.mxu0 %v2332
        %3070 = vmatpush1.bf16.msra.mxu0 %v2331
        %3071 = vmatprep.subr.bf16.mxu0 %v2314
        %3072 = vmatpush1.bf16.msra.mxu0 %v2313
        %3073 = vmatprep.subr.bf16.mxu0 %v2296
        %3074 = vmatpush1.bf16.msra.mxu0 %v2295
        %3075 = vmatprep.subr.bf16.mxu0 %v2278
        %3076 = vmatpush1.bf16.msra.mxu0 %v2277
        %3077 = vmatprep.subr.bf16.mxu0 %v2260
        %3078 = vmatpush1.bf16.msra.mxu0 %v2259
        %3079 = vmatprep.subr.bf16.mxu0 %v2242
        %3080 = vmatpush1.bf16.msra.mxu0 %v2241
        %3081 = vmatprep.subr.bf16.mxu0 %v2224
        %3082 = vmatpush1.bf16.msra.mxu0 %v2223
        %3083 = vmatprep.subr.bf16.mxu0 %v2206
        %3084 = vmatpush1.bf16.msra.mxu0 %v2205
        %3085 = vmatprep.subr.bf16.mxu0 %v2476
        %3086 = vmatpush2.bf16.msra.mxu0 %v2475
        %3087 = vmatprep.subr.bf16.mxu0 %v2458
        %3088 = vmatpush2.bf16.msra.mxu0 %v2457
        %3089 = vmatprep.subr.bf16.mxu0 %v2440
        %3090 = vmatpush2.bf16.msra.mxu0 %v2439
        %3091 = vmatprep.subr.bf16.mxu0 %v2422
        %3092 = vmatpush2.bf16.msra.mxu0 %v2421
        %3093 = vmatprep.subr.bf16.mxu0 %v2404
        %3094 = vmatpush2.bf16.msra.mxu0 %v2403
        %3095 = vmatprep.subr.bf16.mxu0 %v2386
        %3096 = vmatpush2.bf16.msra.mxu0 %v2385
        %3097 = vmatprep.subr.bf16.mxu0 %v2368
        %3098 = vmatpush2.bf16.msra.mxu0 %v2367
        %3099 = vmatprep.subr.bf16.mxu0 %v2350
        %3100 = vmatpush2.bf16.msra.mxu0 %v2349
        %3101 = vmatprep.mubr.bf16.mxu0 %v379
        %3102 = vmatmul.mubr.bf16.gmra.mxu0 %v378
        %v3103 = vpop.f32.mrf.mxu0
        %v3104 = vadd.f32 %v822, %v3103
        %v3105 = vpop.f32.mrf.mxu0
        %v3106 = vadd.f32 %v826, %v3105
        %v3107 = vpop.f32.mrf.mxu0
        %v3108 = vpop.f32.mrf.mxu0
        %3109 = vdwg.mxu0
        %3110 = vmatprep.subr.bf16.mxu0 %v2620
        %3111 = vmatpush1.bf16.msra.mxu0 %v2619
        %3112 = vmatprep.subr.bf16.mxu0 %v2602
        %3113 = vmatpush1.bf16.msra.mxu0 %v2601
        %3114 = vmatprep.subr.bf16.mxu0 %v2584
        %3115 = vmatpush1.bf16.msra.mxu0 %v2583
        %3116 = vmatprep.subr.bf16.mxu0 %v2566
        %3117 = vmatpush1.bf16.msra.mxu0 %v2565
        %3118 = vmatprep.subr.bf16.mxu0 %v2548
        %3119 = vmatpush1.bf16.msra.mxu0 %v2547
        %3120 = vmatprep.subr.bf16.mxu0 %v2530
        %3121 = vmatpush1.bf16.msra.mxu0 %v2529
        %3122 = vmatprep.subr.bf16.mxu0 %v2512
        %3123 = vmatpush1.bf16.msra.mxu0 %v2511
        %3124 = vmatprep.subr.bf16.mxu0 %v2494
        %3125 = vmatpush1.bf16.msra.mxu0 %v2493
        %3126 = vmatprep.subr.bf16.mxu0 0
        %3127 = vmatpush2.bf16.msra.mxu0 0
        %3128 = vmatprep.subr.bf16.mxu0 0
        %3129 = vmatpush2.bf16.msra.mxu0 0
        %3130 = vmatprep.subr.bf16.mxu0 0
        %3131 = vmatpush2.bf16.msra.mxu0 0
        %3132 = vmatprep.subr.bf16.mxu0 0
        %3133 = vmatpush2.bf16.msra.mxu0 0
        %3134 = vmatprep.subr.bf16.mxu0 0
        %3135 = vmatpush2.bf16.msra.mxu0 0
        %3136 = vmatprep.subr.bf16.mxu0 0
        %3137 = vmatpush2.bf16.msra.mxu0 0
        %3138 = vmatprep.subr.bf16.mxu0 0
        %3139 = vmatpush2.bf16.msra.mxu0 0
        %3140 = vmatprep.subr.bf16.mxu0 0
        %3141 = vmatpush2.bf16.msra.mxu0 0
        %3142 = vmatprep.mubr.bf16.mxu0 0
        %3143 = vmatmul.mubr.bf16.gmra.mxu0 %v380
        %v3144 = vpop.f32.mrf.mxu0
        %v3145 = vadd.f32 %v3104, %v3144
        %v3146 = vpop.f32.mrf.mxu0
        %v3147 = vadd.f32 %v3106, %v3146
        %v3148 = vpop.f32.mrf.mxu0
        %v3149 = vpop.f32.mrf.mxu0
        %3150 = vdwg.mxu0
        %3151 = vmatprep.subr.bf16.mxu0 %v2334
        %3152 = vmatpush1.bf16.msra.mxu0 %v2333
        %3153 = vmatprep.subr.bf16.mxu0 %v2316
        %3154 = vmatpush1.bf16.msra.mxu0 %v2315
        %3155 = vmatprep.subr.bf16.mxu0 %v2298
        %3156 = vmatpush1.bf16.msra.mxu0 %v2297
        %3157 = vmatprep.subr.bf16.mxu0 %v2280
        %3158 = vmatpush1.bf16.msra.mxu0 %v2279
        %3159 = vmatprep.subr.bf16.mxu0 %v2262
        %3160 = vmatpush1.bf16.msra.mxu0 %v2261
        %3161 = vmatprep.subr.bf16.mxu0 %v2244
        %3162 = vmatpush1.bf16.msra.mxu0 %v2243
        %3163 = vmatprep.subr.bf16.mxu0 %v2226
        %3164 = vmatpush1.bf16.msra.mxu0 %v2225
        %3165 = vmatprep.subr.bf16.mxu0 %v2208
        %3166 = vmatpush1.bf16.msra.mxu0 %v2207
        %3167 = vmatprep.subr.bf16.mxu0 %v2478
        %3168 = vmatpush2.bf16.msra.mxu0 %v2477
        %3169 = vmatprep.subr.bf16.mxu0 %v2460
        %3170 = vmatpush2.bf16.msra.mxu0 %v2459
        %3171 = vmatprep.subr.bf16.mxu0 %v2442
        %3172 = vmatpush2.bf16.msra.mxu0 %v2441
        %3173 = vmatprep.subr.bf16.mxu0 %v2424
        %3174 = vmatpush2.bf16.msra.mxu0 %v2423
        %3175 = vmatprep.subr.bf16.mxu0 %v2406
        %3176 = vmatpush2.bf16.msra.mxu0 %v2405
        %3177 = vmatprep.subr.bf16.mxu0 %v2388
        %3178 = vmatpush2.bf16.msra.mxu0 %v2387
        %3179 = vmatprep.subr.bf16.mxu0 %v2370
        %3180 = vmatpush2.bf16.msra.mxu0 %v2369
        %3181 = vmatprep.subr.bf16.mxu0 %v2352
        %3182 = vmatpush2.bf16.msra.mxu0 %v2351
        %3183 = vmatprep.mubr.bf16.mxu0 %v379
        %3184 = vmatmul.mubr.bf16.gmra.mxu0 %v378
        %v3185 = vpop.f32.mrf.mxu0
        %v3186 = vadd.f32 %v830, %v3185
        %v3187 = vpop.f32.mrf.mxu0
        %v3188 = vadd.f32 %v834, %v3187
        %v3189 = vpop.f32.mrf.mxu0
        %v3190 = vpop.f32.mrf.mxu0
        %3191 = vdwg.mxu0
        %3192 = vmatprep.subr.bf16.mxu0 %v2622
        %3193 = vmatpush1.bf16.msra.mxu0 %v2621
        %3194 = vmatprep.subr.bf16.mxu0 %v2604
        %3195 = vmatpush1.bf16.msra.mxu0 %v2603
        %3196 = vmatprep.subr.bf16.mxu0 %v2586
        %3197 = vmatpush1.bf16.msra.mxu0 %v2585
        %3198 = vmatprep.subr.bf16.mxu0 %v2568
        %3199 = vmatpush1.bf16.msra.mxu0 %v2567
        %3200 = vmatprep.subr.bf16.mxu0 %v2550
        %3201 = vmatpush1.bf16.msra.mxu0 %v2549
        %3202 = vmatprep.subr.bf16.mxu0 %v2532
        %3203 = vmatpush1.bf16.msra.mxu0 %v2531
        %3204 = vmatprep.subr.bf16.mxu0 %v2514
        %3205 = vmatpush1.bf16.msra.mxu0 %v2513
        %3206 = vmatprep.subr.bf16.mxu0 %v2496
        %3207 = vmatpush1.bf16.msra.mxu0 %v2495
        %3208 = vmatprep.subr.bf16.mxu0 0
        %3209 = vmatpush2.bf16.msra.mxu0 0
        %3210 = vmatprep.subr.bf16.mxu0 0
        %3211 = vmatpush2.bf16.msra.mxu0 0
        %3212 = vmatprep.subr.bf16.mxu0 0
        %3213 = vmatpush2.bf16.msra.mxu0 0
        %3214 = vmatprep.subr.bf16.mxu0 0
        %3215 = vmatpush2.bf16.msra.mxu0 0
        %3216 = vmatprep.subr.bf16.mxu0 0
        %3217 = vmatpush2.bf16.msra.mxu0 0
        %3218 = vmatprep.subr.bf16.mxu0 0
        %3219 = vmatpush2.bf16.msra.mxu0 0
        %3220 = vmatprep.subr.bf16.mxu0 0
        %3221 = vmatpush2.bf16.msra.mxu0 0
        %3222 = vmatprep.subr.bf16.mxu0 0
        %3223 = vmatpush2.bf16.msra.mxu0 0
        %3224 = vmatprep.mubr.bf16.mxu0 0
        %3225 = vmatmul.mubr.bf16.gmra.mxu0 %v380
        %v3226 = vpop.f32.mrf.mxu0
        %v3227 = vadd.f32 %v3186, %v3226
        %v3228 = vpop.f32.mrf.mxu0
        %v3229 = vadd.f32 %v3188, %v3228
        %v3230 = vpop.f32.mrf.mxu0
        %v3231 = vpop.f32.mrf.mxu0
        %3232 = vdwg.mxu0
        %3233 = vmatprep.subr.bf16.mxu0 %v2336
        %3234 = vmatpush1.bf16.msra.mxu0 %v2335
        %3235 = vmatprep.subr.bf16.mxu0 %v2318
        %3236 = vmatpush1.bf16.msra.mxu0 %v2317
        %3237 = vmatprep.subr.bf16.mxu0 %v2300
        %3238 = vmatpush1.bf16.msra.mxu0 %v2299
        %3239 = vmatprep.subr.bf16.mxu0 %v2282
        %3240 = vmatpush1.bf16.msra.mxu0 %v2281
        %3241 = vmatprep.subr.bf16.mxu0 %v2264
        %3242 = vmatpush1.bf16.msra.mxu0 %v2263
        %3243 = vmatprep.subr.bf16.mxu0 %v2246
        %3244 = vmatpush1.bf16.msra.mxu0 %v2245
        %3245 = vmatprep.subr.bf16.mxu0 %v2228
        %3246 = vmatpush1.bf16.msra.mxu0 %v2227
        %3247 = vmatprep.subr.bf16.mxu0 %v2210
        %3248 = vmatpush1.bf16.msra.mxu0 %v2209
        %3249 = vmatprep.subr.bf16.mxu0 %v2480
        %3250 = vmatpush2.bf16.msra.mxu0 %v2479
        %3251 = vmatprep.subr.bf16.mxu0 %v2462
        %3252 = vmatpush2.bf16.msra.mxu0 %v2461
        %3253 = vmatprep.subr.bf16.mxu0 %v2444
        %3254 = vmatpush2.bf16.msra.mxu0 %v2443
        %3255 = vmatprep.subr.bf16.mxu0 %v2426
        %3256 = vmatpush2.bf16.msra.mxu0 %v2425
        %3257 = vmatprep.subr.bf16.mxu0 %v2408
        %3258 = vmatpush2.bf16.msra.mxu0 %v2407
        %3259 = vmatprep.subr.bf16.mxu0 %v2390
        %3260 = vmatpush2.bf16.msra.mxu0 %v2389
        %3261 = vmatprep.subr.bf16.mxu0 %v2372
        %3262 = vmatpush2.bf16.msra.mxu0 %v2371
        %3263 = vmatprep.subr.bf16.mxu0 %v2354
        %3264 = vmatpush2.bf16.msra.mxu0 %v2353
        %3265 = vmatprep.mubr.bf16.mxu0 %v379
        %3266 = vmatmul.mubr.bf16.gmra.mxu0 %v378
        %v3267 = vpop.f32.mrf.mxu0
        %v3268 = vadd.f32 %v838, %v3267
        %v3269 = vpop.f32.mrf.mxu0
        %v3270 = vadd.f32 %v842, %v3269
        %v3271 = vpop.f32.mrf.mxu0
        %v3272 = vpop.f32.mrf.mxu0
        %3273 = vdwg.mxu0
        %3274 = vmatprep.subr.bf16.mxu0 %v2624
        %3275 = vmatpush1.bf16.msra.mxu0 %v2623
        %3276 = vmatprep.subr.bf16.mxu0 %v2606
        %3277 = vmatpush1.bf16.msra.mxu0 %v2605
        %3278 = vmatprep.subr.bf16.mxu0 %v2588
        %3279 = vmatpush1.bf16.msra.mxu0 %v2587
        %3280 = vmatprep.subr.bf16.mxu0 %v2570
        %3281 = vmatpush1.bf16.msra.mxu0 %v2569
        %3282 = vmatprep.subr.bf16.mxu0 %v2552
        %3283 = vmatpush1.bf16.msra.mxu0 %v2551
        %3284 = vmatprep.subr.bf16.mxu0 %v2534
        %3285 = vmatpush1.bf16.msra.mxu0 %v2533
        %3286 = vmatprep.subr.bf16.mxu0 %v2516
        %3287 = vmatpush1.bf16.msra.mxu0 %v2515
        %3288 = vmatprep.subr.bf16.mxu0 %v2498
        %3289 = vmatpush1.bf16.msra.mxu0 %v2497
        %3290 = vmatprep.subr.bf16.mxu0 0
        %3291 = vmatpush2.bf16.msra.mxu0 0
        %3292 = vmatprep.subr.bf16.mxu0 0
        %3293 = vmatpush2.bf16.msra.mxu0 0
        %3294 = vmatprep.subr.bf16.mxu0 0
        %3295 = vmatpush2.bf16.msra.mxu0 0
        %3296 = vmatprep.subr.bf16.mxu0 0
        %3297 = vmatpush2.bf16.msra.mxu0 0
        %3298 = vmatprep.subr.bf16.mxu0 0
        %3299 = vmatpush2.bf16.msra.mxu0 0
        %3300 = vmatprep.subr.bf16.mxu0 0
        %3301 = vmatpush2.bf16.msra.mxu0 0
        %3302 = vmatprep.subr.bf16.mxu0 0
        %3303 = vmatpush2.bf16.msra.mxu0 0
        %3304 = vmatprep.subr.bf16.mxu0 0
        %3305 = vmatpush2.bf16.msra.mxu0 0
        %3306 = vmatprep.mubr.bf16.mxu0 0
        %3307 = vmatmul.mubr.bf16.gmra.mxu0 %v380
        %v3308 = vpop.f32.mrf.mxu0
        %v3309 = vadd.f32 %v3268, %v3308
        %v3310 = vpop.f32.mrf.mxu0
        %v3311 = vadd.f32 %v3270, %v3310
        %v3312 = vpop.f32.mrf.mxu0
        %v3313 = vpop.f32.mrf.mxu0
        %3314 = vdwg.mxu0
        %3315 = vmatprep.subr.bf16.mxu0 %v2338
        %3316 = vmatpush1.bf16.msra.mxu0 %v2337
        %3317 = vmatprep.subr.bf16.mxu0 %v2320
        %3318 = vmatpush1.bf16.msra.mxu0 %v2319
        %3319 = vmatprep.subr.bf16.mxu0 %v2302
        %3320 = vmatpush1.bf16.msra.mxu0 %v2301
        %3321 = vmatprep.subr.bf16.mxu0 %v2284
        %3322 = vmatpush1.bf16.msra.mxu0 %v2283
        %3323 = vmatprep.subr.bf16.mxu0 %v2266
        %3324 = vmatpush1.bf16.msra.mxu0 %v2265
        %3325 = vmatprep.subr.bf16.mxu0 %v2248
        %3326 = vmatpush1.bf16.msra.mxu0 %v2247
        %3327 = vmatprep.subr.bf16.mxu0 %v2230
        %3328 = vmatpush1.bf16.msra.mxu0 %v2229
        %3329 = vmatprep.subr.bf16.mxu0 %v2212
        %3330 = vmatpush1.bf16.msra.mxu0 %v2211
        %3331 = vmatprep.subr.bf16.mxu0 %v2482
        %3332 = vmatpush2.bf16.msra.mxu0 %v2481
        %3333 = vmatprep.subr.bf16.mxu0 %v2464
        %3334 = vmatpush2.bf16.msra.mxu0 %v2463
        %3335 = vmatprep.subr.bf16.mxu0 %v2446
        %3336 = vmatpush2.bf16.msra.mxu0 %v2445
        %3337 = vmatprep.subr.bf16.mxu0 %v2428
        %3338 = vmatpush2.bf16.msra.mxu0 %v2427
        %3339 = vmatprep.subr.bf16.mxu0 %v2410
        %3340 = vmatpush2.bf16.msra.mxu0 %v2409
        %3341 = vmatprep.subr.bf16.mxu0 %v2392
        %3342 = vmatpush2.bf16.msra.mxu0 %v2391
        %3343 = vmatprep.subr.bf16.mxu0 %v2374
        %3344 = vmatpush2.bf16.msra.mxu0 %v2373
        %3345 = vmatprep.subr.bf16.mxu0 %v2356
        %3346 = vmatpush2.bf16.msra.mxu0 %v2355
        %3347 = vmatprep.mubr.bf16.mxu0 %v379
        %3348 = vmatmul.mubr.bf16.gmra.mxu0 %v378
        %v3349 = vpop.f32.mrf.mxu0
        %v3350 = vadd.f32 %v846, %v3349
        %v3351 = vpop.f32.mrf.mxu0
        %v3352 = vadd.f32 %v850, %v3351
        %v3353 = vpop.f32.mrf.mxu0
        %v3354 = vpop.f32.mrf.mxu0
        %3355 = vdwg.mxu0
        %3356 = vmatprep.subr.bf16.mxu0 %v2626
        %3357 = vmatpush1.bf16.msra.mxu0 %v2625
        %3358 = vmatprep.subr.bf16.mxu0 %v2608
        %3359 = vmatpush1.bf16.msra.mxu0 %v2607
        %3360 = vmatprep.subr.bf16.mxu0 %v2590
        %3361 = vmatpush1.bf16.msra.mxu0 %v2589
        %3362 = vmatprep.subr.bf16.mxu0 %v2572
        %3363 = vmatpush1.bf16.msra.mxu0 %v2571
        %3364 = vmatprep.subr.bf16.mxu0 %v2554
        %3365 = vmatpush1.bf16.msra.mxu0 %v2553
        %3366 = vmatprep.subr.bf16.mxu0 %v2536
        %3367 = vmatpush1.bf16.msra.mxu0 %v2535
        %3368 = vmatprep.subr.bf16.mxu0 %v2518
        %3369 = vmatpush1.bf16.msra.mxu0 %v2517
        %3370 = vmatprep.subr.bf16.mxu0 %v2500
        %3371 = vmatpush1.bf16.msra.mxu0 %v2499
        %3372 = vmatprep.subr.bf16.mxu0 0
        %3373 = vmatpush2.bf16.msra.mxu0 0
        %3374 = vmatprep.subr.bf16.mxu0 0
        %3375 = vmatpush2.bf16.msra.mxu0 0
        %3376 = vmatprep.subr.bf16.mxu0 0
        %3377 = vmatpush2.bf16.msra.mxu0 0
        %3378 = vmatprep.subr.bf16.mxu0 0
        %3379 = vmatpush2.bf16.msra.mxu0 0
        %3380 = vmatprep.subr.bf16.mxu0 0
        %3381 = vmatpush2.bf16.msra.mxu0 0
        %3382 = vmatprep.subr.bf16.mxu0 0
        %3383 = vmatpush2.bf16.msra.mxu0 0
        %3384 = vmatprep.subr.bf16.mxu0 0
        %3385 = vmatpush2.bf16.msra.mxu0 0
        %3386 = vmatprep.subr.bf16.mxu0 0
        %3387 = vmatpush2.bf16.msra.mxu0 0
        %3388 = vmatprep.mubr.bf16.mxu0 0
        %3389 = vmatmul.mubr.bf16.gmra.mxu0 %v380
        %v3390 = vpop.f32.mrf.mxu0
        %v3391 = vadd.f32 %v3350, %v3390
        %v3392 = vpop.f32.mrf.mxu0
        %v3393 = vadd.f32 %v3352, %v3392
        %v3394 = vpop.f32.mrf.mxu0
        %v3395 = vpop.f32.mrf.mxu0
        %3396 = vdwg.mxu0
        %3397 = vmatprep.subr.bf16.mxu0 %v2340
        %3398 = vmatpush1.bf16.msra.mxu0 %v2339
        %3399 = vmatprep.subr.bf16.mxu0 %v2322
        %3400 = vmatpush1.bf16.msra.mxu0 %v2321
        %3401 = vmatprep.subr.bf16.mxu0 %v2304
        %3402 = vmatpush1.bf16.msra.mxu0 %v2303
        %3403 = vmatprep.subr.bf16.mxu0 %v2286
        %3404 = vmatpush1.bf16.msra.mxu0 %v2285
        %3405 = vmatprep.subr.bf16.mxu0 %v2268
        %3406 = vmatpush1.bf16.msra.mxu0 %v2267
        %3407 = vmatprep.subr.bf16.mxu0 %v2250
        %3408 = vmatpush1.bf16.msra.mxu0 %v2249
        %3409 = vmatprep.subr.bf16.mxu0 %v2232
        %3410 = vmatpush1.bf16.msra.mxu0 %v2231
        %3411 = vmatprep.subr.bf16.mxu0 %v2214
        %3412 = vmatpush1.bf16.msra.mxu0 %v2213
        %3413 = vmatprep.subr.bf16.mxu0 %v2484
        %3414 = vmatpush2.bf16.msra.mxu0 %v2483
        %3415 = vmatprep.subr.bf16.mxu0 %v2466
        %3416 = vmatpush2.bf16.msra.mxu0 %v2465
        %3417 = vmatprep.subr.bf16.mxu0 %v2448
        %3418 = vmatpush2.bf16.msra.mxu0 %v2447
        %3419 = vmatprep.subr.bf16.mxu0 %v2430
        %3420 = vmatpush2.bf16.msra.mxu0 %v2429
        %3421 = vmatprep.subr.bf16.mxu0 %v2412
        %3422 = vmatpush2.bf16.msra.mxu0 %v2411
        %3423 = vmatprep.subr.bf16.mxu0 %v2394
        %3424 = vmatpush2.bf16.msra.mxu0 %v2393
        %3425 = vmatprep.subr.bf16.mxu0 %v2376
        %3426 = vmatpush2.bf16.msra.mxu0 %v2375
        %3427 = vmatprep.subr.bf16.mxu0 %v2358
        %3428 = vmatpush2.bf16.msra.mxu0 %v2357
        %3429 = vmatprep.mubr.bf16.mxu0 %v379
        %3430 = vmatmul.mubr.bf16.gmra.mxu0 %v378
        %v3431 = vpop.f32.mrf.mxu0
        %v3432 = vadd.f32 %v854, %v3431
        %v3433 = vpop.f32.mrf.mxu0
        %v3434 = vadd.f32 %v858, %v3433
        %v3435 = vpop.f32.mrf.mxu0
        %v3436 = vpop.f32.mrf.mxu0
        %3437 = vdwg.mxu0
        %3438 = vmatprep.subr.bf16.mxu0 %v2628
        %3439 = vmatpush1.bf16.msra.mxu0 %v2627
        %3440 = vmatprep.subr.bf16.mxu0 %v2610
        %3441 = vmatpush1.bf16.msra.mxu0 %v2609
        %3442 = vmatprep.subr.bf16.mxu0 %v2592
        %3443 = vmatpush1.bf16.msra.mxu0 %v2591
        %3444 = vmatprep.subr.bf16.mxu0 %v2574
        %3445 = vmatpush1.bf16.msra.mxu0 %v2573
        %3446 = vmatprep.subr.bf16.mxu0 %v2556
        %3447 = vmatpush1.bf16.msra.mxu0 %v2555
        %3448 = vmatprep.subr.bf16.mxu0 %v2538
        %3449 = vmatpush1.bf16.msra.mxu0 %v2537
        %3450 = vmatprep.subr.bf16.mxu0 %v2520
        %3451 = vmatpush1.bf16.msra.mxu0 %v2519
        %3452 = vmatprep.subr.bf16.mxu0 %v2502
        %3453 = vmatpush1.bf16.msra.mxu0 %v2501
        %3454 = vmatprep.subr.bf16.mxu0 0
        %3455 = vmatpush2.bf16.msra.mxu0 0
        %3456 = vmatprep.subr.bf16.mxu0 0
        %3457 = vmatpush2.bf16.msra.mxu0 0
        %3458 = vmatprep.subr.bf16.mxu0 0
        %3459 = vmatpush2.bf16.msra.mxu0 0
        %3460 = vmatprep.subr.bf16.mxu0 0
        %3461 = vmatpush2.bf16.msra.mxu0 0
        %3462 = vmatprep.subr.bf16.mxu0 0
        %3463 = vmatpush2.bf16.msra.mxu0 0
        %3464 = vmatprep.subr.bf16.mxu0 0
        %3465 = vmatpush2.bf16.msra.mxu0 0
        %3466 = vmatprep.subr.bf16.mxu0 0
        %3467 = vmatpush2.bf16.msra.mxu0 0
        %3468 = vmatprep.subr.bf16.mxu0 0
        %3469 = vmatpush2.bf16.msra.mxu0 0
        %3470 = vmatprep.mubr.bf16.mxu0 0
        %3471 = vmatmul.mubr.bf16.gmra.mxu0 %v380
        %v3472 = vpop.f32.mrf.mxu0
        %v3473 = vadd.f32 %v3432, %v3472
        %v3474 = vpop.f32.mrf.mxu0
        %v3475 = vadd.f32 %v3434, %v3474
        %v3476 = vpop.f32.mrf.mxu0
        %v3477 = vpop.f32.mrf.mxu0
        %3478 = vdwg.mxu0
        %3479 = vmatprep.subr.bf16.mxu0 %v2342
        %3480 = vmatpush1.bf16.msra.mxu0 %v2341
        %3481 = vmatprep.subr.bf16.mxu0 %v2324
        %3482 = vmatpush1.bf16.msra.mxu0 %v2323
        %3483 = vmatprep.subr.bf16.mxu0 %v2306
        %3484 = vmatpush1.bf16.msra.mxu0 %v2305
        %3485 = vmatprep.subr.bf16.mxu0 %v2288
        %3486 = vmatpush1.bf16.msra.mxu0 %v2287
        %3487 = vmatprep.subr.bf16.mxu0 %v2270
        %3488 = vmatpush1.bf16.msra.mxu0 %v2269
        %3489 = vmatprep.subr.bf16.mxu0 %v2252
        %3490 = vmatpush1.bf16.msra.mxu0 %v2251
        %3491 = vmatprep.subr.bf16.mxu0 %v2234
        %3492 = vmatpush1.bf16.msra.mxu0 %v2233
        %3493 = vmatprep.subr.bf16.mxu0 %v2216
        %3494 = vmatpush1.bf16.msra.mxu0 %v2215
        %3495 = vmatprep.subr.bf16.mxu0 %v2486
        %3496 = vmatpush2.bf16.msra.mxu0 %v2485
        %3497 = vmatprep.subr.bf16.mxu0 %v2468
        %3498 = vmatpush2.bf16.msra.mxu0 %v2467
        %3499 = vmatprep.subr.bf16.mxu0 %v2450
        %3500 = vmatpush2.bf16.msra.mxu0 %v2449
        %3501 = vmatprep.subr.bf16.mxu0 %v2432
        %3502 = vmatpush2.bf16.msra.mxu0 %v2431
        %3503 = vmatprep.subr.bf16.mxu0 %v2414
        %3504 = vmatpush2.bf16.msra.mxu0 %v2413
        %3505 = vmatprep.subr.bf16.mxu0 %v2396
        %3506 = vmatpush2.bf16.msra.mxu0 %v2395
        %3507 = vmatprep.subr.bf16.mxu0 %v2378
        %3508 = vmatpush2.bf16.msra.mxu0 %v2377
        %3509 = vmatprep.subr.bf16.mxu0 %v2360
        %3510 = vmatpush2.bf16.msra.mxu0 %v2359
        %3511 = vmatprep.mubr.bf16.mxu0 %v379
        %3512 = vmatmul.mubr.bf16.gmra.mxu0 %v378
        %v3513 = vpop.f32.mrf.mxu0
        %v3514 = vadd.f32 %v862, %v3513
        %v3515 = vpop.f32.mrf.mxu0
        %v3516 = vadd.f32 %v866, %v3515
        %v3517 = vpop.f32.mrf.mxu0
        %v3518 = vpop.f32.mrf.mxu0
        %3519 = vdwg.mxu0
        %3520 = vmatprep.subr.bf16.mxu0 %v2630
        %3521 = vmatpush1.bf16.msra.mxu0 %v2629
        %3522 = vmatprep.subr.bf16.mxu0 %v2612
        %3523 = vmatpush1.bf16.msra.mxu0 %v2611
        %3524 = vmatprep.subr.bf16.mxu0 %v2594
        %3525 = vmatpush1.bf16.msra.mxu0 %v2593
        %3526 = vmatprep.subr.bf16.mxu0 %v2576
        %3527 = vmatpush1.bf16.msra.mxu0 %v2575
        %3528 = vmatprep.subr.bf16.mxu0 %v2558
        %3529 = vmatpush1.bf16.msra.mxu0 %v2557
        %3530 = vmatprep.subr.bf16.mxu0 %v2540
        %3531 = vmatpush1.bf16.msra.mxu0 %v2539
        %3532 = vmatprep.subr.bf16.mxu0 %v2522
        %3533 = vmatpush1.bf16.msra.mxu0 %v2521
        %3534 = vmatprep.subr.bf16.mxu0 %v2504
        %3535 = vmatpush1.bf16.msra.mxu0 %v2503
        %3536 = vmatprep.subr.bf16.mxu0 0
        %3537 = vmatpush2.bf16.msra.mxu0 0
        %3538 = vmatprep.subr.bf16.mxu0 0
        %3539 = vmatpush2.bf16.msra.mxu0 0
        %3540 = vmatprep.subr.bf16.mxu0 0
        %3541 = vmatpush2.bf16.msra.mxu0 0
        %3542 = vmatprep.subr.bf16.mxu0 0
        %3543 = vmatpush2.bf16.msra.mxu0 0
        %3544 = vmatprep.subr.bf16.mxu0 0
        %3545 = vmatpush2.bf16.msra.mxu0 0
        %3546 = vmatprep.subr.bf16.mxu0 0
        %3547 = vmatpush2.bf16.msra.mxu0 0
        %3548 = vmatprep.subr.bf16.mxu0 0
        %3549 = vmatpush2.bf16.msra.mxu0 0
        %3550 = vmatprep.subr.bf16.mxu0 0
        %3551 = vmatpush2.bf16.msra.mxu0 0
        %3552 = vmatprep.mubr.bf16.mxu0 0
        %3553 = vmatmul.mubr.bf16.gmra.mxu0 %v380
        %v3554 = vpop.f32.mrf.mxu0
        %v3555 = vadd.f32 %v3514, %v3554
        %v3556 = vpop.f32.mrf.mxu0
        %v3557 = vadd.f32 %v3516, %v3556
        %v3558 = vpop.f32.mrf.mxu0
        %v3559 = vpop.f32.mrf.mxu0
        %3560 = vdwg.mxu0
        %3561 = vmatprep.subr.bf16.mxu0 %v2344
        %3562 = vmatpush1.bf16.msra.mxu0 %v2343
        %3563 = vmatprep.subr.bf16.mxu0 %v2326
        %3564 = vmatpush1.bf16.msra.mxu0 %v2325
        %3565 = vmatprep.subr.bf16.mxu0 %v2308
        %3566 = vmatpush1.bf16.msra.mxu0 %v2307
        %3567 = vmatprep.subr.bf16.mxu0 %v2290
        %3568 = vmatpush1.bf16.msra.mxu0 %v2289
        %3569 = vmatprep.subr.bf16.mxu0 %v2272
        %3570 = vmatpush1.bf16.msra.mxu0 %v2271
        %3571 = vmatprep.subr.bf16.mxu0 %v2254
        %3572 = vmatpush1.bf16.msra.mxu0 %v2253
        %3573 = vmatprep.subr.bf16.mxu0 %v2236
        %3574 = vmatpush1.bf16.msra.mxu0 %v2235
        %3575 = vmatprep.subr.bf16.mxu0 %v2218
        %3576 = vmatpush1.bf16.msra.mxu0 %v2217
        %3577 = vmatprep.subr.bf16.mxu0 %v2488
        %3578 = vmatpush2.bf16.msra.mxu0 %v2487
        %3579 = vmatprep.subr.bf16.mxu0 %v2470
        %3580 = vmatpush2.bf16.msra.mxu0 %v2469
        %3581 = vmatprep.subr.bf16.mxu0 %v2452
        %3582 = vmatpush2.bf16.msra.mxu0 %v2451
        %3583 = vmatprep.subr.bf16.mxu0 %v2434
        %3584 = vmatpush2.bf16.msra.mxu0 %v2433
        %3585 = vmatprep.subr.bf16.mxu0 %v2416
        %3586 = vmatpush2.bf16.msra.mxu0 %v2415
        %3587 = vmatprep.subr.bf16.mxu0 %v2398
        %3588 = vmatpush2.bf16.msra.mxu0 %v2397
        %3589 = vmatprep.subr.bf16.mxu0 %v2380
        %3590 = vmatpush2.bf16.msra.mxu0 %v2379
        %3591 = vmatprep.subr.bf16.mxu0 %v2362
        %3592 = vmatpush2.bf16.msra.mxu0 %v2361
        %3593 = vmatprep.mubr.bf16.mxu0 %v379
        %3594 = vmatmul.mubr.bf16.gmra.mxu0 %v378
        %v3595 = vpop.f32.mrf.mxu0
        %v3596 = vadd.f32 %v870, %v3595
        %v3597 = vpop.f32.mrf.mxu0
        %v3598 = vadd.f32 %v874, %v3597
        %v3599 = vpop.f32.mrf.mxu0
        %v3600 = vpop.f32.mrf.mxu0
        %3601 = vdwg.mxu0
        %3602 = vmatprep.subr.bf16.mxu0 %v2632
        %3603 = vmatpush1.bf16.msra.mxu0 %v2631
        %3604 = vmatprep.subr.bf16.mxu0 %v2614
        %3605 = vmatpush1.bf16.msra.mxu0 %v2613
        %3606 = vmatprep.subr.bf16.mxu0 %v2596
        %3607 = vmatpush1.bf16.msra.mxu0 %v2595
        %3608 = vmatprep.subr.bf16.mxu0 %v2578
        %3609 = vmatpush1.bf16.msra.mxu0 %v2577
        %3610 = vmatprep.subr.bf16.mxu0 %v2560
        %3611 = vmatpush1.bf16.msra.mxu0 %v2559
        %3612 = vmatprep.subr.bf16.mxu0 %v2542
        %3613 = vmatpush1.bf16.msra.mxu0 %v2541
        %3614 = vmatprep.subr.bf16.mxu0 %v2524
        %3615 = vmatpush1.bf16.msra.mxu0 %v2523
        %3616 = vmatprep.subr.bf16.mxu0 %v2506
        %3617 = vmatpush1.bf16.msra.mxu0 %v2505
        %3618 = vmatprep.subr.bf16.mxu0 0
        %3619 = vmatpush2.bf16.msra.mxu0 0
        %3620 = vmatprep.subr.bf16.mxu0 0
        %3621 = vmatpush2.bf16.msra.mxu0 0
        %3622 = vmatprep.subr.bf16.mxu0 0
        %3623 = vmatpush2.bf16.msra.mxu0 0
        %3624 = vmatprep.subr.bf16.mxu0 0
        %3625 = vmatpush2.bf16.msra.mxu0 0
        %3626 = vmatprep.subr.bf16.mxu0 0
        %3627 = vmatpush2.bf16.msra.mxu0 0
        %3628 = vmatprep.subr.bf16.mxu0 0
        %3629 = vmatpush2.bf16.msra.mxu0 0
        %3630 = vmatprep.subr.bf16.mxu0 0
        %3631 = vmatpush2.bf16.msra.mxu0 0
        %3632 = vmatprep.subr.bf16.mxu0 0
        %3633 = vmatpush2.bf16.msra.mxu0 0
        %3634 = vmatprep.mubr.bf16.mxu0 0
        %3635 = vmatmul.mubr.bf16.gmra.mxu0 %v380
        %v3636 = vpop.f32.mrf.mxu0
        %v3637 = vadd.f32 %v3596, %v3636
        %v3638 = vpop.f32.mrf.mxu0
        %v3639 = vadd.f32 %v3598, %v3638
        %v3640 = vpop.f32.mrf.mxu0
        %v3641 = vpop.f32.mrf.mxu0
        %3642 = vdwg.mxu0
        %3643 = vmatprep.subr.bf16.mxu0 %v2346
        %3644 = vmatpush1.bf16.msra.mxu0 %v2345
        %3645 = vmatprep.subr.bf16.mxu0 %v2328
        %3646 = vmatpush1.bf16.msra.mxu0 %v2327
        %3647 = vmatprep.subr.bf16.mxu0 %v2310
        %3648 = vmatpush1.bf16.msra.mxu0 %v2309
        %3649 = vmatprep.subr.bf16.mxu0 %v2292
        %3650 = vmatpush1.bf16.msra.mxu0 %v2291
        %3651 = vmatprep.subr.bf16.mxu0 %v2274
        %3652 = vmatpush1.bf16.msra.mxu0 %v2273
        %3653 = vmatprep.subr.bf16.mxu0 %v2256
        %3654 = vmatpush1.bf16.msra.mxu0 %v2255
        %3655 = vmatprep.subr.bf16.mxu0 %v2238
        %3656 = vmatpush1.bf16.msra.mxu0 %v2237
        %3657 = vmatprep.subr.bf16.mxu0 %v2220
        %3658 = vmatpush1.bf16.msra.mxu0 %v2219
        %3659 = vmatprep.subr.bf16.mxu0 %v2490
        %3660 = vmatpush2.bf16.msra.mxu0 %v2489
        %3661 = vmatprep.subr.bf16.mxu0 %v2472
        %3662 = vmatpush2.bf16.msra.mxu0 %v2471
        %3663 = vmatprep.subr.bf16.mxu0 %v2454
        %3664 = vmatpush2.bf16.msra.mxu0 %v2453
        %3665 = vmatprep.subr.bf16.mxu0 %v2436
        %3666 = vmatpush2.bf16.msra.mxu0 %v2435
        %3667 = vmatprep.subr.bf16.mxu0 %v2418
        %3668 = vmatpush2.bf16.msra.mxu0 %v2417
        %3669 = vmatprep.subr.bf16.mxu0 %v2400
        %3670 = vmatpush2.bf16.msra.mxu0 %v2399
        %3671 = vmatprep.subr.bf16.mxu0 %v2382
        %3672 = vmatpush2.bf16.msra.mxu0 %v2381
        %3673 = vmatprep.subr.bf16.mxu0 %v2364
        %3674 = vmatpush2.bf16.msra.mxu0 %v2363
        %3675 = vmatprep.mubr.bf16.mxu0 %v379
        %3676 = vmatmul.mubr.bf16.gmra.mxu0 %v378
        %v3677 = vpop.f32.mrf.mxu0
        %v3678 = vadd.f32 %v878, %v3677
        %v3679 = vpop.f32.mrf.mxu0
        %v3680 = vadd.f32 %v882, %v3679
        %v3681 = vpop.f32.mrf.mxu0
        %v3682 = vpop.f32.mrf.mxu0
        %3683 = vdwg.mxu0
        %3684 = vmatprep.subr.bf16.mxu0 %v2634
        %3685 = vmatpush1.bf16.msra.mxu0 %v2633
        %3686 = vmatprep.subr.bf16.mxu0 %v2616
        %3687 = vmatpush1.bf16.msra.mxu0 %v2615
        %3688 = vmatprep.subr.bf16.mxu0 %v2598
        %3689 = vmatpush1.bf16.msra.mxu0 %v2597
        %3690 = vmatprep.subr.bf16.mxu0 %v2580
        %3691 = vmatpush1.bf16.msra.mxu0 %v2579
        %3692 = vmatprep.subr.bf16.mxu0 %v2562
        %3693 = vmatpush1.bf16.msra.mxu0 %v2561
        %3694 = vmatprep.subr.bf16.mxu0 %v2544
        %3695 = vmatpush1.bf16.msra.mxu0 %v2543
        %3696 = vmatprep.subr.bf16.mxu0 %v2526
        %3697 = vmatpush1.bf16.msra.mxu0 %v2525
        %3698 = vmatprep.subr.bf16.mxu0 %v2508
        %3699 = vmatpush1.bf16.msra.mxu0 %v2507
        %3700 = vmatprep.subr.bf16.mxu0 0
        %3701 = vmatpush2.bf16.msra.mxu0 0
        %3702 = vmatprep.subr.bf16.mxu0 0
        %3703 = vmatpush2.bf16.msra.mxu0 0
        %3704 = vmatprep.subr.bf16.mxu0 0
        %3705 = vmatpush2.bf16.msra.mxu0 0
        %3706 = vmatprep.subr.bf16.mxu0 0
        %3707 = vmatpush2.bf16.msra.mxu0 0
        %3708 = vmatprep.subr.bf16.mxu0 0
        %3709 = vmatpush2.bf16.msra.mxu0 0
        %3710 = vmatprep.subr.bf16.mxu0 0
        %3711 = vmatpush2.bf16.msra.mxu0 0
        %3712 = vmatprep.subr.bf16.mxu0 0
        %3713 = vmatpush2.bf16.msra.mxu0 0
        %3714 = vmatprep.subr.bf16.mxu0 0
        %3715 = vmatpush2.bf16.msra.mxu0 0
        %3716 = vmatprep.mubr.bf16.mxu0 0
        %3717 = vmatmul.mubr.bf16.gmra.mxu0 %v380
        %v3718 = vpop.f32.mrf.mxu0
        %v3719 = vadd.f32 %v3678, %v3718
        %v3720 = vpop.f32.mrf.mxu0
        %v3721 = vadd.f32 %v3680, %v3720
        %v3722 = vpop.f32.mrf.mxu0
        %v3723 = vpop.f32.mrf.mxu0
        %3724 = vdwg.mxu0
        %3725 = vmatprep.subr.bf16.mxu0 %v2348
        %3726 = vmatpush1.bf16.msra.mxu0 %v2347
        %3727 = vmatprep.subr.bf16.mxu0 %v2330
        %3728 = vmatpush1.bf16.msra.mxu0 %v2329
        %3729 = vmatprep.subr.bf16.mxu0 %v2312
        %3730 = vmatpush1.bf16.msra.mxu0 %v2311
        %3731 = vmatprep.subr.bf16.mxu0 %v2294
        %3732 = vmatpush1.bf16.msra.mxu0 %v2293
        %3733 = vmatprep.subr.bf16.mxu0 %v2276
        %3734 = vmatpush1.bf16.msra.mxu0 %v2275
        %3735 = vmatprep.subr.bf16.mxu0 %v2258
        %3736 = vmatpush1.bf16.msra.mxu0 %v2257
        %3737 = vmatprep.subr.bf16.mxu0 %v2240
        %3738 = vmatpush1.bf16.msra.mxu0 %v2239
        %3739 = vmatprep.subr.bf16.mxu0 %v2222
        %3740 = vmatpush1.bf16.msra.mxu0 %v2221
        %3741 = vmatprep.subr.bf16.mxu0 %v2492
        %3742 = vmatpush2.bf16.msra.mxu0 %v2491
        %3743 = vmatprep.subr.bf16.mxu0 %v2474
        %3744 = vmatpush2.bf16.msra.mxu0 %v2473
        %3745 = vmatprep.subr.bf16.mxu0 %v2456
        %3746 = vmatpush2.bf16.msra.mxu0 %v2455
        %3747 = vmatprep.subr.bf16.mxu0 %v2438
        %3748 = vmatpush2.bf16.msra.mxu0 %v2437
        %3749 = vmatprep.subr.bf16.mxu0 %v2420
        %3750 = vmatpush2.bf16.msra.mxu0 %v2419
        %3751 = vmatprep.subr.bf16.mxu0 %v2402
        %3752 = vmatpush2.bf16.msra.mxu0 %v2401
        %3753 = vmatprep.subr.bf16.mxu0 %v2384
        %3754 = vmatpush2.bf16.msra.mxu0 %v2383
        %3755 = vmatprep.subr.bf16.mxu0 %v2366
        %3756 = vmatpush2.bf16.msra.mxu0 %v2365
        %3757 = vmatprep.mubr.bf16.mxu0 %v379
        %3758 = vmatmul.mubr.bf16.gmra.mxu0 %v378
        %v3759 = vpop.f32.mrf.mxu0
        %v3760 = vadd.f32 %v886, %v3759
        %v3761 = vpop.f32.mrf.mxu0
        %v3762 = vadd.f32 %v890, %v3761
        %v3763 = vpop.f32.mrf.mxu0
        %v3764 = vpop.f32.mrf.mxu0
        %3765 = vdwg.mxu0
        %3766 = vmatprep.subr.bf16.mxu0 %v2636
        %3767 = vmatpush1.bf16.msra.mxu0 %v2635
        %3768 = vmatprep.subr.bf16.mxu0 %v2618
        %3769 = vmatpush1.bf16.msra.mxu0 %v2617
        %3770 = vmatprep.subr.bf16.mxu0 %v2600
        %3771 = vmatpush1.bf16.msra.mxu0 %v2599
        %3772 = vmatprep.subr.bf16.mxu0 %v2582
        %3773 = vmatpush1.bf16.msra.mxu0 %v2581
        %3774 = vmatprep.subr.bf16.mxu0 %v2564
        %3775 = vmatpush1.bf16.msra.mxu0 %v2563
        %3776 = vmatprep.subr.bf16.mxu0 %v2546
        %3777 = vmatpush1.bf16.msra.mxu0 %v2545
        %3778 = vmatprep.subr.bf16.mxu0 %v2528
        %3779 = vmatpush1.bf16.msra.mxu0 %v2527
        %3780 = vmatprep.subr.bf16.mxu0 %v2510
        %3781 = vmatpush1.bf16.msra.mxu0 %v2509
        %3782 = vmatprep.subr.bf16.mxu0 0
        %3783 = vmatpush2.bf16.msra.mxu0 0
        %3784 = vmatprep.subr.bf16.mxu0 0
        %3785 = vmatpush2.bf16.msra.mxu0 0
        %3786 = vmatprep.subr.bf16.mxu0 0
        %3787 = vmatpush2.bf16.msra.mxu0 0
        %3788 = vmatprep.subr.bf16.mxu0 0
        %3789 = vmatpush2.bf16.msra.mxu0 0
        %3790 = vmatprep.subr.bf16.mxu0 0
        %3791 = vmatpush2.bf16.msra.mxu0 0
        %3792 = vmatprep.subr.bf16.mxu0 0
        %3793 = vmatpush2.bf16.msra.mxu0 0
        %3794 = vmatprep.subr.bf16.mxu0 0
        %3795 = vmatpush2.bf16.msra.mxu0 0
        %3796 = vmatprep.subr.bf16.mxu0 0
        %3797 = vmatpush2.bf16.msra.mxu0 0
        %3798 = vmatprep.mubr.bf16.mxu0 0
        %3799 = vmatmul.mubr.bf16.gmra.mxu0 %v380
        %v3800 = vpop.f32.mrf.mxu0
        %v3801 = vadd.f32 %v3760, %v3800
        %v3802 = vpop.f32.mrf.mxu0
        %v3803 = vadd.f32 %v3762, %v3802
        %v3804 = vpop.f32.mrf.mxu0
        %v3805 = vpop.f32.mrf.mxu0
        %3806 = vdwg.mxu0
        %v3807 = vpack.c.bf16 %v3145, %v3145
        %v3808 = vpack.c.bf16 %v3391, %v3391
        %v3809 = vpack.c.bf16 %v3637, %v3637
        %3810 = vmatprep.subr.bf16.mxu0 0
        %3811 = vmatpush1.bf16.xpose.msra.mxu0 0
        %3812 = vmatprep.subr.bf16.mxu0 0
        %3813 = vmatpush1.bf16.xpose.msra.mxu0 0
        %3814 = vmatprep.subr.bf16.mxu0 0
        %3815 = vmatpush1.bf16.xpose.msra.mxu0 0
        %3816 = vmatprep.subr.bf16.mxu0 0
        %3817 = vmatpush1.bf16.xpose.msra.mxu0 0
        %3818 = vmatprep.subr.bf16.mxu0 0
        %3819 = vmatpush1.bf16.xpose.msra.mxu0 0
        %3820 = vmatprep.subr.bf16.mxu0 0
        %3821 = vmatpush1.bf16.xpose.msra.mxu0 0
        %3822 = vmatprep.subr.bf16.mxu0 0
        %3823 = vmatpush1.bf16.xpose.msra.mxu0 0
        %3824 = vmatprep.subr.bf16.mxu0 0
        %3825 = vmatpush1.bf16.xpose.msra.mxu0 %v3808
        %3826 = vmatprep.subr.bf16.mxu0 0
        %3827 = vmatpush2.bf16.xpose.msra.mxu0 0
        %3828 = vmatprep.subr.bf16.mxu0 0
        %3829 = vmatpush2.bf16.xpose.msra.mxu0 0
        %3830 = vmatprep.subr.bf16.mxu0 0
        %3831 = vmatpush2.bf16.xpose.msra.mxu0 0
        %3832 = vmatprep.subr.bf16.mxu0 0
        %3833 = vmatpush2.bf16.xpose.msra.mxu0 0
        %3834 = vmatprep.subr.bf16.mxu0 0
        %3835 = vmatpush2.bf16.xpose.msra.mxu0 0
        %3836 = vmatprep.subr.bf16.mxu0 0
        %3837 = vmatpush2.bf16.xpose.msra.mxu0 0
        %3838 = vmatprep.subr.bf16.mxu0 0
        %3839 = vmatpush2.bf16.xpose.msra.mxu0 0
        %3840 = vmatprep.subr.bf16.mxu0 0
        %3841 = vmatpush2.bf16.xpose.msra.mxu0 0
        %3842 = vmatprep.mubr.bf16.mxu0 0
        %3843 = vmatmul.mubr.bf16.gmra.mxu0 %v3807
        %v3844 = vpop.f32.mrf.mxu0
        %v3845 = vadd.f32 0.0, %v3844
        %v3846 = vpop.f32.mrf.mxu0
        %v3847 = vpop.f32.mrf.mxu0
        %v3848 = vpop.f32.mrf.mxu0
        %3849 = vdwg.mxu0
        %vm3850 = vcmask 64512
        %v3851 = vsel %vm3850, %v3845, -inf
        %3852 = vmax.xlane.f32.xlu0 %v3851
        %v3853 = vpop.xlane.xlu0 %3852
        %v3854 = vsub.f32 %v3845, %v3853
        %v3855 = vmul.f32 %v3854, 1.442695
        %v3856 = vpow.pop %v3855
        %v3857 = vsel %vm3850, %v3856, 0.0
        %3858 = vadd.xlane.f32.xlu0 %v3857
        %v3859 = vpop.xlane.xlu0 %3858
        %v3860 = vrcp.pop %v3859
        %v3861 = vmul.f32 %v3856, %v3860
        %v3862 = vpack.c.bf16 %v3861, %v3861
        %v3864 = vsel %vm3850, %v3862, 0
        %vm3866 = vcmask 1043456
        %v3868 = vsel %vm3866, %v3809, 0
        %3870 = vmatprep.subr.bf16.mxu0 0
        %3871 = vmatpush1.bf16.msra.mxu0 0
        %3872 = vmatprep.subr.bf16.mxu0 0
        %3873 = vmatpush1.bf16.msra.mxu0 0
        %3874 = vmatprep.subr.bf16.mxu0 0
        %3875 = vmatpush1.bf16.msra.mxu0 0
        %3876 = vmatprep.subr.bf16.mxu0 0
        %3877 = vmatpush1.bf16.msra.mxu0 0
        %3878 = vmatprep.subr.bf16.mxu0 0
        %3879 = vmatpush1.bf16.msra.mxu0 0
        %3880 = vmatprep.subr.bf16.mxu0 0
        %3881 = vmatpush1.bf16.msra.mxu0 0
        %3882 = vmatprep.subr.bf16.mxu0 0
        %3883 = vmatpush1.bf16.msra.mxu0 0
        %3884 = vmatprep.subr.bf16.mxu0 0
        %3885 = vmatpush1.bf16.msra.mxu0 %v3868
        %3886 = vmatprep.subr.bf16.mxu0 0
        %3887 = vmatpush2.bf16.msra.mxu0 0
        %3888 = vmatprep.subr.bf16.mxu0 0
        %3889 = vmatpush2.bf16.msra.mxu0 0
        %3890 = vmatprep.subr.bf16.mxu0 0
        %3891 = vmatpush2.bf16.msra.mxu0 0
        %3892 = vmatprep.subr.bf16.mxu0 0
        %3893 = vmatpush2.bf16.msra.mxu0 0
        %3894 = vmatprep.subr.bf16.mxu0 0
        %3895 = vmatpush2.bf16.msra.mxu0 0
        %3896 = vmatprep.subr.bf16.mxu0 0
        %3897 = vmatpush2.bf16.msra.mxu0 0
        %3898 = vmatprep.subr.bf16.mxu0 0
        %3899 = vmatpush2.bf16.msra.mxu0 0
        %3900 = vmatprep.subr.bf16.mxu0 0
        %3901 = vmatpush2.bf16.msra.mxu0 0
        %3902 = vmatprep.mubr.bf16.mxu0 0
        %3903 = vmatmul.mubr.bf16.gmra.mxu0 %v3864
        %v3904 = vpop.f32.mrf.mxu0
        %v3905 = vadd.f32 0.0, %v3904
        %v3906 = vpop.f32.mrf.mxu0
        %v3907 = vpop.f32.mrf.mxu0
        %v3908 = vpop.f32.mrf.mxu0
        %3909 = vdwg.mxu0
        %v3910 = vpack.c.bf16 %v3905, %v3905
        %3911 = vst [vmem:[#allocation2] sm:$0xf] %v3910
        %v3912 = vpack.c.bf16 %v3147, %v3147
        %v3913 = vpack.c.bf16 %v3393, %v3393
        %v3914 = vpack.c.bf16 %v3639, %v3639
        %3915 = vmatprep.subr.bf16.mxu0 0
        %3916 = vmatpush1.bf16.xpose.msra.mxu0 0
        %3917 = vmatprep.subr.bf16.mxu0 0
        %3918 = vmatpush1.bf16.xpose.msra.mxu0 0
        %3919 = vmatprep.subr.bf16.mxu0 0
        %3920 = vmatpush1.bf16.xpose.msra.mxu0 0
        %3921 = vmatprep.subr.bf16.mxu0 0
        %3922 = vmatpush1.bf16.xpose.msra.mxu0 0
        %3923 = vmatprep.subr.bf16.mxu0 0
        %3924 = vmatpush1.bf16.xpose.msra.mxu0 0
        %3925 = vmatprep.subr.bf16.mxu0 0
        %3926 = vmatpush1.bf16.xpose.msra.mxu0 0
        %3927 = vmatprep.subr.bf16.mxu0 0
        %3928 = vmatpush1.bf16.xpose.msra.mxu0 0
        %3929 = vmatprep.subr.bf16.mxu0 0
        %3930 = vmatpush1.bf16.xpose.msra.mxu0 %v3913
        %3931 = vmatprep.subr.bf16.mxu0 0
        %3932 = vmatpush2.bf16.xpose.msra.mxu0 0
        %3933 = vmatprep.subr.bf16.mxu0 0
        %3934 = vmatpush2.bf16.xpose.msra.mxu0 0
        %3935 = vmatprep.subr.bf16.mxu0 0
        %3936 = vmatpush2.bf16.xpose.msra.mxu0 0
        %3937 = vmatprep.subr.bf16.mxu0 0
        %3938 = vmatpush2.bf16.xpose.msra.mxu0 0
        %3939 = vmatprep.subr.bf16.mxu0 0
        %3940 = vmatpush2.bf16.xpose.msra.mxu0 0
        %3941 = vmatprep.subr.bf16.mxu0 0
        %3942 = vmatpush2.bf16.xpose.msra.mxu0 0
        %3943 = vmatprep.subr.bf16.mxu0 0
        %3944 = vmatpush2.bf16.xpose.msra.mxu0 0
        %3945 = vmatprep.subr.bf16.mxu0 0
        %3946 = vmatpush2.bf16.xpose.msra.mxu0 0
        %3947 = vmatprep.mubr.bf16.mxu0 0
        %3948 = vmatmul.mubr.bf16.gmra.mxu0 %v3912
        %v3949 = vpop.f32.mrf.mxu0
        %v3950 = vadd.f32 0.0, %v3949
        %v3951 = vpop.f32.mrf.mxu0
        %v3952 = vpop.f32.mrf.mxu0
        %v3953 = vpop.f32.mrf.mxu0
        %3954 = vdwg.mxu0
        %v3955 = vsel %vm3850, %v3950, -inf
        %3956 = vmax.xlane.f32.xlu0 %v3955
        %v3957 = vpop.xlane.xlu0 %3956
        %v3958 = vsub.f32 %v3950, %v3957
        %v3959 = vmul.f32 %v3958, 1.442695
        %v3960 = vpow.pop %v3959
        %v3961 = vsel %vm3850, %v3960, 0.0
        %3962 = vadd.xlane.f32.xlu0 %v3961
        %v3963 = vpop.xlane.xlu0 %3962
        %v3964 = vrcp.pop %v3963
        %v3965 = vmul.f32 %v3960, %v3964
        %v3966 = vpack.c.bf16 %v3965, %v3965
        %v3968 = vsel %vm3850, %v3966, 0
        %v3971 = vsel %vm3866, %v3914, 0
        %3973 = vmatprep.subr.bf16.mxu0 0
        %3974 = vmatpush1.bf16.msra.mxu0 0
        %3975 = vmatprep.subr.bf16.mxu0 0
        %3976 = vmatpush1.bf16.msra.mxu0 0
        %3977 = vmatprep.subr.bf16.mxu0 0
        %3978 = vmatpush1.bf16.msra.mxu0 0
        %3979 = vmatprep.subr.bf16.mxu0 0
        %3980 = vmatpush1.bf16.msra.mxu0 0
        %3981 = vmatprep.subr.bf16.mxu0 0
        %3982 = vmatpush1.bf16.msra.mxu0 0
        %3983 = vmatprep.subr.bf16.mxu0 0
        %3984 = vmatpush1.bf16.msra.mxu0 0
        %3985 = vmatprep.subr.bf16.mxu0 0
        %3986 = vmatpush1.bf16.msra.mxu0 0
        %3987 = vmatprep.subr.bf16.mxu0 0
        %3988 = vmatpush1.bf16.msra.mxu0 %v3971
        %3989 = vmatprep.subr.bf16.mxu0 0
        %3990 = vmatpush2.bf16.msra.mxu0 0
        %3991 = vmatprep.subr.bf16.mxu0 0
        %3992 = vmatpush2.bf16.msra.mxu0 0
        %3993 = vmatprep.subr.bf16.mxu0 0
        %3994 = vmatpush2.bf16.msra.mxu0 0
        %3995 = vmatprep.subr.bf16.mxu0 0
        %3996 = vmatpush2.bf16.msra.mxu0 0
        %3997 = vmatprep.subr.bf16.mxu0 0
        %3998 = vmatpush2.bf16.msra.mxu0 0
        %3999 = vmatprep.subr.bf16.mxu0 0
        %4000 = vmatpush2.bf16.msra.mxu0 0
        %4001 = vmatprep.subr.bf16.mxu0 0
        %4002 = vmatpush2.bf16.msra.mxu0 0
        %4003 = vmatprep.subr.bf16.mxu0 0
        %4004 = vmatpush2.bf16.msra.mxu0 0
        %4005 = vmatprep.mubr.bf16.mxu0 0
        %4006 = vmatmul.mubr.bf16.gmra.mxu0 %v3968
        %v4007 = vpop.f32.mrf.mxu0
        %v4008 = vadd.f32 0.0, %v4007
        %v4009 = vpop.f32.mrf.mxu0
        %v4010 = vpop.f32.mrf.mxu0
        %v4011 = vpop.f32.mrf.mxu0
        %4012 = vdwg.mxu0
        %v4013 = vpack.c.bf16 %v4008, %v4008
        %4014 = vst [vmem:[#allocation2 + $0x4] sm:$0xf] %v4013
        %v4015 = vpack.c.bf16 %v3227, %v3227
        %v4016 = vpack.c.bf16 %v3473, %v3473
        %v4017 = vpack.c.bf16 %v3719, %v3719
        %4018 = vmatprep.subr.bf16.mxu0 0
        %4019 = vmatpush1.bf16.xpose.msra.mxu0 0
        %4020 = vmatprep.subr.bf16.mxu0 0
        %4021 = vmatpush1.bf16.xpose.msra.mxu0 0
        %4022 = vmatprep.subr.bf16.mxu0 0
        %4023 = vmatpush1.bf16.xpose.msra.mxu0 0
        %4024 = vmatprep.subr.bf16.mxu0 0
        %4025 = vmatpush1.bf16.xpose.msra.mxu0 0
        %4026 = vmatprep.subr.bf16.mxu0 0
        %4027 = vmatpush1.bf16.xpose.msra.mxu0 0
        %4028 = vmatprep.subr.bf16.mxu0 0
        %4029 = vmatpush1.bf16.xpose.msra.mxu0 0
        %4030 = vmatprep.subr.bf16.mxu0 0
        %4031 = vmatpush1.bf16.xpose.msra.mxu0 0
        %4032 = vmatprep.subr.bf16.mxu0 0
        %4033 = vmatpush1.bf16.xpose.msra.mxu0 %v4016
        %4034 = vmatprep.subr.bf16.mxu0 0
        %4035 = vmatpush2.bf16.xpose.msra.mxu0 0
        %4036 = vmatprep.subr.bf16.mxu0 0
        %4037 = vmatpush2.bf16.xpose.msra.mxu0 0
        %4038 = vmatprep.subr.bf16.mxu0 0
        %4039 = vmatpush2.bf16.xpose.msra.mxu0 0
        %4040 = vmatprep.subr.bf16.mxu0 0
        %4041 = vmatpush2.bf16.xpose.msra.mxu0 0
        %4042 = vmatprep.subr.bf16.mxu0 0
        %4043 = vmatpush2.bf16.xpose.msra.mxu0 0
        %4044 = vmatprep.subr.bf16.mxu0 0
        %4045 = vmatpush2.bf16.xpose.msra.mxu0 0
        %4046 = vmatprep.subr.bf16.mxu0 0
        %4047 = vmatpush2.bf16.xpose.msra.mxu0 0
        %4048 = vmatprep.subr.bf16.mxu0 0
        %4049 = vmatpush2.bf16.xpose.msra.mxu0 0
        %4050 = vmatprep.mubr.bf16.mxu0 0
        %4051 = vmatmul.mubr.bf16.gmra.mxu0 %v4015
        %v4052 = vpop.f32.mrf.mxu0
        %v4053 = vadd.f32 0.0, %v4052
        %v4054 = vpop.f32.mrf.mxu0
        %v4055 = vpop.f32.mrf.mxu0
        %v4056 = vpop.f32.mrf.mxu0
        %4057 = vdwg.mxu0
        %v4058 = vsel %vm3850, %v4053, -inf
        %4059 = vmax.xlane.f32.xlu0 %v4058
        %v4060 = vpop.xlane.xlu0 %4059
        %v4061 = vsub.f32 %v4053, %v4060
        %v4062 = vmul.f32 %v4061, 1.442695
        %v4063 = vpow.pop %v4062
        %v4064 = vsel %vm3850, %v4063, 0.0
        %4065 = vadd.xlane.f32.xlu0 %v4064
        %v4066 = vpop.xlane.xlu0 %4065
        %v4067 = vrcp.pop %v4066
        %v4068 = vmul.f32 %v4063, %v4067
        %v4069 = vpack.c.bf16 %v4068, %v4068
        %v4071 = vsel %vm3850, %v4069, 0
        %v4074 = vsel %vm3866, %v4017, 0
        %4076 = vmatprep.subr.bf16.mxu0 0
        %4077 = vmatpush1.bf16.msra.mxu0 0
        %4078 = vmatprep.subr.bf16.mxu0 0
        %4079 = vmatpush1.bf16.msra.mxu0 0
        %4080 = vmatprep.subr.bf16.mxu0 0
        %4081 = vmatpush1.bf16.msra.mxu0 0
        %4082 = vmatprep.subr.bf16.mxu0 0
        %4083 = vmatpush1.bf16.msra.mxu0 0
        %4084 = vmatprep.subr.bf16.mxu0 0
        %4085 = vmatpush1.bf16.msra.mxu0 0
        %4086 = vmatprep.subr.bf16.mxu0 0
        %4087 = vmatpush1.bf16.msra.mxu0 0
        %4088 = vmatprep.subr.bf16.mxu0 0
        %4089 = vmatpush1.bf16.msra.mxu0 0
        %4090 = vmatprep.subr.bf16.mxu0 0
        %4091 = vmatpush1.bf16.msra.mxu0 %v4074
        %4092 = vmatprep.subr.bf16.mxu0 0
        %4093 = vmatpush2.bf16.msra.mxu0 0
        %4094 = vmatprep.subr.bf16.mxu0 0
        %4095 = vmatpush2.bf16.msra.mxu0 0
        %4096 = vmatprep.subr.bf16.mxu0 0
        %4097 = vmatpush2.bf16.msra.mxu0 0
        %4098 = vmatprep.subr.bf16.mxu0 0
        %4099 = vmatpush2.bf16.msra.mxu0 0
        %4100 = vmatprep.subr.bf16.mxu0 0
        %4101 = vmatpush2.bf16.msra.mxu0 0
        %4102 = vmatprep.subr.bf16.mxu0 0
        %4103 = vmatpush2.bf16.msra.mxu0 0
        %4104 = vmatprep.subr.bf16.mxu0 0
        %4105 = vmatpush2.bf16.msra.mxu0 0
        %4106 = vmatprep.subr.bf16.mxu0 0
        %4107 = vmatpush2.bf16.msra.mxu0 0
        %4108 = vmatprep.mubr.bf16.mxu0 0
        %4109 = vmatmul.mubr.bf16.gmra.mxu0 %v4071
        %v4110 = vpop.f32.mrf.mxu0
        %v4111 = vadd.f32 0.0, %v4110
        %v4112 = vpop.f32.mrf.mxu0
        %v4113 = vpop.f32.mrf.mxu0
        %v4114 = vpop.f32.mrf.mxu0
        %4115 = vdwg.mxu0
        %v4116 = vpack.c.bf16 %v4111, %v4111
        %4117 = vst [vmem:[#allocation2 + $0x8] sm:$0xf] %v4116
        %v4118 = vpack.c.bf16 %v3229, %v3229
        %v4119 = vpack.c.bf16 %v3475, %v3475
        %v4120 = vpack.c.bf16 %v3721, %v3721
        %4121 = vmatprep.subr.bf16.mxu0 0
        %4122 = vmatpush1.bf16.xpose.msra.mxu0 0
        %4123 = vmatprep.subr.bf16.mxu0 0
        %4124 = vmatpush1.bf16.xpose.msra.mxu0 0
        %4125 = vmatprep.subr.bf16.mxu0 0
        %4126 = vmatpush1.bf16.xpose.msra.mxu0 0
        %4127 = vmatprep.subr.bf16.mxu0 0
        %4128 = vmatpush1.bf16.xpose.msra.mxu0 0
        %4129 = vmatprep.subr.bf16.mxu0 0
        %4130 = vmatpush1.bf16.xpose.msra.mxu0 0
        %4131 = vmatprep.subr.bf16.mxu0 0
        %4132 = vmatpush1.bf16.xpose.msra.mxu0 0
        %4133 = vmatprep.subr.bf16.mxu0 0
        %4134 = vmatpush1.bf16.xpose.msra.mxu0 0
        %4135 = vmatprep.subr.bf16.mxu0 0
        %4136 = vmatpush1.bf16.xpose.msra.mxu0 %v4119
        %4137 = vmatprep.subr.bf16.mxu0 0
        %4138 = vmatpush2.bf16.xpose.msra.mxu0 0
        %4139 = vmatprep.subr.bf16.mxu0 0
        %4140 = vmatpush2.bf16.xpose.msra.mxu0 0
        %4141 = vmatprep.subr.bf16.mxu0 0
        %4142 = vmatpush2.bf16.xpose.msra.mxu0 0
        %4143 = vmatprep.subr.bf16.mxu0 0
        %4144 = vmatpush2.bf16.xpose.msra.mxu0 0
        %4145 = vmatprep.subr.bf16.mxu0 0
        %4146 = vmatpush2.bf16.xpose.msra.mxu0 0
        %4147 = vmatprep.subr.bf16.mxu0 0
        %4148 = vmatpush2.bf16.xpose.msra.mxu0 0
        %4149 = vmatprep.subr.bf16.mxu0 0
        %4150 = vmatpush2.bf16.xpose.msra.mxu0 0
        %4151 = vmatprep.subr.bf16.mxu0 0
        %4152 = vmatpush2.bf16.xpose.msra.mxu0 0
        %4153 = vmatprep.mubr.bf16.mxu0 0
        %4154 = vmatmul.mubr.bf16.gmra.mxu0 %v4118
        %v4155 = vpop.f32.mrf.mxu0
        %v4156 = vadd.f32 0.0, %v4155
        %v4157 = vpop.f32.mrf.mxu0
        %v4158 = vpop.f32.mrf.mxu0
        %v4159 = vpop.f32.mrf.mxu0
        %4160 = vdwg.mxu0
        %v4161 = vsel %vm3850, %v4156, -inf
        %4162 = vmax.xlane.f32.xlu0 %v4161
        %v4163 = vpop.xlane.xlu0 %4162
        %v4164 = vsub.f32 %v4156, %v4163
        %v4165 = vmul.f32 %v4164, 1.442695
        %v4166 = vpow.pop %v4165
        %v4167 = vsel %vm3850, %v4166, 0.0
        %4168 = vadd.xlane.f32.xlu0 %v4167
        %v4169 = vpop.xlane.xlu0 %4168
        %v4170 = vrcp.pop %v4169
        %v4171 = vmul.f32 %v4166, %v4170
        %v4172 = vpack.c.bf16 %v4171, %v4171
        %v4174 = vsel %vm3850, %v4172, 0
        %v4177 = vsel %vm3866, %v4120, 0
        %4179 = vmatprep.subr.bf16.mxu0 0
        %4180 = vmatpush1.bf16.msra.mxu0 0
        %4181 = vmatprep.subr.bf16.mxu0 0
        %4182 = vmatpush1.bf16.msra.mxu0 0
        %4183 = vmatprep.subr.bf16.mxu0 0
        %4184 = vmatpush1.bf16.msra.mxu0 0
        %4185 = vmatprep.subr.bf16.mxu0 0
        %4186 = vmatpush1.bf16.msra.mxu0 0
        %4187 = vmatprep.subr.bf16.mxu0 0
        %4188 = vmatpush1.bf16.msra.mxu0 0
        %4189 = vmatprep.subr.bf16.mxu0 0
        %4190 = vmatpush1.bf16.msra.mxu0 0
        %4191 = vmatprep.subr.bf16.mxu0 0
        %4192 = vmatpush1.bf16.msra.mxu0 0
        %4193 = vmatprep.subr.bf16.mxu0 0
        %4194 = vmatpush1.bf16.msra.mxu0 %v4177
        %4195 = vmatprep.subr.bf16.mxu0 0
        %4196 = vmatpush2.bf16.msra.mxu0 0
        %4197 = vmatprep.subr.bf16.mxu0 0
        %4198 = vmatpush2.bf16.msra.mxu0 0
        %4199 = vmatprep.subr.bf16.mxu0 0
        %4200 = vmatpush2.bf16.msra.mxu0 0
        %4201 = vmatprep.subr.bf16.mxu0 0
        %4202 = vmatpush2.bf16.msra.mxu0 0
        %4203 = vmatprep.subr.bf16.mxu0 0
        %4204 = vmatpush2.bf16.msra.mxu0 0
        %4205 = vmatprep.subr.bf16.mxu0 0
        %4206 = vmatpush2.bf16.msra.mxu0 0
        %4207 = vmatprep.subr.bf16.mxu0 0
        %4208 = vmatpush2.bf16.msra.mxu0 0
        %4209 = vmatprep.subr.bf16.mxu0 0
        %4210 = vmatpush2.bf16.msra.mxu0 0
        %4211 = vmatprep.mubr.bf16.mxu0 0
        %4212 = vmatmul.mubr.bf16.gmra.mxu0 %v4174
        %v4213 = vpop.f32.mrf.mxu0
        %v4214 = vadd.f32 0.0, %v4213
        %v4215 = vpop.f32.mrf.mxu0
        %v4216 = vpop.f32.mrf.mxu0
        %v4217 = vpop.f32.mrf.mxu0
        %4218 = vdwg.mxu0
        %v4219 = vpack.c.bf16 %v4214, %v4214
        %4220 = vst [vmem:[#allocation2 + $0xc] sm:$0xf] %v4219
        %v4221 = vpack.c.bf16 %v3309, %v3309
        %v4222 = vpack.c.bf16 %v3555, %v3555
        %v4223 = vpack.c.bf16 %v3801, %v3801
        %4224 = vmatprep.subr.bf16.mxu0 0
        %4225 = vmatpush1.bf16.xpose.msra.mxu0 0
        %4226 = vmatprep.subr.bf16.mxu0 0
        %4227 = vmatpush1.bf16.xpose.msra.mxu0 0
        %4228 = vmatprep.subr.bf16.mxu0 0
        %4229 = vmatpush1.bf16.xpose.msra.mxu0 0
        %4230 = vmatprep.subr.bf16.mxu0 0
        %4231 = vmatpush1.bf16.xpose.msra.mxu0 0
        %4232 = vmatprep.subr.bf16.mxu0 0
        %4233 = vmatpush1.bf16.xpose.msra.mxu0 0
        %4234 = vmatprep.subr.bf16.mxu0 0
        %4235 = vmatpush1.bf16.xpose.msra.mxu0 0
        %4236 = vmatprep.subr.bf16.mxu0 0
        %4237 = vmatpush1.bf16.xpose.msra.mxu0 0
        %4238 = vmatprep.subr.bf16.mxu0 0
        %4239 = vmatpush1.bf16.xpose.msra.mxu0 %v4222
        %4240 = vmatprep.subr.bf16.mxu0 0
        %4241 = vmatpush2.bf16.xpose.msra.mxu0 0
        %4242 = vmatprep.subr.bf16.mxu0 0
        %4243 = vmatpush2.bf16.xpose.msra.mxu0 0
        %4244 = vmatprep.subr.bf16.mxu0 0
        %4245 = vmatpush2.bf16.xpose.msra.mxu0 0
        %4246 = vmatprep.subr.bf16.mxu0 0
        %4247 = vmatpush2.bf16.xpose.msra.mxu0 0
        %4248 = vmatprep.subr.bf16.mxu0 0
        %4249 = vmatpush2.bf16.xpose.msra.mxu0 0
        %4250 = vmatprep.subr.bf16.mxu0 0
        %4251 = vmatpush2.bf16.xpose.msra.mxu0 0
        %4252 = vmatprep.subr.bf16.mxu0 0
        %4253 = vmatpush2.bf16.xpose.msra.mxu0 0
        %4254 = vmatprep.subr.bf16.mxu0 0
        %4255 = vmatpush2.bf16.xpose.msra.mxu0 0
        %4256 = vmatprep.mubr.bf16.mxu0 0
        %4257 = vmatmul.mubr.bf16.gmra.mxu0 %v4221
        %v4258 = vpop.f32.mrf.mxu0
        %v4259 = vadd.f32 0.0, %v4258
        %v4260 = vpop.f32.mrf.mxu0
        %v4261 = vpop.f32.mrf.mxu0
        %v4262 = vpop.f32.mrf.mxu0
        %4263 = vdwg.mxu0
        %v4264 = vsel %vm3850, %v4259, -inf
        %4265 = vmax.xlane.f32.xlu0 %v4264
        %v4266 = vpop.xlane.xlu0 %4265
        %v4267 = vsub.f32 %v4259, %v4266
        %v4268 = vmul.f32 %v4267, 1.442695
        %v4269 = vpow.pop %v4268
        %v4270 = vsel %vm3850, %v4269, 0.0
        %4271 = vadd.xlane.f32.xlu0 %v4270
        %v4272 = vpop.xlane.xlu0 %4271
        %v4273 = vrcp.pop %v4272
        %v4274 = vmul.f32 %v4269, %v4273
        %v4275 = vpack.c.bf16 %v4274, %v4274
        %v4277 = vsel %vm3850, %v4275, 0
        %v4280 = vsel %vm3866, %v4223, 0
        %4282 = vmatprep.subr.bf16.mxu0 0
        %4283 = vmatpush1.bf16.msra.mxu0 0
        %4284 = vmatprep.subr.bf16.mxu0 0
        %4285 = vmatpush1.bf16.msra.mxu0 0
        %4286 = vmatprep.subr.bf16.mxu0 0
        %4287 = vmatpush1.bf16.msra.mxu0 0
        %4288 = vmatprep.subr.bf16.mxu0 0
        %4289 = vmatpush1.bf16.msra.mxu0 0
        %4290 = vmatprep.subr.bf16.mxu0 0
        %4291 = vmatpush1.bf16.msra.mxu0 0
        %4292 = vmatprep.subr.bf16.mxu0 0
        %4293 = vmatpush1.bf16.msra.mxu0 0
        %4294 = vmatprep.subr.bf16.mxu0 0
        %4295 = vmatpush1.bf16.msra.mxu0 0
        %4296 = vmatprep.subr.bf16.mxu0 0
        %4297 = vmatpush1.bf16.msra.mxu0 %v4280
        %4298 = vmatprep.subr.bf16.mxu0 0
        %4299 = vmatpush2.bf16.msra.mxu0 0
        %4300 = vmatprep.subr.bf16.mxu0 0
        %4301 = vmatpush2.bf16.msra.mxu0 0
        %4302 = vmatprep.subr.bf16.mxu0 0
        %4303 = vmatpush2.bf16.msra.mxu0 0
        %4304 = vmatprep.subr.bf16.mxu0 0
        %4305 = vmatpush2.bf16.msra.mxu0 0
        %4306 = vmatprep.subr.bf16.mxu0 0
        %4307 = vmatpush2.bf16.msra.mxu0 0
        %4308 = vmatprep.subr.bf16.mxu0 0
        %4309 = vmatpush2.bf16.msra.mxu0 0
        %4310 = vmatprep.subr.bf16.mxu0 0
        %4311 = vmatpush2.bf16.msra.mxu0 0
        %4312 = vmatprep.subr.bf16.mxu0 0
        %4313 = vmatpush2.bf16.msra.mxu0 0
        %4314 = vmatprep.mubr.bf16.mxu0 0
        %4315 = vmatmul.mubr.bf16.gmra.mxu0 %v4277
        %v4316 = vpop.f32.mrf.mxu0
        %v4317 = vadd.f32 0.0, %v4316
        %v4318 = vpop.f32.mrf.mxu0
        %v4319 = vpop.f32.mrf.mxu0
        %v4320 = vpop.f32.mrf.mxu0
        %4321 = vdwg.mxu0
        %v4322 = vpack.c.bf16 %v4317, %v4317
        %4323 = vst [vmem:[#allocation2 + $0x10] sm:$0xf] %v4322
        %v4324 = vpack.c.bf16 %v3311, %v3311
        %v4325 = vpack.c.bf16 %v3557, %v3557
        %v4326 = vpack.c.bf16 %v3803, %v3803
        %4327 = vmatprep.subr.bf16.mxu0 0
        %4328 = vmatpush1.bf16.xpose.msra.mxu0 0
        %4329 = vmatprep.subr.bf16.mxu0 0
        %4330 = vmatpush1.bf16.xpose.msra.mxu0 0
        %4331 = vmatprep.subr.bf16.mxu0 0
        %4332 = vmatpush1.bf16.xpose.msra.mxu0 0
        %4333 = vmatprep.subr.bf16.mxu0 0
        %4334 = vmatpush1.bf16.xpose.msra.mxu0 0
        %4335 = vmatprep.subr.bf16.mxu0 0
        %4336 = vmatpush1.bf16.xpose.msra.mxu0 0
        %4337 = vmatprep.subr.bf16.mxu0 0
        %4338 = vmatpush1.bf16.xpose.msra.mxu0 0
        %4339 = vmatprep.subr.bf16.mxu0 0
        %4340 = vmatpush1.bf16.xpose.msra.mxu0 0
        %4341 = vmatprep.subr.bf16.mxu0 0
        %4342 = vmatpush1.bf16.xpose.msra.mxu0 %v4325
        %4343 = vmatprep.subr.bf16.mxu0 0
        %4344 = vmatpush2.bf16.xpose.msra.mxu0 0
        %4345 = vmatprep.subr.bf16.mxu0 0
        %4346 = vmatpush2.bf16.xpose.msra.mxu0 0
        %4347 = vmatprep.subr.bf16.mxu0 0
        %4348 = vmatpush2.bf16.xpose.msra.mxu0 0
        %4349 = vmatprep.subr.bf16.mxu0 0
        %4350 = vmatpush2.bf16.xpose.msra.mxu0 0
        %4351 = vmatprep.subr.bf16.mxu0 0
        %4352 = vmatpush2.bf16.xpose.msra.mxu0 0
        %4353 = vmatprep.subr.bf16.mxu0 0
        %4354 = vmatpush2.bf16.xpose.msra.mxu0 0
        %4355 = vmatprep.subr.bf16.mxu0 0
        %4356 = vmatpush2.bf16.xpose.msra.mxu0 0
        %4357 = vmatprep.subr.bf16.mxu0 0
        %4358 = vmatpush2.bf16.xpose.msra.mxu0 0
        %4359 = vmatprep.mubr.bf16.mxu0 0
        %4360 = vmatmul.mubr.bf16.gmra.mxu0 %v4324
        %v4361 = vpop.f32.mrf.mxu0
        %v4362 = vadd.f32 0.0, %v4361
        %v4363 = vpop.f32.mrf.mxu0
        %v4364 = vpop.f32.mrf.mxu0
        %v4365 = vpop.f32.mrf.mxu0
        %4366 = vdwg.mxu0
        %v4367 = vsel %vm3850, %v4362, -inf
        %4368 = vmax.xlane.f32.xlu0 %v4367
        %v4369 = vpop.xlane.xlu0 %4368
        %v4370 = vsub.f32 %v4362, %v4369
        %v4371 = vmul.f32 %v4370, 1.442695
        %v4372 = vpow.pop %v4371
        %v4373 = vsel %vm3850, %v4372, 0.0
        %4374 = vadd.xlane.f32.xlu0 %v4373
        %v4375 = vpop.xlane.xlu0 %4374
        %v4376 = vrcp.pop %v4375
        %v4377 = vmul.f32 %v4372, %v4376
        %v4378 = vpack.c.bf16 %v4377, %v4377
        %v4380 = vsel %vm3850, %v4378, 0
        %v4383 = vsel %vm3866, %v4326, 0
        %4385 = vmatprep.subr.bf16.mxu0 0
        %4386 = vmatpush1.bf16.msra.mxu0 0
        %4387 = vmatprep.subr.bf16.mxu0 0
        %4388 = vmatpush1.bf16.msra.mxu0 0
        %4389 = vmatprep.subr.bf16.mxu0 0
        %4390 = vmatpush1.bf16.msra.mxu0 0
        %4391 = vmatprep.subr.bf16.mxu0 0
        %4392 = vmatpush1.bf16.msra.mxu0 0
        %4393 = vmatprep.subr.bf16.mxu0 0
        %4394 = vmatpush1.bf16.msra.mxu0 0
        %4395 = vmatprep.subr.bf16.mxu0 0
        %4396 = vmatpush1.bf16.msra.mxu0 0
        %4397 = vmatprep.subr.bf16.mxu0 0
        %4398 = vmatpush1.bf16.msra.mxu0 0
        %4399 = vmatprep.subr.bf16.mxu0 0
        %4400 = vmatpush1.bf16.msra.mxu0 %v4383
        %4401 = vmatprep.subr.bf16.mxu0 0
        %4402 = vmatpush2.bf16.msra.mxu0 0
        %4403 = vmatprep.subr.bf16.mxu0 0
        %4404 = vmatpush2.bf16.msra.mxu0 0
        %4405 = vmatprep.subr.bf16.mxu0 0
        %4406 = vmatpush2.bf16.msra.mxu0 0
        %4407 = vmatprep.subr.bf16.mxu0 0
        %4408 = vmatpush2.bf16.msra.mxu0 0
        %4409 = vmatprep.subr.bf16.mxu0 0
        %4410 = vmatpush2.bf16.msra.mxu0 0
        %4411 = vmatprep.subr.bf16.mxu0 0
        %4412 = vmatpush2.bf16.msra.mxu0 0
        %4413 = vmatprep.subr.bf16.mxu0 0
        %4414 = vmatpush2.bf16.msra.mxu0 0
        %4415 = vmatprep.subr.bf16.mxu0 0
        %4416 = vmatpush2.bf16.msra.mxu0 0
        %4417 = vmatprep.mubr.bf16.mxu0 0
        %4418 = vmatmul.mubr.bf16.gmra.mxu0 %v4380
        %v4419 = vpop.f32.mrf.mxu0
        %v4420 = vadd.f32 0.0, %v4419
        %v4421 = vpop.f32.mrf.mxu0
        %v4422 = vpop.f32.mrf.mxu0
        %v4423 = vpop.f32.mrf.mxu0
        %4424 = vdwg.mxu0
        %v4425 = vpack.c.bf16 %v4420, %v4420
        %4426 = vst [vmem:[#allocation2 + $0x14] sm:$0xf] %v4425
        %v4427 = vld [vmem:[#allocation2] sm:$0xff]
        %v4428 = vld [vmem:[#allocation2 + $0x8] sm:$0xff]
        %v4429 = vld [vmem:[#allocation2 + $0x10] sm:$0xff]
        %v4430 = vld [vmem:[#allocation9] sm:$0xff]
        %v4431 = vld [vmem:[#allocation9 + $0x8] sm:$0xf]
        %v4432 = vld [vmem:[#allocation9 + $0xc] sm:$0xff]
        %v4433 = vld [vmem:[#allocation9 + $0x14] sm:$0xf]
        %v4434 = vld [vmem:[#allocation9 + $0x18] sm:$0xff]
        %v4435 = vld [vmem:[#allocation9 + $0x20] sm:$0xf]
        %v4436 = vld [vmem:[#allocation9 + $0x24] sm:$0xff]
        %v4437 = vld [vmem:[#allocation9 + $0x2c] sm:$0xf]
        %v4438 = vld [vmem:[#allocation9 + $0x30] sm:$0xff]
        %v4439 = vld [vmem:[#allocation9 + $0x38] sm:$0xf]
        %v4440 = vld [vmem:[#allocation9 + $0x3c] sm:$0xff]
        %v4441 = vld [vmem:[#allocation9 + $0x44] sm:$0xf]
        %v4442 = vld [vmem:[#allocation9 + $0x48] sm:$0xff]
        %v4443 = vld [vmem:[#allocation9 + $0x50] sm:$0xf]
        %v4444 = vld [vmem:[#allocation9 + $0x54] sm:$0xff]
        %v4445 = vld [vmem:[#allocation9 + $0x5c] sm:$0xf]
        %v4446 = vld [vmem:[#allocation9 + $0x60] sm:$0xff]
        %v4447 = vld [vmem:[#allocation9 + $0x68] sm:$0xf]
        %v4448 = vld [vmem:[#allocation9 + $0x6c] sm:$0xff]
        %v4449 = vld [vmem:[#allocation9 + $0x74] sm:$0xf]
        %v4450 = vld [vmem:[#allocation9 + $0x78] sm:$0xff]
        %v4451 = vld [vmem:[#allocation9 + $0x80] sm:$0xf]
        %v4452 = vld [vmem:[#allocation9 + $0x84] sm:$0xff]
        %v4453 = vld [vmem:[#allocation9 + $0x8c] sm:$0xf]
        %v4454 = vld [vmem:[#allocation9 + $0x90] sm:$0xff]
        %v4455 = vld [vmem:[#allocation9 + $0x98] sm:$0xf]
        %v4456 = vld [vmem:[#allocation9 + $0x9c] sm:$0xff]
        %v4457 = vld [vmem:[#allocation9 + $0xa4] sm:$0xf]
        %v4458 = vld [vmem:[#allocation9 + $0xa8] sm:$0xff]
        %v4459 = vld [vmem:[#allocation9 + $0xb0] sm:$0xf]
        %v4460 = vld [vmem:[#allocation9 + $0xb4] sm:$0xff]
        %v4461 = vld [vmem:[#allocation9 + $0xbc] sm:$0xf]
        %v4462 = vld [vmem:[#allocation9 + $0xc0] sm:$0xff]
        %v4463 = vld [vmem:[#allocation9 + $0xc8] sm:$0xf]
        %v4464 = vld [vmem:[#allocation9 + $0xcc] sm:$0xff]
        %v4465 = vld [vmem:[#allocation9 + $0xd4] sm:$0xf]
        %v4466 = vld [vmem:[#allocation9 + $0xd8] sm:$0xff]
        %v4467 = vld [vmem:[#allocation9 + $0xe0] sm:$0xf]
        %v4468 = vld [vmem:[#allocation9 + $0xe4] sm:$0xff]
        %v4469 = vld [vmem:[#allocation9 + $0xec] sm:$0xf]
        %v4470 = vld [vmem:[#allocation9 + $0xf0] sm:$0xff]
        %v4471 = vld [vmem:[#allocation9 + $0xf8] sm:$0xf]
        %v4472 = vld [vmem:[#allocation9 + $0xfc] sm:$0xff]
        %v4473 = vld [vmem:[#allocation9 + $0x104] sm:$0xf]
        %v4474 = vld [vmem:[#allocation9 + $0x108] sm:$0xff]
        %v4475 = vld [vmem:[#allocation9 + $0x110] sm:$0xf]
        %v4476 = vld [vmem:[#allocation9 + $0x114] sm:$0xff]
        %v4477 = vld [vmem:[#allocation9 + $0x11c] sm:$0xf]
        %v4478 = vld [vmem:[#allocation9 + $0x120] sm:$0xff]
        %v4479 = vld [vmem:[#allocation9 + $0x128] sm:$0xf]
        %v4480 = vld [vmem:[#allocation9 + $0x12c] sm:$0xff]
        %v4481 = vld [vmem:[#allocation9 + $0x134] sm:$0xf]
        %v4482 = vld [vmem:[#allocation9 + $0x138] sm:$0xff]
        %v4483 = vld [vmem:[#allocation9 + $0x140] sm:$0xf]
        %v4484 = vld [vmem:[#allocation9 + $0x144] sm:$0xff]
        %v4485 = vld [vmem:[#allocation9 + $0x14c] sm:$0xf]
        %v4486 = vld [vmem:[#allocation9 + $0x150] sm:$0xff]
        %v4487 = vld [vmem:[#allocation9 + $0x158] sm:$0xf]
        %v4488 = vld [vmem:[#allocation9 + $0x15c] sm:$0xff]
        %v4489 = vld [vmem:[#allocation9 + $0x164] sm:$0xf]
        %v4490 = vld [vmem:[#allocation9 + $0x168] sm:$0xff]
        %v4491 = vld [vmem:[#allocation9 + $0x170] sm:$0xf]
        %v4492 = vld [vmem:[#allocation9 + $0x174] sm:$0xff]
        %v4493 = vld [vmem:[#allocation9 + $0x17c] sm:$0xf]
        %v4494 = vld [vmem:[#allocation9 + $0x180] sm:$0xff]
        %v4495 = vld [vmem:[#allocation9 + $0x188] sm:$0xf]
        %v4496 = vld [vmem:[#allocation9 + $0x18c] sm:$0xff]
        %v4497 = vld [vmem:[#allocation9 + $0x194] sm:$0xf]
        %v4498 = vld [vmem:[#allocation9 + $0x198] sm:$0xff]
        %v4499 = vld [vmem:[#allocation9 + $0x1a0] sm:$0xf]
        %v4500 = vld [vmem:[#allocation9 + $0x1a4] sm:$0xff]
        %v4501 = vld [vmem:[#allocation9 + $0x1ac] sm:$0xf]
        %v4502 = vld [vmem:[#allocation9 + $0x1b0] sm:$0xff]
        %v4503 = vld [vmem:[#allocation9 + $0x1b8] sm:$0xf]
        %v4504 = vld [vmem:[#allocation9 + $0x1bc] sm:$0xff]
        %v4505 = vld [vmem:[#allocation9 + $0x1c4] sm:$0xf]
        %v4506 = vld [vmem:[#allocation9 + $0x1c8] sm:$0xff]
        %v4507 = vld [vmem:[#allocation9 + $0x1d0] sm:$0xf]
        %v4508 = vld [vmem:[#allocation9 + $0x1d4] sm:$0xff]
        %v4509 = vld [vmem:[#allocation9 + $0x1dc] sm:$0xf]
        %v4510 = vld [vmem:[#allocation9 + $0x1e0] sm:$0xff]
        %v4511 = vld [vmem:[#allocation9 + $0x1e8] sm:$0xf]
        %v4512 = vld [vmem:[#allocation9 + $0x1ec] sm:$0xff]
        %v4513 = vld [vmem:[#allocation9 + $0x1f4] sm:$0xf]
        %v4514 = vld [vmem:[#allocation9 + $0x1f8] sm:$0xff]
        %v4515 = vld [vmem:[#allocation9 + $0x200] sm:$0xf]
        %v4516 = vld [vmem:[#allocation9 + $0x204] sm:$0xff]
        %v4517 = vld [vmem:[#allocation9 + $0x20c] sm:$0xf]
        %v4518 = vld [vmem:[#allocation9 + $0x210] sm:$0xff]
        %v4519 = vld [vmem:[#allocation9 + $0x218] sm:$0xf]
        %v4520 = vld [vmem:[#allocation9 + $0x21c] sm:$0xff]
        %v4521 = vld [vmem:[#allocation9 + $0x224] sm:$0xf]
        %v4522 = vld [vmem:[#allocation9 + $0x228] sm:$0xff]
        %v4523 = vld [vmem:[#allocation9 + $0x230] sm:$0xf]
        %v4524 = vld [vmem:[#allocation9 + $0x234] sm:$0xff]
        %v4525 = vld [vmem:[#allocation9 + $0x23c] sm:$0xf]
        %v4526 = vld [vmem:[#allocation9 + $0x240] sm:$0xff]
        %v4527 = vld [vmem:[#allocation9 + $0x248] sm:$0xf]
        %v4528 = vld [vmem:[#allocation9 + $0x24c] sm:$0xff]
        %v4529 = vld [vmem:[#allocation9 + $0x254] sm:$0xf]
        %v4530 = vld [vmem:[#allocation9 + $0x258] sm:$0xff]
        %v4531 = vld [vmem:[#allocation9 + $0x260] sm:$0xf]
        %v4532 = vld [vmem:[#allocation9 + $0x264] sm:$0xff]
        %v4533 = vld [vmem:[#allocation9 + $0x26c] sm:$0xf]
        %v4534 = vld [vmem:[#allocation9 + $0x270] sm:$0xff]
        %v4535 = vld [vmem:[#allocation9 + $0x278] sm:$0xf]
        %v4536 = vld [vmem:[#allocation9 + $0x27c] sm:$0xff]
        %v4537 = vld [vmem:[#allocation9 + $0x284] sm:$0xf]
        %v4538 = vld [vmem:[#allocation9 + $0x288] sm:$0xff]
        %v4539 = vld [vmem:[#allocation9 + $0x290] sm:$0xf]
        %v4540 = vld [vmem:[#allocation9 + $0x294] sm:$0xff]
        %v4541 = vld [vmem:[#allocation9 + $0x29c] sm:$0xf]
        %v4542 = vld [vmem:[#allocation9 + $0x2a0] sm:$0xff]
        %v4543 = vld [vmem:[#allocation9 + $0x2a8] sm:$0xf]
        %v4544 = vld [vmem:[#allocation9 + $0x2ac] sm:$0xff]
        %v4545 = vld [vmem:[#allocation9 + $0x2b4] sm:$0xf]
        %v4546 = vld [vmem:[#allocation9 + $0x2b8] sm:$0xff]
        %v4547 = vld [vmem:[#allocation9 + $0x2c0] sm:$0xf]
        %v4548 = vld [vmem:[#allocation9 + $0x2c4] sm:$0xff]
        %v4549 = vld [vmem:[#allocation9 + $0x2cc] sm:$0xf]
        %v4550 = vld [vmem:[#allocation9 + $0x2d0] sm:$0xff]
        %v4551 = vld [vmem:[#allocation9 + $0x2d8] sm:$0xf]
        %v4552 = vld [vmem:[#allocation9 + $0x2dc] sm:$0xff]
        %v4553 = vld [vmem:[#allocation9 + $0x2e4] sm:$0xf]
        %v4554 = vld [vmem:[#allocation9 + $0x2e8] sm:$0xff]
        %v4555 = vld [vmem:[#allocation9 + $0x2f0] sm:$0xf]
        %v4556 = vld [vmem:[#allocation9 + $0x2f4] sm:$0xff]
        %v4557 = vld [vmem:[#allocation9 + $0x2fc] sm:$0xf]
        %v4558 = vld [vmem:[#allocation9 + $0x300] sm:$0xff]
        %v4559 = vld [vmem:[#allocation9 + $0x308] sm:$0xf]
        %v4560 = vld [vmem:[#allocation9 + $0x30c] sm:$0xff]
        %v4561 = vld [vmem:[#allocation9 + $0x314] sm:$0xf]
        %v4562 = vld [vmem:[#allocation9 + $0x318] sm:$0xff]
        %v4563 = vld [vmem:[#allocation9 + $0x320] sm:$0xf]
        %v4564 = vld [vmem:[#allocation9 + $0x324] sm:$0xff]
        %v4565 = vld [vmem:[#allocation9 + $0x32c] sm:$0xf]
        %v4566 = vld [vmem:[#allocation9 + $0x330] sm:$0xff]
        %v4567 = vld [vmem:[#allocation9 + $0x338] sm:$0xf]
        %v4568 = vld [vmem:[#allocation9 + $0x33c] sm:$0xff]
        %v4569 = vld [vmem:[#allocation9 + $0x344] sm:$0xf]
        %v4570 = vld [vmem:[#allocation9 + $0x348] sm:$0xff]
        %v4571 = vld [vmem:[#allocation9 + $0x350] sm:$0xf]
        %v4572 = vld [vmem:[#allocation9 + $0x354] sm:$0xff]
        %v4573 = vld [vmem:[#allocation9 + $0x35c] sm:$0xf]
        %v4574 = vld [vmem:[#allocation9 + $0x360] sm:$0xff]
        %v4575 = vld [vmem:[#allocation9 + $0x368] sm:$0xf]
        %v4576 = vld [vmem:[#allocation9 + $0x36c] sm:$0xff]
        %v4577 = vld [vmem:[#allocation9 + $0x374] sm:$0xf]
        %v4578 = vld [vmem:[#allocation9 + $0x378] sm:$0xff]
        %v4579 = vld [vmem:[#allocation9 + $0x380] sm:$0xf]
        %v4580 = vld [vmem:[#allocation9 + $0x384] sm:$0xff]
        %v4581 = vld [vmem:[#allocation9 + $0x38c] sm:$0xf]
        %v4582 = vld [vmem:[#allocation9 + $0x390] sm:$0xff]
        %v4583 = vld [vmem:[#allocation9 + $0x398] sm:$0xf]
        %v4584 = vld [vmem:[#allocation9 + $0x39c] sm:$0xff]
        %v4585 = vld [vmem:[#allocation9 + $0x3a4] sm:$0xf]
        %v4586 = vld [vmem:[#allocation9 + $0x3a8] sm:$0xff]
        %v4587 = vld [vmem:[#allocation9 + $0x3b0] sm:$0xf]
        %v4588 = vld [vmem:[#allocation9 + $0x3b4] sm:$0xff]
        %v4589 = vld [vmem:[#allocation9 + $0x3bc] sm:$0xf]
        %v4590 = vld [vmem:[#allocation9 + $0x3c0] sm:$0xff]
        %v4591 = vld [vmem:[#allocation9 + $0x3c8] sm:$0xf]
        %v4592 = vld [vmem:[#allocation9 + $0x3cc] sm:$0xff]
        %v4593 = vld [vmem:[#allocation9 + $0x3d4] sm:$0xf]
        %v4594 = vld [vmem:[#allocation9 + $0x3d8] sm:$0xff]
        %v4595 = vld [vmem:[#allocation9 + $0x3e0] sm:$0xf]
        %v4596 = vld [vmem:[#allocation9 + $0x3e4] sm:$0xff]
        %v4597 = vld [vmem:[#allocation9 + $0x3ec] sm:$0xf]
        %v4598 = vld [vmem:[#allocation9 + $0x3f0] sm:$0xff]
        %v4599 = vld [vmem:[#allocation9 + $0x3f8] sm:$0xf]
        %v4600 = vld [vmem:[#allocation9 + $0x3fc] sm:$0xff]
        %v4601 = vld [vmem:[#allocation9 + $0x404] sm:$0xf]
        %v4602 = vld [vmem:[#allocation9 + $0x408] sm:$0xff]
        %v4603 = vld [vmem:[#allocation9 + $0x410] sm:$0xf]
        %v4604 = vld [vmem:[#allocation9 + $0x414] sm:$0xff]
        %v4605 = vld [vmem:[#allocation9 + $0x41c] sm:$0xf]
        %v4606 = vld [vmem:[#allocation9 + $0x420] sm:$0xff]
        %v4607 = vld [vmem:[#allocation9 + $0x428] sm:$0xf]
        %v4608 = vld [vmem:[#allocation9 + $0x42c] sm:$0xff]
        %v4609 = vld [vmem:[#allocation9 + $0x434] sm:$0xf]
        %v4610 = vld [vmem:[#allocation9 + $0x438] sm:$0xff]
        %v4611 = vld [vmem:[#allocation9 + $0x440] sm:$0xf]
        %v4612 = vld [vmem:[#allocation9 + $0x444] sm:$0xff]
        %v4613 = vld [vmem:[#allocation9 + $0x44c] sm:$0xf]
        %v4614 = vld [vmem:[#allocation9 + $0x450] sm:$0xff]
        %v4615 = vld [vmem:[#allocation9 + $0x458] sm:$0xf]
        %v4616 = vld [vmem:[#allocation9 + $0x45c] sm:$0xff]
        %v4617 = vld [vmem:[#allocation9 + $0x464] sm:$0xf]
        %v4618 = vld [vmem:[#allocation9 + $0x468] sm:$0xff]
        %v4619 = vld [vmem:[#allocation9 + $0x470] sm:$0xf]
        %v4620 = vld [vmem:[#allocation9 + $0x474] sm:$0xff]
        %v4621 = vld [vmem:[#allocation9 + $0x47c] sm:$0xf]
        %v4622 = vld [vmem:[#allocation11] sm:$0x7]
        %v4624 = vlaneseq
        %v4625 = vshrl.u32 %v4624, 7
        %v4626 = vsub.s32 0, %v4625
        %v4627 = vrot.slane %v4622, %v4626
        %v4628 = vlaneseq
        %v4629 = vshrl.u32 %v4628, 7
        %v4630 = vsub.s32 1, %v4629
        %v4631 = vrot.slane %v4622, %v4630
        %v4632 = vlaneseq
        %v4633 = vshrl.u32 %v4632, 7
        %v4634 = vsub.s32 2, %v4633
        %v4635 = vrot.slane %v4622, %v4634
        %v4642 = vunpack.c.l.b16 %v4427
        %v4643 = vunpack.c.h.b16 %v4427
        %v4644 = vunpack.c.l.b16 %v4428
        %v4645 = vunpack.c.h.b16 %v4428
        %v4646 = vunpack.c.l.b16 %v4429
        %v4647 = vunpack.c.h.b16 %v4429
        %v4648 = vpack.c.b16 %v4642, %v4642
        %v4649 = vpack.c.b16 %v4643, %v4643
        %v4650 = vpack.c.b16 %v4644, %v4644
        %v4651 = vpack.c.b16 %v4645, %v4645
        %v4652 = vpack.c.b16 %v4646, %v4646
        %v4653 = vpack.c.b16 %v4647, %v4647
        %v4852 = vunpack.c.l.b16 %v4430
        %v4853 = vunpack.c.h.b16 %v4430
        %v4854 = vunpack.c.l.b16 %v4431
        %v4855 = vunpack.c.l.b16 %v4432
        %v4856 = vunpack.c.h.b16 %v4432
        %v4857 = vunpack.c.l.b16 %v4433
        %v4858 = vunpack.c.l.b16 %v4434
        %v4859 = vunpack.c.h.b16 %v4434
        %v4860 = vunpack.c.l.b16 %v4435
        %v4861 = vunpack.c.l.b16 %v4436
        %v4862 = vunpack.c.h.b16 %v4436
        %v4863 = vunpack.c.l.b16 %v4437
        %v4864 = vunpack.c.l.b16 %v4438
        %v4865 = vunpack.c.h.b16 %v4438
        %v4866 = vunpack.c.l.b16 %v4439
        %v4867 = vunpack.c.l.b16 %v4440
        %v4868 = vunpack.c.h.b16 %v4440
        %v4869 = vunpack.c.l.b16 %v4441
        %v4870 = vunpack.c.l.b16 %v4442
        %v4871 = vunpack.c.h.b16 %v4442
        %v4872 = vunpack.c.l.b16 %v4443
        %v4873 = vunpack.c.l.b16 %v4444
        %v4874 = vunpack.c.h.b16 %v4444
        %v4875 = vunpack.c.l.b16 %v4445
        %v4876 = vunpack.c.l.b16 %v4446
        %v4877 = vunpack.c.h.b16 %v4446
        %v4878 = vunpack.c.l.b16 %v4447
        %v4879 = vunpack.c.l.b16 %v4448
        %v4880 = vunpack.c.h.b16 %v4448
        %v4881 = vunpack.c.l.b16 %v4449
        %v4882 = vunpack.c.l.b16 %v4450
        %v4883 = vunpack.c.h.b16 %v4450
        %v4884 = vunpack.c.l.b16 %v4451
        %v4885 = vunpack.c.l.b16 %v4452
        %v4886 = vunpack.c.h.b16 %v4452
        %v4887 = vunpack.c.l.b16 %v4453
        %v4888 = vunpack.c.l.b16 %v4454
        %v4889 = vunpack.c.h.b16 %v4454
        %v4890 = vunpack.c.l.b16 %v4455
        %v4891 = vunpack.c.l.b16 %v4456
        %v4892 = vunpack.c.h.b16 %v4456
        %v4893 = vunpack.c.l.b16 %v4457
        %v4894 = vunpack.c.l.b16 %v4458
        %v4895 = vunpack.c.h.b16 %v4458
        %v4896 = vunpack.c.l.b16 %v4459
        %v4897 = vunpack.c.l.b16 %v4460
        %v4898 = vunpack.c.h.b16 %v4460
        %v4899 = vunpack.c.l.b16 %v4461
        %v4900 = vunpack.c.l.b16 %v4462
        %v4901 = vunpack.c.h.b16 %v4462
        %v4902 = vunpack.c.l.b16 %v4463
        %v4903 = vunpack.c.l.b16 %v4464
        %v4904 = vunpack.c.h.b16 %v4464
        %v4905 = vunpack.c.l.b16 %v4465
        %v4906 = vunpack.c.l.b16 %v4466
        %v4907 = vunpack.c.h.b16 %v4466
        %v4908 = vunpack.c.l.b16 %v4467
        %v4909 = vunpack.c.l.b16 %v4468
        %v4910 = vunpack.c.h.b16 %v4468
        %v4911 = vunpack.c.l.b16 %v4469
        %v4912 = vunpack.c.l.b16 %v4470
        %v4913 = vunpack.c.h.b16 %v4470
        %v4914 = vunpack.c.l.b16 %v4471
        %v4915 = vunpack.c.l.b16 %v4472
        %v4916 = vunpack.c.h.b16 %v4472
        %v4917 = vunpack.c.l.b16 %v4473
        %v4918 = vunpack.c.l.b16 %v4474
        %v4919 = vunpack.c.h.b16 %v4474
        %v4920 = vunpack.c.l.b16 %v4475
        %v4921 = vunpack.c.l.b16 %v4476
        %v4922 = vunpack.c.h.b16 %v4476
        %v4923 = vunpack.c.l.b16 %v4477
        %v4924 = vunpack.c.l.b16 %v4478
        %v4925 = vunpack.c.h.b16 %v4478
        %v4926 = vunpack.c.l.b16 %v4479
        %v4927 = vunpack.c.l.b16 %v4480
        %v4928 = vunpack.c.h.b16 %v4480
        %v4929 = vunpack.c.l.b16 %v4481
        %v4930 = vunpack.c.l.b16 %v4482
        %v4931 = vunpack.c.h.b16 %v4482
        %v4932 = vunpack.c.l.b16 %v4483
        %v4933 = vunpack.c.l.b16 %v4484
        %v4934 = vunpack.c.h.b16 %v4484
        %v4935 = vunpack.c.l.b16 %v4485
        %v4936 = vunpack.c.l.b16 %v4486
        %v4937 = vunpack.c.h.b16 %v4486
        %v4938 = vunpack.c.l.b16 %v4487
        %v4939 = vunpack.c.l.b16 %v4488
        %v4940 = vunpack.c.h.b16 %v4488
        %v4941 = vunpack.c.l.b16 %v4489
        %v4942 = vunpack.c.l.b16 %v4490
        %v4943 = vunpack.c.h.b16 %v4490
        %v4944 = vunpack.c.l.b16 %v4491
        %v4945 = vunpack.c.l.b16 %v4492
        %v4946 = vunpack.c.h.b16 %v4492
        %v4947 = vunpack.c.l.b16 %v4493
        %v4948 = vunpack.c.l.b16 %v4494
        %v4949 = vunpack.c.h.b16 %v4494
        %v4950 = vunpack.c.l.b16 %v4495
        %v4951 = vunpack.c.l.b16 %v4496
        %v4952 = vunpack.c.h.b16 %v4496
        %v4953 = vunpack.c.l.b16 %v4497
        %v4954 = vunpack.c.l.b16 %v4498
        %v4955 = vunpack.c.h.b16 %v4498
        %v4956 = vunpack.c.l.b16 %v4499
        %v4957 = vunpack.c.l.b16 %v4500
        %v4958 = vunpack.c.h.b16 %v4500
        %v4959 = vunpack.c.l.b16 %v4501
        %v4960 = vunpack.c.l.b16 %v4502
        %v4961 = vunpack.c.h.b16 %v4502
        %v4962 = vunpack.c.l.b16 %v4503
        %v4963 = vunpack.c.l.b16 %v4504
        %v4964 = vunpack.c.h.b16 %v4504
        %v4965 = vunpack.c.l.b16 %v4505
        %v4966 = vunpack.c.l.b16 %v4506
        %v4967 = vunpack.c.h.b16 %v4506
        %v4968 = vunpack.c.l.b16 %v4507
        %v4969 = vunpack.c.l.b16 %v4508
        %v4970 = vunpack.c.h.b16 %v4508
        %v4971 = vunpack.c.l.b16 %v4509
        %v4972 = vunpack.c.l.b16 %v4510
        %v4973 = vunpack.c.h.b16 %v4510
        %v4974 = vunpack.c.l.b16 %v4511
        %v4975 = vunpack.c.l.b16 %v4512
        %v4976 = vunpack.c.h.b16 %v4512
        %v4977 = vunpack.c.l.b16 %v4513
        %v4978 = vunpack.c.l.b16 %v4514
        %v4979 = vunpack.c.h.b16 %v4514
        %v4980 = vunpack.c.l.b16 %v4515
        %v4981 = vunpack.c.l.b16 %v4516
        %v4982 = vunpack.c.h.b16 %v4516
        %v4983 = vunpack.c.l.b16 %v4517
        %v4984 = vunpack.c.l.b16 %v4518
        %v4985 = vunpack.c.h.b16 %v4518
        %v4986 = vunpack.c.l.b16 %v4519
        %v4987 = vunpack.c.l.b16 %v4520
        %v4988 = vunpack.c.h.b16 %v4520
        %v4989 = vunpack.c.l.b16 %v4521
        %v4990 = vunpack.c.l.b16 %v4522
        %v4991 = vunpack.c.h.b16 %v4522
        %v4992 = vunpack.c.l.b16 %v4523
        %v4993 = vunpack.c.l.b16 %v4524
        %v4994 = vunpack.c.h.b16 %v4524
        %v4995 = vunpack.c.l.b16 %v4525
        %v4996 = vunpack.c.l.b16 %v4526
        %v4997 = vunpack.c.h.b16 %v4526
        %v4998 = vunpack.c.l.b16 %v4527
        %v4999 = vunpack.c.l.b16 %v4528
        %v5000 = vunpack.c.h.b16 %v4528
        %v5001 = vunpack.c.l.b16 %v4529
        %v5002 = vunpack.c.l.b16 %v4530
        %v5003 = vunpack.c.h.b16 %v4530
        %v5004 = vunpack.c.l.b16 %v4531
        %v5005 = vunpack.c.l.b16 %v4532
        %v5006 = vunpack.c.h.b16 %v4532
        %v5007 = vunpack.c.l.b16 %v4533
        %v5008 = vunpack.c.l.b16 %v4534
        %v5009 = vunpack.c.h.b16 %v4534
        %v5010 = vunpack.c.l.b16 %v4535
        %v5011 = vunpack.c.l.b16 %v4536
        %v5012 = vunpack.c.h.b16 %v4536
        %v5013 = vunpack.c.l.b16 %v4537
        %v5014 = vunpack.c.l.b16 %v4538
        %v5015 = vunpack.c.h.b16 %v4538
        %v5016 = vunpack.c.l.b16 %v4539
        %v5017 = vunpack.c.l.b16 %v4540
        %v5018 = vunpack.c.h.b16 %v4540
        %v5019 = vunpack.c.l.b16 %v4541
        %v5020 = vunpack.c.l.b16 %v4542
        %v5021 = vunpack.c.h.b16 %v4542
        %v5022 = vunpack.c.l.b16 %v4543
        %v5023 = vunpack.c.l.b16 %v4544
        %v5024 = vunpack.c.h.b16 %v4544
        %v5025 = vunpack.c.l.b16 %v4545
        %v5026 = vunpack.c.l.b16 %v4546
        %v5027 = vunpack.c.h.b16 %v4546
        %v5028 = vunpack.c.l.b16 %v4547
        %v5029 = vunpack.c.l.b16 %v4548
        %v5030 = vunpack.c.h.b16 %v4548
        %v5031 = vunpack.c.l.b16 %v4549
        %v5032 = vunpack.c.l.b16 %v4550
        %v5033 = vunpack.c.h.b16 %v4550
        %v5034 = vunpack.c.l.b16 %v4551
        %v5035 = vunpack.c.l.b16 %v4552
        %v5036 = vunpack.c.h.b16 %v4552
        %v5037 = vunpack.c.l.b16 %v4553
        %v5038 = vunpack.c.l.b16 %v4554
        %v5039 = vunpack.c.h.b16 %v4554
        %v5040 = vunpack.c.l.b16 %v4555
        %v5041 = vunpack.c.l.b16 %v4556
        %v5042 = vunpack.c.h.b16 %v4556
        %v5043 = vunpack.c.l.b16 %v4557
        %v5044 = vunpack.c.l.b16 %v4558
        %v5045 = vunpack.c.h.b16 %v4558
        %v5046 = vunpack.c.l.b16 %v4559
        %v5047 = vunpack.c.l.b16 %v4560
        %v5048 = vunpack.c.h.b16 %v4560
        %v5049 = vunpack.c.l.b16 %v4561
        %v5050 = vunpack.c.l.b16 %v4562
        %v5051 = vunpack.c.h.b16 %v4562
        %v5052 = vunpack.c.l.b16 %v4563
        %v5053 = vunpack.c.l.b16 %v4564
        %v5054 = vunpack.c.h.b16 %v4564
        %v5055 = vunpack.c.l.b16 %v4565
        %v5056 = vunpack.c.l.b16 %v4566
        %v5057 = vunpack.c.h.b16 %v4566
        %v5058 = vunpack.c.l.b16 %v4567
        %v5059 = vunpack.c.l.b16 %v4568
        %v5060 = vunpack.c.h.b16 %v4568
        %v5061 = vunpack.c.l.b16 %v4569
        %v5062 = vunpack.c.l.b16 %v4570
        %v5063 = vunpack.c.h.b16 %v4570
        %v5064 = vunpack.c.l.b16 %v4571
        %v5065 = vunpack.c.l.b16 %v4572
        %v5066 = vunpack.c.h.b16 %v4572
        %v5067 = vunpack.c.l.b16 %v4573
        %v5068 = vunpack.c.l.b16 %v4574
        %v5069 = vunpack.c.h.b16 %v4574
        %v5070 = vunpack.c.l.b16 %v4575
        %v5071 = vunpack.c.l.b16 %v4576
        %v5072 = vunpack.c.h.b16 %v4576
        %v5073 = vunpack.c.l.b16 %v4577
        %v5074 = vunpack.c.l.b16 %v4578
        %v5075 = vunpack.c.h.b16 %v4578
        %v5076 = vunpack.c.l.b16 %v4579
        %v5077 = vunpack.c.l.b16 %v4580
        %v5078 = vunpack.c.h.b16 %v4580
        %v5079 = vunpack.c.l.b16 %v4581
        %v5080 = vunpack.c.l.b16 %v4582
        %v5081 = vunpack.c.h.b16 %v4582
        %v5082 = vunpack.c.l.b16 %v4583
        %v5083 = vunpack.c.l.b16 %v4584
        %v5084 = vunpack.c.h.b16 %v4584
        %v5085 = vunpack.c.l.b16 %v4585
        %v5086 = vunpack.c.l.b16 %v4586
        %v5087 = vunpack.c.h.b16 %v4586
        %v5088 = vunpack.c.l.b16 %v4587
        %v5089 = vunpack.c.l.b16 %v4588
        %v5090 = vunpack.c.h.b16 %v4588
        %v5091 = vunpack.c.l.b16 %v4589
        %v5092 = vunpack.c.l.b16 %v4590
        %v5093 = vunpack.c.h.b16 %v4590
        %v5094 = vunpack.c.l.b16 %v4591
        %v5095 = vunpack.c.l.b16 %v4592
        %v5096 = vunpack.c.h.b16 %v4592
        %v5097 = vunpack.c.l.b16 %v4593
        %v5098 = vunpack.c.l.b16 %v4594
        %v5099 = vunpack.c.h.b16 %v4594
        %v5100 = vunpack.c.l.b16 %v4595
        %v5101 = vunpack.c.l.b16 %v4596
        %v5102 = vunpack.c.h.b16 %v4596
        %v5103 = vunpack.c.l.b16 %v4597
        %v5104 = vunpack.c.l.b16 %v4598
        %v5105 = vunpack.c.h.b16 %v4598
        %v5106 = vunpack.c.l.b16 %v4599
        %v5107 = vunpack.c.l.b16 %v4600
        %v5108 = vunpack.c.h.b16 %v4600
        %v5109 = vunpack.c.l.b16 %v4601
        %v5110 = vunpack.c.l.b16 %v4602
        %v5111 = vunpack.c.h.b16 %v4602
        %v5112 = vunpack.c.l.b16 %v4603
        %v5113 = vunpack.c.l.b16 %v4604
        %v5114 = vunpack.c.h.b16 %v4604
        %v5115 = vunpack.c.l.b16 %v4605
        %v5116 = vunpack.c.l.b16 %v4606
        %v5117 = vunpack.c.h.b16 %v4606
        %v5118 = vunpack.c.l.b16 %v4607
        %v5119 = vunpack.c.l.b16 %v4608
        %v5120 = vunpack.c.h.b16 %v4608
        %v5121 = vunpack.c.l.b16 %v4609
        %v5122 = vunpack.c.l.b16 %v4610
        %v5123 = vunpack.c.h.b16 %v4610
        %v5124 = vunpack.c.l.b16 %v4611
        %v5125 = vunpack.c.l.b16 %v4612
        %v5126 = vunpack.c.h.b16 %v4612
        %v5127 = vunpack.c.l.b16 %v4613
        %v5128 = vunpack.c.l.b16 %v4614
        %v5129 = vunpack.c.h.b16 %v4614
        %v5130 = vunpack.c.l.b16 %v4615
        %v5131 = vunpack.c.l.b16 %v4616
        %v5132 = vunpack.c.h.b16 %v4616
        %v5133 = vunpack.c.l.b16 %v4617
        %v5134 = vunpack.c.l.b16 %v4618
        %v5135 = vunpack.c.h.b16 %v4618
        %v5136 = vunpack.c.l.b16 %v4619
        %v5137 = vunpack.c.l.b16 %v4620
        %v5138 = vunpack.c.h.b16 %v4620
        %v5139 = vunpack.c.l.b16 %v4621
        %v5140 = vpack.c.b16 %v4855, %v4852
        %v5141 = vpack.c.b16 %v4856, %v4853
        %v5142 = vpack.c.b16 %v4857, %v4854
        %v5143 = vpack.c.b16 %v4861, %v4858
        %v5144 = vpack.c.b16 %v4862, %v4859
        %v5145 = vpack.c.b16 %v4863, %v4860
        %v5146 = vpack.c.b16 %v4867, %v4864
        %v5147 = vpack.c.b16 %v4868, %v4865
        %v5148 = vpack.c.b16 %v4869, %v4866
        %v5149 = vpack.c.b16 %v4873, %v4870
        %v5150 = vpack.c.b16 %v4874, %v4871
        %v5151 = vpack.c.b16 %v4875, %v4872
        %v5152 = vpack.c.b16 %v4879, %v4876
        %v5153 = vpack.c.b16 %v4880, %v4877
        %v5154 = vpack.c.b16 %v4881, %v4878
        %v5155 = vpack.c.b16 %v4885, %v4882
        %v5156 = vpack.c.b16 %v4886, %v4883
        %v5157 = vpack.c.b16 %v4887, %v4884
        %v5158 = vpack.c.b16 %v4891, %v4888
        %v5159 = vpack.c.b16 %v4892, %v4889
        %v5160 = vpack.c.b16 %v4893, %v4890
        %v5161 = vpack.c.b16 %v4897, %v4894
        %v5162 = vpack.c.b16 %v4898, %v4895
        %v5163 = vpack.c.b16 %v4899, %v4896
        %v5164 = vpack.c.b16 %v4903, %v4900
        %v5165 = vpack.c.b16 %v4904, %v4901
        %v5166 = vpack.c.b16 %v4905, %v4902
        %v5167 = vpack.c.b16 %v4909, %v4906
        %v5168 = vpack.c.b16 %v4910, %v4907
        %v5169 = vpack.c.b16 %v4911, %v4908
        %v5170 = vpack.c.b16 %v4915, %v4912
        %v5171 = vpack.c.b16 %v4916, %v4913
        %v5172 = vpack.c.b16 %v4917, %v4914
        %v5173 = vpack.c.b16 %v4921, %v4918
        %v5174 = vpack.c.b16 %v4922, %v4919
        %v5175 = vpack.c.b16 %v4923, %v4920
        %v5176 = vpack.c.b16 %v4927, %v4924
        %v5177 = vpack.c.b16 %v4928, %v4925
        %v5178 = vpack.c.b16 %v4929, %v4926
        %v5179 = vpack.c.b16 %v4933, %v4930
        %v5180 = vpack.c.b16 %v4934, %v4931
        %v5181 = vpack.c.b16 %v4935, %v4932
        %v5182 = vpack.c.b16 %v4939, %v4936
        %v5183 = vpack.c.b16 %v4940, %v4937
        %v5184 = vpack.c.b16 %v4941, %v4938
        %v5185 = vpack.c.b16 %v4945, %v4942
        %v5186 = vpack.c.b16 %v4946, %v4943
        %v5187 = vpack.c.b16 %v4947, %v4944
        %v5188 = vpack.c.b16 %v4951, %v4948
        %v5189 = vpack.c.b16 %v4952, %v4949
        %v5190 = vpack.c.b16 %v4953, %v4950
        %v5191 = vpack.c.b16 %v4957, %v4954
        %v5192 = vpack.c.b16 %v4958, %v4955
        %v5193 = vpack.c.b16 %v4959, %v4956
        %v5194 = vpack.c.b16 %v4963, %v4960
        %v5195 = vpack.c.b16 %v4964, %v4961
        %v5196 = vpack.c.b16 %v4965, %v4962
        %v5197 = vpack.c.b16 %v4969, %v4966
        %v5198 = vpack.c.b16 %v4970, %v4967
        %v5199 = vpack.c.b16 %v4971, %v4968
        %v5200 = vpack.c.b16 %v4975, %v4972
        %v5201 = vpack.c.b16 %v4976, %v4973
        %v5202 = vpack.c.b16 %v4977, %v4974
        %v5203 = vpack.c.b16 %v4981, %v4978
        %v5204 = vpack.c.b16 %v4982, %v4979
        %v5205 = vpack.c.b16 %v4983, %v4980
        %v5206 = vpack.c.b16 %v4987, %v4984
        %v5207 = vpack.c.b16 %v4988, %v4985
        %v5208 = vpack.c.b16 %v4989, %v4986
        %v5209 = vpack.c.b16 %v4993, %v4990
        %v5210 = vpack.c.b16 %v4994, %v4991
        %v5211 = vpack.c.b16 %v4995, %v4992
        %v5212 = vpack.c.b16 %v4999, %v4996
        %v5213 = vpack.c.b16 %v5000, %v4997
        %v5214 = vpack.c.b16 %v5001, %v4998
        %v5215 = vpack.c.b16 %v5005, %v5002
        %v5216 = vpack.c.b16 %v5006, %v5003
        %v5217 = vpack.c.b16 %v5007, %v5004
        %v5218 = vpack.c.b16 %v5011, %v5008
        %v5219 = vpack.c.b16 %v5012, %v5009
        %v5220 = vpack.c.b16 %v5013, %v5010
        %v5221 = vpack.c.b16 %v5017, %v5014
        %v5222 = vpack.c.b16 %v5018, %v5015
        %v5223 = vpack.c.b16 %v5019, %v5016
        %v5224 = vpack.c.b16 %v5023, %v5020
        %v5225 = vpack.c.b16 %v5024, %v5021
        %v5226 = vpack.c.b16 %v5025, %v5022
        %v5227 = vpack.c.b16 %v5029, %v5026
        %v5228 = vpack.c.b16 %v5030, %v5027
        %v5229 = vpack.c.b16 %v5031, %v5028
        %v5230 = vpack.c.b16 %v5035, %v5032
        %v5231 = vpack.c.b16 %v5036, %v5033
        %v5232 = vpack.c.b16 %v5037, %v5034
        %v5233 = vpack.c.b16 %v5041, %v5038
        %v5234 = vpack.c.b16 %v5042, %v5039
        %v5235 = vpack.c.b16 %v5043, %v5040
        %v5236 = vpack.c.b16 %v5047, %v5044
        %v5237 = vpack.c.b16 %v5048, %v5045
        %v5238 = vpack.c.b16 %v5049, %v5046
        %v5239 = vpack.c.b16 %v5053, %v5050
        %v5240 = vpack.c.b16 %v5054, %v5051
        %v5241 = vpack.c.b16 %v5055, %v5052
        %v5242 = vpack.c.b16 %v5059, %v5056
        %v5243 = vpack.c.b16 %v5060, %v5057
        %v5244 = vpack.c.b16 %v5061, %v5058
        %v5245 = vpack.c.b16 %v5065, %v5062
        %v5246 = vpack.c.b16 %v5066, %v5063
        %v5247 = vpack.c.b16 %v5067, %v5064
        %v5248 = vpack.c.b16 %v5071, %v5068
        %v5249 = vpack.c.b16 %v5072, %v5069
        %v5250 = vpack.c.b16 %v5073, %v5070
        %v5251 = vpack.c.b16 %v5077, %v5074
        %v5252 = vpack.c.b16 %v5078, %v5075
        %v5253 = vpack.c.b16 %v5079, %v5076
        %v5254 = vpack.c.b16 %v5083, %v5080
        %v5255 = vpack.c.b16 %v5084, %v5081
        %v5256 = vpack.c.b16 %v5085, %v5082
        %v5257 = vpack.c.b16 %v5089, %v5086
        %v5258 = vpack.c.b16 %v5090, %v5087
        %v5259 = vpack.c.b16 %v5091, %v5088
        %v5260 = vpack.c.b16 %v5095, %v5092
        %v5261 = vpack.c.b16 %v5096, %v5093
        %v5262 = vpack.c.b16 %v5097, %v5094
        %v5263 = vpack.c.b16 %v5101, %v5098
        %v5264 = vpack.c.b16 %v5102, %v5099
        %v5265 = vpack.c.b16 %v5103, %v5100
        %v5266 = vpack.c.b16 %v5107, %v5104
        %v5267 = vpack.c.b16 %v5108, %v5105
        %v5268 = vpack.c.b16 %v5109, %v5106
        %v5269 = vpack.c.b16 %v5113, %v5110
        %v5270 = vpack.c.b16 %v5114, %v5111
        %v5271 = vpack.c.b16 %v5115, %v5112
        %v5272 = vpack.c.b16 %v5119, %v5116
        %v5273 = vpack.c.b16 %v5120, %v5117
        %v5274 = vpack.c.b16 %v5121, %v5118
        %v5275 = vpack.c.b16 %v5125, %v5122
        %v5276 = vpack.c.b16 %v5126, %v5123
        %v5277 = vpack.c.b16 %v5127, %v5124
        %v5278 = vpack.c.b16 %v5131, %v5128
        %v5279 = vpack.c.b16 %v5132, %v5129
        %v5280 = vpack.c.b16 %v5133, %v5130
        %v5281 = vpack.c.b16 %v5137, %v5134
        %v5282 = vpack.c.b16 %v5138, %v5135
        %v5283 = vpack.c.b16 %v5139, %v5136
        %5428 = vmatprep.subr.bf16.mxu0 %v5162
        %5429 = vmatpush1.bf16.msra.mxu0 %v5161
        %5430 = vmatprep.subr.bf16.mxu0 %v5159
        %5431 = vmatpush1.bf16.msra.mxu0 %v5158
        %5432 = vmatprep.subr.bf16.mxu0 %v5156
        %5433 = vmatpush1.bf16.msra.mxu0 %v5155
        %5434 = vmatprep.subr.bf16.mxu0 %v5153
        %5435 = vmatpush1.bf16.msra.mxu0 %v5152
        %5436 = vmatprep.subr.bf16.mxu0 %v5150
        %5437 = vmatpush1.bf16.msra.mxu0 %v5149
        %5438 = vmatprep.subr.bf16.mxu0 %v5147
        %5439 = vmatpush1.bf16.msra.mxu0 %v5146
        %5440 = vmatprep.subr.bf16.mxu0 %v5144
        %5441 = vmatpush1.bf16.msra.mxu0 %v5143
        %5442 = vmatprep.subr.bf16.mxu0 %v5141
        %5443 = vmatpush1.bf16.msra.mxu0 %v5140
        %5444 = vmatprep.subr.bf16.mxu0 %v5186
        %5445 = vmatpush2.bf16.msra.mxu0 %v5185
        %5446 = vmatprep.subr.bf16.mxu0 %v5183
        %5447 = vmatpush2.bf16.msra.mxu0 %v5182
        %5448 = vmatprep.subr.bf16.mxu0 %v5180
        %5449 = vmatpush2.bf16.msra.mxu0 %v5179
        %5450 = vmatprep.subr.bf16.mxu0 %v5177
        %5451 = vmatpush2.bf16.msra.mxu0 %v5176
        %5452 = vmatprep.subr.bf16.mxu0 %v5174
        %5453 = vmatpush2.bf16.msra.mxu0 %v5173
        %5454 = vmatprep.subr.bf16.mxu0 %v5171
        %5455 = vmatpush2.bf16.msra.mxu0 %v5170
        %5456 = vmatprep.subr.bf16.mxu0 %v5168
        %5457 = vmatpush2.bf16.msra.mxu0 %v5167
        %5458 = vmatprep.subr.bf16.mxu0 %v5165
        %5459 = vmatpush2.bf16.msra.mxu0 %v5164
        %5460 = vmatprep.mubr.bf16.mxu0 %v4649
        %5461 = vmatmul.mubr.bf16.gmra.mxu0 %v4648
        %v5462 = vpop.f32.mrf.mxu0
        %v5463 = vadd.f32 %v4627, %v5462
        %v5464 = vpop.f32.mrf.mxu0
        %v5465 = vadd.f32 %v4631, %v5464
        %v5466 = vpop.f32.mrf.mxu0
        %v5467 = vpop.f32.mrf.mxu0
        %5468 = vdwg.mxu0
        %5469 = vmatprep.subr.bf16.mxu0 %v5210
        %5470 = vmatpush1.bf16.msra.mxu0 %v5209
        %5471 = vmatprep.subr.bf16.mxu0 %v5207
        %5472 = vmatpush1.bf16.msra.mxu0 %v5206
        %5473 = vmatprep.subr.bf16.mxu0 %v5204
        %5474 = vmatpush1.bf16.msra.mxu0 %v5203
        %5475 = vmatprep.subr.bf16.mxu0 %v5201
        %5476 = vmatpush1.bf16.msra.mxu0 %v5200
        %5477 = vmatprep.subr.bf16.mxu0 %v5198
        %5478 = vmatpush1.bf16.msra.mxu0 %v5197
        %5479 = vmatprep.subr.bf16.mxu0 %v5195
        %5480 = vmatpush1.bf16.msra.mxu0 %v5194
        %5481 = vmatprep.subr.bf16.mxu0 %v5192
        %5482 = vmatpush1.bf16.msra.mxu0 %v5191
        %5483 = vmatprep.subr.bf16.mxu0 %v5189
        %5484 = vmatpush1.bf16.msra.mxu0 %v5188
        %5485 = vmatprep.subr.bf16.mxu0 %v5234
        %5486 = vmatpush2.bf16.msra.mxu0 %v5233
        %5487 = vmatprep.subr.bf16.mxu0 %v5231
        %5488 = vmatpush2.bf16.msra.mxu0 %v5230
        %5489 = vmatprep.subr.bf16.mxu0 %v5228
        %5490 = vmatpush2.bf16.msra.mxu0 %v5227
        %5491 = vmatprep.subr.bf16.mxu0 %v5225
        %5492 = vmatpush2.bf16.msra.mxu0 %v5224
        %5493 = vmatprep.subr.bf16.mxu0 %v5222
        %5494 = vmatpush2.bf16.msra.mxu0 %v5221
        %5495 = vmatprep.subr.bf16.mxu0 %v5219
        %5496 = vmatpush2.bf16.msra.mxu0 %v5218
        %5497 = vmatprep.subr.bf16.mxu0 %v5216
        %5498 = vmatpush2.bf16.msra.mxu0 %v5215
        %5499 = vmatprep.subr.bf16.mxu0 %v5213
        %5500 = vmatpush2.bf16.msra.mxu0 %v5212
        %5501 = vmatprep.mubr.bf16.mxu0 %v4651
        %5502 = vmatmul.mubr.bf16.gmra.mxu0 %v4650
        %v5503 = vpop.f32.mrf.mxu0
        %v5504 = vadd.f32 %v5463, %v5503
        %v5505 = vpop.f32.mrf.mxu0
        %v5506 = vadd.f32 %v5465, %v5505
        %v5507 = vpop.f32.mrf.mxu0
        %v5508 = vpop.f32.mrf.mxu0
        %5509 = vdwg.mxu0
        %5510 = vmatprep.subr.bf16.mxu0 %v5258
        %5511 = vmatpush1.bf16.msra.mxu0 %v5257
        %5512 = vmatprep.subr.bf16.mxu0 %v5255
        %5513 = vmatpush1.bf16.msra.mxu0 %v5254
        %5514 = vmatprep.subr.bf16.mxu0 %v5252
        %5515 = vmatpush1.bf16.msra.mxu0 %v5251
        %5516 = vmatprep.subr.bf16.mxu0 %v5249
        %5517 = vmatpush1.bf16.msra.mxu0 %v5248
        %5518 = vmatprep.subr.bf16.mxu0 %v5246
        %5519 = vmatpush1.bf16.msra.mxu0 %v5245
        %5520 = vmatprep.subr.bf16.mxu0 %v5243
        %5521 = vmatpush1.bf16.msra.mxu0 %v5242
        %5522 = vmatprep.subr.bf16.mxu0 %v5240
        %5523 = vmatpush1.bf16.msra.mxu0 %v5239
        %5524 = vmatprep.subr.bf16.mxu0 %v5237
        %5525 = vmatpush1.bf16.msra.mxu0 %v5236
        %5526 = vmatprep.subr.bf16.mxu0 %v5282
        %5527 = vmatpush2.bf16.msra.mxu0 %v5281
        %5528 = vmatprep.subr.bf16.mxu0 %v5279
        %5529 = vmatpush2.bf16.msra.mxu0 %v5278
        %5530 = vmatprep.subr.bf16.mxu0 %v5276
        %5531 = vmatpush2.bf16.msra.mxu0 %v5275
        %5532 = vmatprep.subr.bf16.mxu0 %v5273
        %5533 = vmatpush2.bf16.msra.mxu0 %v5272
        %5534 = vmatprep.subr.bf16.mxu0 %v5270
        %5535 = vmatpush2.bf16.msra.mxu0 %v5269
        %5536 = vmatprep.subr.bf16.mxu0 %v5267
        %5537 = vmatpush2.bf16.msra.mxu0 %v5266
        %5538 = vmatprep.subr.bf16.mxu0 %v5264
        %5539 = vmatpush2.bf16.msra.mxu0 %v5263
        %5540 = vmatprep.subr.bf16.mxu0 %v5261
        %5541 = vmatpush2.bf16.msra.mxu0 %v5260
        %5542 = vmatprep.mubr.bf16.mxu0 %v4653
        %5543 = vmatmul.mubr.bf16.gmra.mxu0 %v4652
        %v5544 = vpop.f32.mrf.mxu0
        %v5545 = vadd.f32 %v5504, %v5544
        %v5546 = vpop.f32.mrf.mxu0
        %v5547 = vadd.f32 %v5506, %v5546
        %v5548 = vpop.f32.mrf.mxu0
        %v5549 = vpop.f32.mrf.mxu0
        %5550 = vdwg.mxu0
        %5551 = vmatprep.subr.bf16.mxu0 0
        %5552 = vmatpush1.bf16.msra.mxu0 %v5163
        %5553 = vmatprep.subr.bf16.mxu0 0
        %5554 = vmatpush1.bf16.msra.mxu0 %v5160
        %5555 = vmatprep.subr.bf16.mxu0 0
        %5556 = vmatpush1.bf16.msra.mxu0 %v5157
        %5557 = vmatprep.subr.bf16.mxu0 0
        %5558 = vmatpush1.bf16.msra.mxu0 %v5154
        %5559 = vmatprep.subr.bf16.mxu0 0
        %5560 = vmatpush1.bf16.msra.mxu0 %v5151
        %5561 = vmatprep.subr.bf16.mxu0 0
        %5562 = vmatpush1.bf16.msra.mxu0 %v5148
        %5563 = vmatprep.subr.bf16.mxu0 0
        %5564 = vmatpush1.bf16.msra.mxu0 %v5145
        %5565 = vmatprep.subr.bf16.mxu0 0
        %5566 = vmatpush1.bf16.msra.mxu0 %v5142
        %5567 = vmatprep.subr.bf16.mxu0 0
        %5568 = vmatpush2.bf16.msra.mxu0 %v5187
        %5569 = vmatprep.subr.bf16.mxu0 0
        %5570 = vmatpush2.bf16.msra.mxu0 %v5184
        %5571 = vmatprep.subr.bf16.mxu0 0
        %5572 = vmatpush2.bf16.msra.mxu0 %v5181
        %5573 = vmatprep.subr.bf16.mxu0 0
        %5574 = vmatpush2.bf16.msra.mxu0 %v5178
        %5575 = vmatprep.subr.bf16.mxu0 0
        %5576 = vmatpush2.bf16.msra.mxu0 %v5175
        %5577 = vmatprep.subr.bf16.mxu0 0
        %5578 = vmatpush2.bf16.msra.mxu0 %v5172
        %5579 = vmatprep.subr.bf16.mxu0 0
        %5580 = vmatpush2.bf16.msra.mxu0 %v5169
        %5581 = vmatprep.subr.bf16.mxu0 0
        %5582 = vmatpush2.bf16.msra.mxu0 %v5166
        %5583 = vmatprep.mubr.bf16.mxu0 %v4649
        %5584 = vmatmul.mubr.bf16.gmra.mxu0 %v4648
        %v5585 = vpop.f32.mrf.mxu0
        %v5586 = vadd.f32 %v4635, %v5585
        %v5587 = vpop.f32.mrf.mxu0
        %v5588 = vpop.f32.mrf.mxu0
        %v5589 = vpop.f32.mrf.mxu0
        %5590 = vdwg.mxu0
        %5591 = vmatprep.subr.bf16.mxu0 0
        %5592 = vmatpush1.bf16.msra.mxu0 %v5211
        %5593 = vmatprep.subr.bf16.mxu0 0
        %5594 = vmatpush1.bf16.msra.mxu0 %v5208
        %5595 = vmatprep.subr.bf16.mxu0 0
        %5596 = vmatpush1.bf16.msra.mxu0 %v5205
        %5597 = vmatprep.subr.bf16.mxu0 0
        %5598 = vmatpush1.bf16.msra.mxu0 %v5202
        %5599 = vmatprep.subr.bf16.mxu0 0
        %5600 = vmatpush1.bf16.msra.mxu0 %v5199
        %5601 = vmatprep.subr.bf16.mxu0 0
        %5602 = vmatpush1.bf16.msra.mxu0 %v5196
        %5603 = vmatprep.subr.bf16.mxu0 0
        %5604 = vmatpush1.bf16.msra.mxu0 %v5193
        %5605 = vmatprep.subr.bf16.mxu0 0
        %5606 = vmatpush1.bf16.msra.mxu0 %v5190
        %5607 = vmatprep.subr.bf16.mxu0 0
        %5608 = vmatpush2.bf16.msra.mxu0 %v5235
        %5609 = vmatprep.subr.bf16.mxu0 0
        %5610 = vmatpush2.bf16.msra.mxu0 %v5232
        %5611 = vmatprep.subr.bf16.mxu0 0
        %5612 = vmatpush2.bf16.msra.mxu0 %v5229
        %5613 = vmatprep.subr.bf16.mxu0 0
        %5614 = vmatpush2.bf16.msra.mxu0 %v5226
        %5615 = vmatprep.subr.bf16.mxu0 0
        %5616 = vmatpush2.bf16.msra.mxu0 %v5223
        %5617 = vmatprep.subr.bf16.mxu0 0
        %5618 = vmatpush2.bf16.msra.mxu0 %v5220
        %5619 = vmatprep.subr.bf16.mxu0 0
        %5620 = vmatpush2.bf16.msra.mxu0 %v5217
        %5621 = vmatprep.subr.bf16.mxu0 0
        %5622 = vmatpush2.bf16.msra.mxu0 %v5214
        %5623 = vmatprep.mubr.bf16.mxu0 %v4651
        %5624 = vmatmul.mubr.bf16.gmra.mxu0 %v4650
        %v5625 = vpop.f32.mrf.mxu0
        %v5626 = vadd.f32 %v5586, %v5625
        %v5627 = vpop.f32.mrf.mxu0
        %v5628 = vpop.f32.mrf.mxu0
        %v5629 = vpop.f32.mrf.mxu0
        %5630 = vdwg.mxu0
        %5631 = vmatprep.subr.bf16.mxu0 0
        %5632 = vmatpush1.bf16.msra.mxu0 %v5259
        %5633 = vmatprep.subr.bf16.mxu0 0
        %5634 = vmatpush1.bf16.msra.mxu0 %v5256
        %5635 = vmatprep.subr.bf16.mxu0 0
        %5636 = vmatpush1.bf16.msra.mxu0 %v5253
        %5637 = vmatprep.subr.bf16.mxu0 0
        %5638 = vmatpush1.bf16.msra.mxu0 %v5250
        %5639 = vmatprep.subr.bf16.mxu0 0
        %5640 = vmatpush1.bf16.msra.mxu0 %v5247
        %5641 = vmatprep.subr.bf16.mxu0 0
        %5642 = vmatpush1.bf16.msra.mxu0 %v5244
        %5643 = vmatprep.subr.bf16.mxu0 0
        %5644 = vmatpush1.bf16.msra.mxu0 %v5241
        %5645 = vmatprep.subr.bf16.mxu0 0
        %5646 = vmatpush1.bf16.msra.mxu0 %v5238
        %5647 = vmatprep.subr.bf16.mxu0 0
        %5648 = vmatpush2.bf16.msra.mxu0 %v5283
        %5649 = vmatprep.subr.bf16.mxu0 0
        %5650 = vmatpush2.bf16.msra.mxu0 %v5280
        %5651 = vmatprep.subr.bf16.mxu0 0
        %5652 = vmatpush2.bf16.msra.mxu0 %v5277
        %5653 = vmatprep.subr.bf16.mxu0 0
        %5654 = vmatpush2.bf16.msra.mxu0 %v5274
        %5655 = vmatprep.subr.bf16.mxu0 0
        %5656 = vmatpush2.bf16.msra.mxu0 %v5271
        %5657 = vmatprep.subr.bf16.mxu0 0
        %5658 = vmatpush2.bf16.msra.mxu0 %v5268
        %5659 = vmatprep.subr.bf16.mxu0 0
        %5660 = vmatpush2.bf16.msra.mxu0 %v5265
        %5661 = vmatprep.subr.bf16.mxu0 0
        %5662 = vmatpush2.bf16.msra.mxu0 %v5262
        %5663 = vmatprep.mubr.bf16.mxu0 %v4653
        %5664 = vmatmul.mubr.bf16.gmra.mxu0 %v4652
        %v5665 = vpop.f32.mrf.mxu0
        %v5666 = vadd.f32 %v5626, %v5665
        %v5667 = vpop.f32.mrf.mxu0
        %v5668 = vpop.f32.mrf.mxu0
        %v5669 = vpop.f32.mrf.mxu0
        %5670 = vdwg.mxu0
        %v5671 = vadd.f32 %v5545, %v375
        %v5672 = vadd.f32 %v5547, %v376
        %v5673 = vadd.f32 %v5666, %v377
        %v5674 = vadd.f32 %v5671, %v5672
        %v5675 = vadd.f32 %v5674, %v5673
        %5676 = vadd.xlane.f32.xlu0 %v5675
        %v5677 = vpop.xlane.xlu0 %5676
        %v5678 = vmul.f32 %v5677, 0.0033333334
        %v5679 = vsub.f32 %v5671, %v5678
        %v5680 = vsub.f32 %v5672, %v5678
        %v5681 = vsub.f32 %v5673, %v5678
        %v5682 = vmul.f32 %v5679, %v5679
        %v5683 = vmul.f32 %v5680, %v5680
        %v5684 = vmul.f32 %v5681, %v5681
        %v5685 = vadd.f32 %v5682, %v5683
        %v5686 = vadd.f32 %v5685, %v5684
        %5687 = vadd.xlane.f32.xlu0 %v5686
        %v5688 = vpop.xlane.xlu0 %5687
        %v5689 = vmul.f32 %v5678, 84.0
        %v5690 = vmul.f32 %v5689, %v5678
        %v5691 = vsub.f32 %v5688, %v5690
        %v5692 = vmul.f32 %v5691, 0.0033333334
        %v5693 = vadd.f32 %v5692, 1e-05
        %v5694 = vrsqrt.pop %v5693
        %v5695 = vmul.f32 %v5679, %v5694
        %v5696 = vmul.f32 %v5680, %v5694
        %v5697 = vmul.f32 %v5681, %v5694
        %v5698 = vld [vmem:[#allocation12] sm:$0x7]
        %v5700 = vlaneseq
        %v5701 = vshrl.u32 %v5700, 7
        %v5702 = vsub.s32 0, %v5701
        %v5703 = vrot.slane %v5698, %v5702
        %v5704 = vlaneseq
        %v5705 = vshrl.u32 %v5704, 7
        %v5706 = vsub.s32 1, %v5705
        %v5707 = vrot.slane %v5698, %v5706
        %v5708 = vlaneseq
        %v5709 = vshrl.u32 %v5708, 7
        %v5710 = vsub.s32 2, %v5709
        %v5711 = vrot.slane %v5698, %v5710
        %v5715 = vmul.f32 %v5695, %v5703
        %v5716 = vmul.f32 %v5696, %v5707
        %v5717 = vmul.f32 %v5697, %v5711
        %v5718 = vld [vmem:[#allocation14] sm:$0x7]
        %v5720 = vlaneseq
        %v5721 = vshrl.u32 %v5720, 7
        %v5722 = vsub.s32 0, %v5721
        %v5723 = vrot.slane %v5718, %v5722
        %v5724 = vlaneseq
        %v5725 = vshrl.u32 %v5724, 7
        %v5726 = vsub.s32 1, %v5725
        %v5727 = vrot.slane %v5718, %v5726
        %v5728 = vlaneseq
        %v5729 = vshrl.u32 %v5728, 7
        %v5730 = vsub.s32 2, %v5729
        %v5731 = vrot.slane %v5718, %v5730
        %v5735 = vadd.f32 %v5715, %v5723
        %v5736 = vadd.f32 %v5716, %v5727
        %v5737 = vadd.f32 %v5717, %v5731
        %5738 = vst [vmem:[%s373] sm:$0xff] %v5735
        %5739 = vst [vmem:[%s373 + $0x8] sm:$0xff] %v5736
        %5740 = vst [vmem:[%s373 + $0x10] sm:$0xff] %v5737
        %s5741 = sand.u32 %s187, 1
        %s5742 = scalar_lea.sflag [#allocation5], %s5741
        %s5743 = sand.u32 %s187, 1
        %s5744 = smul.addr %s5743, 24
        %s5745 = scalar_lea.vmem [#allocation15], %s5744
        // Predicated region
        $region77: #{tpu_custom_call.1} parent=47 // pred_check
          %p5746 = pneg %p197
        $region78: #{tpu_custom_call.1} parent=47 // pred_check_branch
          %5748 = sbr.rel (%p5746) target = $region80
        $region79: #{tpu_custom_call.1} parent=47 // pred_region
          %s5750 = ssub.s32 384, 384
          %5751 = vsyncadd %s5742, %s5750
          %s5752 = smul.addr %s27, 3
          %s5753 = smul.addr %s5752, 128
          %s5754 = scalar_lea.hbm %s7, %s5753
          %s5756 = sshll.u32 %s5745, 4
          %s5757 = int_to_ptr.vmem [resolvable:$true] %s5756
          %5759 = dma.vmem_to_hbm [thread:$0]  %s5757, 384, %s5754, %s5742
        $region80: #{tpu_custom_call.1} parent=47 // pred_fallthru
          _
      $region48: #{tpu_custom_call.1} parent=5 // pred_fallthru
        _
      %p5760 = scmp.le.s32.totalorder 2, %s22
      // Predicated region
      $region81: #{tpu_custom_call.1} parent=5 // pred_check
        %p5761 = pneg %p5760
      $region82: #{tpu_custom_call.1} parent=5 // pred_check_branch
        %5763 = sbr.rel (%p5761) target = $region84
      $region83: #{tpu_custom_call.1} parent=5 // pred_region
        %s5764 = ssub.s32 %s22, 2
        // Predicated region
        $region85: #{tpu_custom_call.1} parent=83 // pred_check
          %p5765 = pneg %p203
        $region86: #{tpu_custom_call.1} parent=83 // pred_check_branch
          %5767 = sbr.rel (%p5765) target = $region88
        $region87: #{tpu_custom_call.1} parent=83 // pred_region
          %s5768 = sand.u32 %s188, 1
          %s5769 = scalar_lea.sflag [#allocation5], %s5768
          %s5770 = sand.u32 %s188, 1
          %s5771 = smul.addr %s5770, 24
          %s5772 = scalar_lea.vmem [#allocation15], %s5771
          %5773 = dma.done %s5769, 384
        $region88: #{tpu_custom_call.1} parent=83 // pred_fallthru
          _
      $region84: #{tpu_custom_call.1} parent=5 // pred_fallthru
        _
    $region6: #{tpu_custom_call.1} parent=1 // loop_footer
      %s26 = sadd.s32 1, %s22
    $region7: #{tpu_custom_call.1} parent=1 // loop_footer_branch
      %21 = sbr.rel target = $region3
    $region8: #{tpu_custom_call.1} parent=1 // loop_exit
      _
    %5774 = vsyncpa [#allocation4], 1
    %s5775 = scalar_lea.sflag [#allocation4], 1
    %5776 = vsyncpa %s5775, 1
    %5777 = vsyncpa [#allocation7], 1
    %5778 = vsyncpa [#allocation10], 1
    %5779 = vsyncpa [#allocation13], 1
    %5780 = vsyncpa [#allocation5], 1
    %s5781 = scalar_lea.sflag [#allocation5], 1
    %5782 = vsyncpa %s5781, 1

</llo_original>
